<compile_context>
chip_gen: v6e
topology: v6e:2x2x1
jax: 0.10.0
libtpu: 0.0.40
codegen_flags: <defaults>
</compile_context>

<pallas_src>
import math

import jax
import jax.numpy as jnp
from jax.experimental import pallas as pl
from jax.experimental.pallas import tpu as pltpu

# ----------------------------- hyper-parameters (small, consistent with module) ------
BATCH = 2
MAX_CHAIN1_LEN = 12
MAX_CHAIN2_LEN = 4
N_AA = MAX_CHAIN1_LEN + MAX_CHAIN2_LEN            # 16 residues per graph
BN = BATCH * N_AA                                 # 32 rows (batch flattened)
DIM_EMB = 32                                      # dim_emb
NUM_HEADS = 4                                     # num_heads
DIM_HEAD = DIM_EMB // NUM_HEADS                   # 8
DIM_FF = 2 * DIM_EMB                              # FFN hidden
NUM_CONV = 2                                      # num transformer blocks
NUM_NODE_CLASSES = 43
NUM_EDGE_CLASSES = 6
DIM_OUT = 15                                      # OutDim.BACKBONE
DIM_OUT_PAD = 128                                 # lane-dense output slab; sliced in wrapper
LN_EPS = 1e-5
NEG_INF = -1e9

# lane offsets inside the packed weight slabs
VO_W = NUM_HEADS * DIM_EMB                        # 128: folded V@Wo width
Q_OFF = VO_W                                      # 128
K_OFF = VO_W + DIM_EMB                            # 160
PROJ_W = VO_W + 2 * DIM_EMB                       # 192
C1_OFF = 0                                        # conv1 taps at lanes [0, 96)
C2_OFF = 128                                      # conv2 taps at lanes [128, 512)
HEAD_W = C2_OFF + 3 * DIM_OUT_PAD                 # 512


# ----------------------------- Pallas kernel -----------------------------------------
def _layer_norm(h, w, b):
    mu = jnp.mean(h, axis=-1, keepdims=True)
    xc = h - mu
    var = jnp.mean(xc * xc, axis=-1, keepdims=True)
    return xc * jax.lax.rsqrt(var + LN_EPS) * w + b


def fused_forward_kernel(x_ref, bias_ref, wproj_ref, wffn_ref, whead_ref,
                         wshift_ref, sm_ref, out_ref):
    """Whole TrEGNNBlock forward: NUM_CONV transformer blocks + conv head, one program."""
    f32 = jnp.float32
    x = x_ref[...]                                          # (BN, D) f32, stays resident

    for blk in range(NUM_CONV):                             # unrolled (NUM_CONV = 2)
        base = 3 * blk
        # fused projection: lanes [0:128]=x@Wvo (Wo pre-folded per head), [128:160]=q,
        # [160:192]=k.  Softmax scale is pre-folded into Wq.
        proj = jnp.dot(x, wproj_ref[blk], preferred_element_type=f32)     # (BN, 192)
        vo = proj[:, 0:VO_W]
        q = proj[:, Q_OFF:Q_OFF + DIM_EMB] + sm_ref[base:base + 1, 0:DIM_EMB]
        k = proj[:, K_OFF:K_OFF + DIM_EMB] + sm_ref[base:base + 1, DIM_EMB:2 * DIM_EMB]

        bias_blk = bias_ref[blk]            # (BN, H*BN): per-head edge bias, -inf prefolded
        attn = sm_ref[base:base + 1, 2 * DIM_EMB:3 * DIM_EMB]             # bo_eff (1, D)

        for h in range(NUM_HEADS):                           # heads unrolled (H = 4)
            qh = q[:, h * DIM_HEAD:(h + 1) * DIM_HEAD]
            kh = k[:, h * DIM_HEAD:(h + 1) * DIM_HEAD]
            logits = jax.lax.dot_general(                    # q @ k^T (MXU transpose_rhs)
                qh, kh, (((1,), (1,)), ((), ())), preferred_element_type=f32)
            logits = logits + bias_blk[:, h * BN:(h + 1) * BN]
            p = jnp.exp(logits)                              # masked cols: exp(-1e9) == 0
            p = p * (1.0 / jnp.sum(p, axis=-1, keepdims=True))
            attn = attn + jnp.dot(p, vo[:, h * DIM_EMB:(h + 1) * DIM_EMB],
                                  preferred_element_type=f32)

        h1 = _layer_norm(x + attn,
                         sm_ref[base + 1:base + 2, 0:DIM_EMB],
                         sm_ref[base + 1:base + 2, DIM_EMB:2 * DIM_EMB])
        w1 = wffn_ref[blk, 0:DIM_EMB, :]                               # (D, FF)
        w2 = wffn_ref[blk, DIM_EMB:DIM_EMB + DIM_FF, 0:DIM_EMB]        # (FF, D)
        f = jnp.dot(h1, w1, preferred_element_type=f32) + sm_ref[base + 2:base + 3, 0:DIM_FF]
        f = jnp.maximum(f, 0.0)
        f = jnp.dot(f, w2, preferred_element_type=f32) \
            + sm_ref[base + 2:base + 3, DIM_FF:DIM_FF + DIM_EMB]
        x = _layer_norm(h1 + f,
                        sm_ref[base + 1:base + 2, 2 * DIM_EMB:3 * DIM_EMB],
                        sm_ref[base + 1:base + 2, 3 * DIM_EMB:4 * DIM_EMB])

    # StructurePredictionHead: two k=3 'same' 1D convs with ReLU in between.
    # Neighbour gathers via precomputed boundary-aware shift matrices (MXU): rows at
    # graph starts/ends are zeroed inside Sl/Sr, so there is no cross-graph leakage and
    # no negative-shift roll / concat / in-kernel mask is needed.
    sl = wshift_ref[:, 0:BN]                                           # (BN, BN)
    sr = wshift_ref[:, BN:2 * BN]                                      # (BN, BN)

    def conv3(inp, off, width, bias_row, bias_w):
        t = jnp.dot(inp, whead_ref[:, off:off + 3 * width],            # x @ [Wl|Wc|Wr]
                    preferred_element_type=f32)
        y = (jnp.dot(sl, t[:, 0:width], preferred_element_type=f32)    # left-neighbour tap
             + t[:, width:2 * width]                                   # centre tap
             + jnp.dot(sr, t[:, 2 * width:3 * width], preferred_element_type=f32))
        return y + sm_ref[bias_row:bias_row + 1, 0:bias_w]

    hmid = jnp.maximum(conv3(x, C1_OFF, DIM_EMB, 3 * NUM_CONV, DIM_EMB), 0.0)
    out_ref[...] = conv3(hmid, C2_OFF, DIM_OUT_PAD, 3 * NUM_CONV + 1, DIM_OUT_PAD)


# ----------------------------- pallas_call wrapper ------------------------------------
@jax.jit
def tr_egnn_forward(params, node_classes, node_position, edge_classes):
    # FeatureBuilder + learned positional encoding (embedding gathers stay in XLA).
    x0 = (params["node_emb"][node_classes] + params["pos_emb"][node_position]
          ).reshape(BN, DIM_EMB).astype(jnp.float32)

    # Per-block, per-head additive attention bias, block-diagonal over the flattened
    # batch with the cross-graph -inf mask folded in (replaces the old eT @ W_kron).
    tab = params["edge_bias_table"]                          # (C, E, H)
    b_nnh = tab[:, edge_classes]                             # (C, B, N, N, H)
    b_nhn = jnp.transpose(b_nnh, (0, 1, 2, 4, 3))            # (C, B, N, H, N)
    same = jnp.eye(BATCH, dtype=bool)
    bias = jnp.where(same[None, :, None, None, :, None],
                     b_nhn[:, :, :, :, None, :], NEG_INF)    # (C, B, N, H, B, N)
    bias = bias.reshape(NUM_CONV, BN, NUM_HEADS * BN).astype(jnp.float32)

    inputs = (x0, bias, params["w_proj"], params["w_ffn"], params["w_head"],
              params["w_shift"], params["smalls"])
    out_slab = pl.pallas_call(
        fused_forward_kernel,
        out_shape=jax.ShapeDtypeStruct((BN, DIM_OUT_PAD), jnp.float32),
        in_specs=[pl.BlockSpec(memory_space=pltpu.MemorySpace.VMEM)
                  for _ in range(len(inputs))],
        out_specs=pl.BlockSpec(memory_space=pltpu.MemorySpace.VMEM),
    )(*inputs)

    return out_slab[:, :DIM_OUT].reshape(BATCH, N_AA, DIM_OUT)


# ----------------------------- parameter init (deterministic, synthetic) --------------
def _dense(key, shape, scale=None):
    if scale is None:
        scale = 1.0 / math.sqrt(shape[-2] if len(shape) > 1 else shape[0])
    return (scale * jax.random.normal(key, shape)).astype(jnp.float32)


def _row128(*pieces):
    v = jnp.concatenate([jnp.asarray(p, jnp.float32).reshape(-1) for p in pieces])
    return jnp.pad(v, (0, 128 - v.shape[0]))


def init_params(key):
    keys = jax.random.split(key, 4 + NUM_CONV)
    params = {
        "node_emb": _dense(keys[0], (NUM_NODE_CLASSES, DIM_EMB), 0.02),
        "pos_emb": _dense(keys[1], (N_AA, DIM_EMB), 0.02),
    }
    edge_emb = _dense(keys[2], (NUM_EDGE_CLASSES, DIM_EMB), 0.02)

    scale = 1.0 / math.sqrt(DIM_HEAD)
    w_proj, w_ffn, tables, sm_rows = [], [], [], []
    for i in range(NUM_CONV):
        bk = jax.random.split(keys[3 + i], 7)
        wq = _dense(bk[0], (DIM_EMB, DIM_EMB))
        wk = _dense(bk[1], (DIM_EMB, DIM_EMB))
        wv = _dense(bk[2], (DIM_EMB, DIM_EMB))
        wo = _dense(bk[3], (DIM_EMB, DIM_EMB))
        we = _dense(bk[4], (DIM_EMB, NUM_HEADS))      # edge-emb -> per-head attn bias
        # biases of the real module (zero in this synthetic init, but folded exactly)
        bq = jnp.zeros((DIM_EMB,), jnp.float32)
        bkb = jnp.zeros((DIM_EMB,), jnp.float32)
        bv = jnp.zeros((DIM_EMB,), jnp.float32)
        bo = jnp.zeros((DIM_EMB,), jnp.float32)
        be = jnp.zeros((NUM_HEADS,), jnp.float32)

        # fold Wo into the per-head V projection and the softmax scale into Wq.
        wvo = jnp.concatenate(
            [wv[:, h * DIM_HEAD:(h + 1) * DIM_HEAD] @ wo[h * DIM_HEAD:(h + 1) * DIM_HEAD, :]
             for h in range(NUM_HEADS)], axis=1)                              # (D, H*D)
        bo_eff = bo + sum(
            bv[h * DIM_HEAD:(h + 1) * DIM_HEAD] @ wo[h * DIM_HEAD:(h + 1) * DIM_HEAD, :]
            for h in range(NUM_HEADS))         # exact: softmax rows sum to 1
        w_proj.append(jnp.concatenate([wvo, wq * scale, wk], axis=1))         # (D, 192)

        w1 = _dense(bk[5], (DIM_EMB, DIM_FF))
        w2 = _dense(bk[6], (DIM_FF, DIM_EMB))
        w_ffn.append(jnp.concatenate(
            [w1, jnp.pad(w2, ((0, 0), (0, DIM_FF - DIM_EMB)))], axis=0))      # (96, 64)

        # edge-class -> per-head additive bias table (replaces the Kron-expanded matmul)
        tables.append(edge_emb @ we + be[None, :])                            # (E, H)

        sm_rows.append(_row128(bq * scale, bkb, bo_eff))
        sm_rows.append(_row128(jnp.ones((DIM_EMB,)), jnp.zeros((DIM_EMB,)),
                               jnp.ones((DIM_EMB,)), jnp.zeros((DIM_EMB,))))  # ln1 / ln2
        sm_rows.append(_row128(jnp.zeros((DIM_FF,)), jnp.zeros((DIM_EMB,))))  # ffn biases

    params["w_proj"] = jnp.stack(w_proj)                     # (C, 32, 192)
    params["w_ffn"] = jnp.stack(w_ffn)                       # (C, 96, 64)
    params["edge_bias_table"] = jnp.stack(tables)            # (C, 6, 4)

    # StructurePredictionHead: two k=3 Conv1d layers ('same' padding), ReLU between.
    hk = jax.random.split(keys[3 + NUM_CONV], 2)
    w1c = _dense(hk[0], (3, DIM_EMB, DIM_EMB), 1.0 / math.sqrt(3 * DIM_EMB))  # (tap, in, out)
    w2c = _dense(hk[1], (3, DIM_EMB, DIM_OUT), 1.0 / math.sqrt(3 * DIM_EMB))
    # TODO(synk): real PyTorch Conv1d weights are (out, in, k); re-permute when loading.
    w2c = jnp.pad(w2c, ((0, 0), (0, 0), (0, DIM_OUT_PAD - DIM_OUT)))          # (3, 32, 128)
    wcat1 = jnp.concatenate([w1c[0], w1c[1], w1c[2]], axis=1)                 # (32, 96)
    wcat2 = jnp.concatenate([w2c[0], w2c[1], w2c[2]], axis=1)                 # (32, 384)
    params["w_head"] = jnp.concatenate(
        [wcat1, jnp.zeros((DIM_EMB, C2_OFF - 3 * DIM_EMB), jnp.float32), wcat2],
        axis=1)                                                               # (32, 512)
    sm_rows.append(_row128(jnp.zeros((DIM_EMB,))))           # head conv1 bias
    sm_rows.append(_row128(jnp.zeros((DIM_OUT_PAD,))))       # head conv2 bias (padded)
    params["smalls"] = jnp.stack(sm_rows)                    # (8, 128)

    # boundary-aware +/-1 shift matrices for the conv head (rows at each graph's first /
    # last residue are zero, so neighbour taps never leak across graphs).
    idx = jnp.arange(BN)
    sl = ((idx[:, None] - 1 == idx[None, :]) &
          ((idx % N_AA) != 0)[:, None]).astype(jnp.float32)
    sr = ((idx[:, None] + 1 == idx[None, :]) &
          ((idx % N_AA) != N_AA - 1)[:, None]).astype(jnp.float32)
    params["w_shift"] = jnp.concatenate([sl, sr], axis=1)    # (32, 64)
    return params


# ----------------------------- main ---------------------------------------------------
if __name__ == "__main__":
    key = jax.random.PRNGKey(0)
    pkey, k1, k2 = jax.random.split(key, 3)

    params = init_params(pkey)
    node_classes = jax.random.randint(k1, (BATCH, N_AA), 0, NUM_NODE_CLASSES)
    node_position = jnp.broadcast_to(jnp.arange(N_AA, dtype=jnp.int32), (BATCH, N_AA))
    edge_classes = jax.random.randint(k2, (BATCH, N_AA, N_AA), 0, NUM_EDGE_CLASSES)

    out = tr_egnn_forward(params, node_classes, node_position, edge_classes)
    out = jax.block_until_ready(out)

    assert out.shape == (BATCH, N_AA, DIM_OUT), out.shape
    assert out.dtype == jnp.float32
    assert bool(jnp.all(jnp.isfinite(out)))
    print("KERNEL_OK")
</pallas_src>

<mosaic_0001>
module attributes {stable_mosaic.version = 11 : i64} {
  func.func @fused_forward_kernel(%arg0: memref<32x32xf32, #tpu.memory_space<vmem>>, %arg1: memref<2x32x128xf32, #tpu.memory_space<vmem>>, %arg2: memref<2x32x192xf32, #tpu.memory_space<vmem>>, %arg3: memref<2x96x64xf32, #tpu.memory_space<vmem>>, %arg4: memref<32x512xf32, #tpu.memory_space<vmem>>, %arg5: memref<32x64xf32, #tpu.memory_space<vmem>>, %arg6: memref<8x128xf32, #tpu.memory_space<vmem>>, %arg7: memref<32x128xf32, #tpu.memory_space<vmem>>) attributes {dimension_semantics = [], scalar_prefetch = 0 : i64, scratch_operands = 0 : i64, tpu.core_type = #tpu.core_type<tc>} {
    %c0 = arith.constant 0 : index
    %c0_0 = arith.constant 0 : index
    %0 = vector.load %arg0[%c0, %c0_0] : memref<32x32xf32, #tpu.memory_space<vmem>>, vector<32x32xf32>
    %c0_1 = arith.constant 0 : index
    %c0_2 = arith.constant 0 : index
    %c0_3 = arith.constant 0 : index
    %1 = vector.load %arg2[%c0_1, %c0_2, %c0_3] : memref<2x32x192xf32, #tpu.memory_space<vmem>>, vector<1x32x192xf32>
    %2 = vector.shape_cast %1 : vector<1x32x192xf32> to vector<32x192xf32>
    %cst = arith.constant dense<0.000000e+00> : vector<32x192xf32>
    %3 = tpu.matmul %0, %2, %cst {dimension_numbers = #tpu.dot_dimension_numbers<[1], [0], [0], [1], [0, 0, 1, 1], [], []>} : vector<32x32xf32>, vector<32x192xf32>, vector<32x192xf32> -> vector<32x192xf32>
    %4 = vector.extract_strided_slice %3 {offsets = [0, 0], sizes = [32, 128], strides = [1, 1]} : vector<32x192xf32> to vector<32x128xf32>
    %5 = vector.extract_strided_slice %3 {offsets = [0, 128], sizes = [32, 32], strides = [1, 1]} : vector<32x192xf32> to vector<32x32xf32>
    %c0_4 = arith.constant 0 : index
    %c0_5 = arith.constant 0 : index
    %6 = vector.load %arg6[%c0_4, %c0_5] : memref<8x128xf32, #tpu.memory_space<vmem>>, vector<1x32xf32>
    %7 = vector.broadcast %6 : vector<1x32xf32> to vector<32x32xf32>
    %8 = arith.addf %5, %7 : vector<32x32xf32>
    %9 = vector.extract_strided_slice %3 {offsets = [0, 160], sizes = [32, 32], strides = [1, 1]} : vector<32x192xf32> to vector<32x32xf32>
    %c0_6 = arith.constant 0 : index
    %c32 = arith.constant 32 : index
    %10 = vector.load %arg6[%c0_6, %c32] : memref<8x128xf32, #tpu.memory_space<vmem>>, vector<1x32xf32>
    %11 = vector.broadcast %10 : vector<1x32xf32> to vector<32x32xf32>
    %12 = arith.addf %9, %11 : vector<32x32xf32>
    %c0_7 = arith.constant 0 : index
    %c0_8 = arith.constant 0 : index
    %c0_9 = arith.constant 0 : index
    %13 = vector.load %arg1[%c0_7, %c0_8, %c0_9] : memref<2x32x128xf32, #tpu.memory_space<vmem>>, vector<1x32x128xf32>
    %14 = vector.shape_cast %13 : vector<1x32x128xf32> to vector<32x128xf32>
    %c0_10 = arith.constant 0 : index
    %c64 = arith.constant 64 : index
    %15 = vector.load %arg6[%c0_10, %c64] : memref<8x128xf32, #tpu.memory_space<vmem>>, vector<1x32xf32>
    %16 = vector.extract_strided_slice %8 {offsets = [0, 0], sizes = [32, 8], strides = [1, 1]} : vector<32x32xf32> to vector<32x8xf32>
    %17 = vector.extract_strided_slice %12 {offsets = [0, 0], sizes = [32, 8], strides = [1, 1]} : vector<32x32xf32> to vector<32x8xf32>
    %cst_11 = arith.constant dense<0.000000e+00> : vector<32x32xf32>
    %18 = tpu.matmul %16, %17, %cst_11 {dimension_numbers = #tpu.dot_dimension_numbers<[1], [1], [0], [0], [0, 0, 1, 0], [], []>} : vector<32x8xf32>, vector<32x8xf32>, vector<32x32xf32> -> vector<32x32xf32>
    %19 = vector.extract_strided_slice %14 {offsets = [0, 0], sizes = [32, 32], strides = [1, 1]} : vector<32x128xf32> to vector<32x32xf32>
    %20 = arith.addf %18, %19 : vector<32x32xf32>
    %21 = math.exp %20 : vector<32x32xf32>
    %cst_12 = arith.constant dense<0.000000e+00> : vector<32xf32>
    %22 = vector.multi_reduction <add>, %21, %cst_12 [1] : vector<32x32xf32> to vector<32xf32>
    %23 = vector.shape_cast %22 : vector<32xf32> to vector<32x1xf32>
    %cst_13 = arith.constant 1.000000e+00 : f32
    %24 = vector.broadcast %cst_13 : f32 to vector<32x1xf32>
    %25 = arith.divf %24, %23 : vector<32x1xf32>
    %26 = vector.broadcast %25 : vector<32x1xf32> to vector<32x32xf32>
    %27 = arith.mulf %21, %26 : vector<32x32xf32>
    %28 = vector.extract_strided_slice %4 {offsets = [0, 0], sizes = [32, 32], strides = [1, 1]} : vector<32x128xf32> to vector<32x32xf32>
    %cst_14 = arith.constant dense<0.000000e+00> : vector<32x32xf32>
    %29 = tpu.matmul %27, %28, %cst_14 {dimension_numbers = #tpu.dot_dimension_numbers<[1], [0], [0], [1], [0, 0, 1, 1], [], []>} : vector<32x32xf32>, vector<32x32xf32>, vector<32x32xf32> -> vector<32x32xf32>
    %30 = vector.broadcast %15 : vector<1x32xf32> to vector<32x32xf32>
    %31 = arith.addf %30, %29 : vector<32x32xf32>
    %32 = vector.extract_strided_slice %8 {offsets = [0, 8], sizes = [32, 8], strides = [1, 1]} : vector<32x32xf32> to vector<32x8xf32>
    %33 = vector.extract_strided_slice %12 {offsets = [0, 8], sizes = [32, 8], strides = [1, 1]} : vector<32x32xf32> to vector<32x8xf32>
    %cst_15 = arith.constant dense<0.000000e+00> : vector<32x32xf32>
    %34 = tpu.matmul %32, %33, %cst_15 {dimension_numbers = #tpu.dot_dimension_numbers<[1], [1], [0], [0], [0, 0, 1, 0], [], []>} : vector<32x8xf32>, vector<32x8xf32>, vector<32x32xf32> -> vector<32x32xf32>
    %35 = vector.extract_strided_slice %14 {offsets = [0, 32], sizes = [32, 32], strides = [1, 1]} : vector<32x128xf32> to vector<32x32xf32>
    %36 = arith.addf %34, %35 : vector<32x32xf32>
    %37 = math.exp %36 : vector<32x32xf32>
    %cst_16 = arith.constant dense<0.000000e+00> : vector<32xf32>
    %38 = vector.multi_reduction <add>, %37, %cst_16 [1] : vector<32x32xf32> to vector<32xf32>
    %39 = vector.shape_cast %38 : vector<32xf32> to vector<32x1xf32>
    %cst_17 = arith.constant 1.000000e+00 : f32
    %40 = vector.broadcast %cst_17 : f32 to vector<32x1xf32>
    %41 = arith.divf %40, %39 : vector<32x1xf32>
    %42 = vector.broadcast %41 : vector<32x1xf32> to vector<32x32xf32>
    %43 = arith.mulf %37, %42 : vector<32x32xf32>
    %44 = vector.extract_strided_slice %4 {offsets = [0, 32], sizes = [32, 32], strides = [1, 1]} : vector<32x128xf32> to vector<32x32xf32>
    %cst_18 = arith.constant dense<0.000000e+00> : vector<32x32xf32>
    %45 = tpu.matmul %43, %44, %cst_18 {dimension_numbers = #tpu.dot_dimension_numbers<[1], [0], [0], [1], [0, 0, 1, 1], [], []>} : vector<32x32xf32>, vector<32x32xf32>, vector<32x32xf32> -> vector<32x32xf32>
    %46 = arith.addf %31, %45 : vector<32x32xf32>
    %47 = vector.extract_strided_slice %8 {offsets = [0, 16], sizes = [32, 8], strides = [1, 1]} : vector<32x32xf32> to vector<32x8xf32>
    %48 = vector.extract_strided_slice %12 {offsets = [0, 16], sizes = [32, 8], strides = [1, 1]} : vector<32x32xf32> to vector<32x8xf32>
    %cst_19 = arith.constant dense<0.000000e+00> : vector<32x32xf32>
    %49 = tpu.matmul %47, %48, %cst_19 {dimension_numbers = #tpu.dot_dimension_numbers<[1], [1], [0], [0], [0, 0, 1, 0], [], []>} : vector<32x8xf32>, vector<32x8xf32>, vector<32x32xf32> -> vector<32x32xf32>
    %50 = vector.extract_strided_slice %14 {offsets = [0, 64], sizes = [32, 32], strides = [1, 1]} : vector<32x128xf32> to vector<32x32xf32>
    %51 = arith.addf %49, %50 : vector<32x32xf32>
    %52 = math.exp %51 : vector<32x32xf32>
    %cst_20 = arith.constant dense<0.000000e+00> : vector<32xf32>
    %53 = vector.multi_reduction <add>, %52, %cst_20 [1] : vector<32x32xf32> to vector<32xf32>
    %54 = vector.shape_cast %53 : vector<32xf32> to vector<32x1xf32>
    %cst_21 = arith.constant 1.000000e+00 : f32
    %55 = vector.broadcast %cst_21 : f32 to vector<32x1xf32>
    %56 = arith.divf %55, %54 : vector<32x1xf32>
    %57 = vector.broadcast %56 : vector<32x1xf32> to vector<32x32xf32>
    %58 = arith.mulf %52, %57 : vector<32x32xf32>
    %59 = vector.extract_strided_slice %4 {offsets = [0, 64], sizes = [32, 32], strides = [1, 1]} : vector<32x128xf32> to vector<32x32xf32>
    %cst_22 = arith.constant dense<0.000000e+00> : vector<32x32xf32>
    %60 = tpu.matmul %58, %59, %cst_22 {dimension_numbers = #tpu.dot_dimension_numbers<[1], [0], [0], [1], [0, 0, 1, 1], [], []>} : vector<32x32xf32>, vector<32x32xf32>, vector<32x32xf32> -> vector<32x32xf32>
    %61 = arith.addf %46, %60 : vector<32x32xf32>
    %62 = vector.extract_strided_slice %8 {offsets = [0, 24], sizes = [32, 8], strides = [1, 1]} : vector<32x32xf32> to vector<32x8xf32>
    %63 = vector.extract_strided_slice %12 {offsets = [0, 24], sizes = [32, 8], strides = [1, 1]} : vector<32x32xf32> to vector<32x8xf32>
    %cst_23 = arith.constant dense<0.000000e+00> : vector<32x32xf32>
    %64 = tpu.matmul %62, %63, %cst_23 {dimension_numbers = #tpu.dot_dimension_numbers<[1], [1], [0], [0], [0, 0, 1, 0], [], []>} : vector<32x8xf32>, vector<32x8xf32>, vector<32x32xf32> -> vector<32x32xf32>
    %65 = vector.extract_strided_slice %14 {offsets = [0, 96], sizes = [32, 32], strides = [1, 1]} : vector<32x128xf32> to vector<32x32xf32>
    %66 = arith.addf %64, %65 : vector<32x32xf32>
    %67 = math.exp %66 : vector<32x32xf32>
    %cst_24 = arith.constant dense<0.000000e+00> : vector<32xf32>
    %68 = vector.multi_reduction <add>, %67, %cst_24 [1] : vector<32x32xf32> to vector<32xf32>
    %69 = vector.shape_cast %68 : vector<32xf32> to vector<32x1xf32>
    %cst_25 = arith.constant 1.000000e+00 : f32
    %70 = vector.broadcast %cst_25 : f32 to vector<32x1xf32>
    %71 = arith.divf %70, %69 : vector<32x1xf32>
    %72 = vector.broadcast %71 : vector<32x1xf32> to vector<32x32xf32>
    %73 = arith.mulf %67, %72 : vector<32x32xf32>
    %74 = vector.extract_strided_slice %4 {offsets = [0, 96], sizes = [32, 32], strides = [1, 1]} : vector<32x128xf32> to vector<32x32xf32>
    %cst_26 = arith.constant dense<0.000000e+00> : vector<32x32xf32>
    %75 = tpu.matmul %73, %74, %cst_26 {dimension_numbers = #tpu.dot_dimension_numbers<[1], [0], [0], [1], [0, 0, 1, 1], [], []>} : vector<32x32xf32>, vector<32x32xf32>, vector<32x32xf32> -> vector<32x32xf32>
    %76 = arith.addf %61, %75 : vector<32x32xf32>
    %77 = arith.addf %0, %76 : vector<32x32xf32>
    %c1 = arith.constant 1 : index
    %c0_27 = arith.constant 0 : index
    %78 = vector.load %arg6[%c1, %c0_27] : memref<8x128xf32, #tpu.memory_space<vmem>>, vector<1x32xf32>
    %c1_28 = arith.constant 1 : index
    %c32_29 = arith.constant 32 : index
    %79 = vector.load %arg6[%c1_28, %c32_29] : memref<8x128xf32, #tpu.memory_space<vmem>>, vector<1x32xf32>
    %cst_30 = arith.constant dense<0.000000e+00> : vector<32xf32>
    %80 = vector.multi_reduction <add>, %77, %cst_30 [1] : vector<32x32xf32> to vector<32xf32>
    %81 = vector.shape_cast %80 : vector<32xf32> to vector<32x1xf32>
    %cst_31 = arith.constant 3.200000e+01 : f32
    %82 = vector.broadcast %cst_31 : f32 to vector<32x1xf32>
    %83 = arith.divf %81, %82 : vector<32x1xf32>
    %84 = vector.broadcast %83 : vector<32x1xf32> to vector<32x32xf32>
    %85 = arith.subf %77, %84 : vector<32x32xf32>
    %86 = arith.mulf %85, %85 : vector<32x32xf32>
    %cst_32 = arith.constant dense<0.000000e+00> : vector<32xf32>
    %87 = vector.multi_reduction <add>, %86, %cst_32 [1] : vector<32x32xf32> to vector<32xf32>
    %88 = vector.shape_cast %87 : vector<32xf32> to vector<32x1xf32>
    %cst_33 = arith.constant 3.200000e+01 : f32
    %89 = vector.broadcast %cst_33 : f32 to vector<32x1xf32>
    %90 = arith.divf %88, %89 : vector<32x1xf32>
    %cst_34 = arith.constant 9.99999974E-6 : f32
    %91 = vector.broadcast %cst_34 : f32 to vector<32x1xf32>
    %92 = arith.addf %90, %91 : vector<32x1xf32>
    %93 = math.rsqrt %92 : vector<32x1xf32>
    %94 = vector.broadcast %93 : vector<32x1xf32> to vector<32x32xf32>
    %95 = arith.mulf %85, %94 : vector<32x32xf32>
    %96 = vector.broadcast %78 : vector<1x32xf32> to vector<32x32xf32>
    %97 = arith.mulf %95, %96 : vector<32x32xf32>
    %98 = vector.broadcast %79 : vector<1x32xf32> to vector<32x32xf32>
    %99 = arith.addf %97, %98 : vector<32x32xf32>
    %c0_35 = arith.constant 0 : index
    %c0_36 = arith.constant 0 : index
    %c0_37 = arith.constant 0 : index
    %100 = vector.load %arg3[%c0_35, %c0_36, %c0_37] : memref<2x96x64xf32, #tpu.memory_space<vmem>>, vector<1x32x64xf32>
    %101 = vector.shape_cast %100 : vector<1x32x64xf32> to vector<32x64xf32>
    %c0_38 = arith.constant 0 : index
    %c32_39 = arith.constant 32 : index
    %c0_40 = arith.constant 0 : index
    %102 = vector.load %arg3[%c0_38, %c32_39, %c0_40] : memref<2x96x64xf32, #tpu.memory_space<vmem>>, vector<1x64x32xf32>
    %103 = vector.shape_cast %102 : vector<1x64x32xf32> to vector<64x32xf32>
    %cst_41 = arith.constant dense<0.000000e+00> : vector<32x64xf32>
    %104 = tpu.matmul %99, %101, %cst_41 {dimension_numbers = #tpu.dot_dimension_numbers<[1], [0], [0], [1], [0, 0, 1, 1], [], []>} : vector<32x32xf32>, vector<32x64xf32>, vector<32x64xf32> -> vector<32x64xf32>
    %c2 = arith.constant 2 : index
    %c0_42 = arith.constant 0 : index
    %105 = vector.load %arg6[%c2, %c0_42] : memref<8x128xf32, #tpu.memory_space<vmem>>, vector<1x64xf32>
    %106 = vector.broadcast %105 : vector<1x64xf32> to vector<32x64xf32>
    %107 = arith.addf %104, %106 : vector<32x64xf32>
    %cst_43 = arith.constant 0.000000e+00 : f32
    %108 = vector.broadcast %cst_43 : f32 to vector<32x64xf32>
    %109 = arith.maximumf %107, %108 : vector<32x64xf32>
    %cst_44 = arith.constant dense<0.000000e+00> : vector<32x32xf32>
    %110 = tpu.matmul %109, %103, %cst_44 {dimension_numbers = #tpu.dot_dimension_numbers<[1], [0], [0], [1], [0, 0, 1, 1], [], []>} : vector<32x64xf32>, vector<64x32xf32>, vector<32x32xf32> -> vector<32x32xf32>
    %c2_45 = arith.constant 2 : index
    %c64_46 = arith.constant 64 : index
    %111 = vector.load %arg6[%c2_45, %c64_46] : memref<8x128xf32, #tpu.memory_space<vmem>>, vector<1x32xf32>
    %112 = vector.broadcast %111 : vector<1x32xf32> to vector<32x32xf32>
    %113 = arith.addf %110, %112 : vector<32x32xf32>
    %114 = arith.addf %99, %113 : vector<32x32xf32>
    %c1_47 = arith.constant 1 : index
    %c64_48 = arith.constant 64 : index
    %115 = vector.load %arg6[%c1_47, %c64_48] : memref<8x128xf32, #tpu.memory_space<vmem>>, vector<1x32xf32>
    %c1_49 = arith.constant 1 : index
    %c96 = arith.constant 96 : index
    %116 = vector.load %arg6[%c1_49, %c96] : memref<8x128xf32, #tpu.memory_space<vmem>>, vector<1x32xf32>
    %cst_50 = arith.constant dense<0.000000e+00> : vector<32xf32>
    %117 = vector.multi_reduction <add>, %114, %cst_50 [1] : vector<32x32xf32> to vector<32xf32>
    %118 = vector.shape_cast %117 : vector<32xf32> to vector<32x1xf32>
    %cst_51 = arith.constant 3.200000e+01 : f32
    %119 = vector.broadcast %cst_51 : f32 to vector<32x1xf32>
    %120 = arith.divf %118, %119 : vector<32x1xf32>
    %121 = vector.broadcast %120 : vector<32x1xf32> to vector<32x32xf32>
    %122 = arith.subf %114, %121 : vector<32x32xf32>
    %123 = arith.mulf %122, %122 : vector<32x32xf32>
    %cst_52 = arith.constant dense<0.000000e+00> : vector<32xf32>
    %124 = vector.multi_reduction <add>, %123, %cst_52 [1] : vector<32x32xf32> to vector<32xf32>
    %125 = vector.shape_cast %124 : vector<32xf32> to vector<32x1xf32>
    %cst_53 = arith.constant 3.200000e+01 : f32
    %126 = vector.broadcast %cst_53 : f32 to vector<32x1xf32>
    %127 = arith.divf %125, %126 : vector<32x1xf32>
    %cst_54 = arith.constant 9.99999974E-6 : f32
    %128 = vector.broadcast %cst_54 : f32 to vector<32x1xf32>
    %129 = arith.addf %127, %128 : vector<32x1xf32>
    %130 = math.rsqrt %129 : vector<32x1xf32>
    %131 = vector.broadcast %130 : vector<32x1xf32> to vector<32x32xf32>
    %132 = arith.mulf %122, %131 : vector<32x32xf32>
    %133 = vector.broadcast %115 : vector<1x32xf32> to vector<32x32xf32>
    %134 = arith.mulf %132, %133 : vector<32x32xf32>
    %135 = vector.broadcast %116 : vector<1x32xf32> to vector<32x32xf32>
    %136 = arith.addf %134, %135 : vector<32x32xf32>
    %c1_55 = arith.constant 1 : index
    %c0_56 = arith.constant 0 : index
    %c0_57 = arith.constant 0 : index
    %137 = vector.load %arg2[%c1_55, %c0_56, %c0_57] : memref<2x32x192xf32, #tpu.memory_space<vmem>>, vector<1x32x192xf32>
    %138 = vector.shape_cast %137 : vector<1x32x192xf32> to vector<32x192xf32>
    %cst_58 = arith.constant dense<0.000000e+00> : vector<32x192xf32>
    %139 = tpu.matmul %136, %138, %cst_58 {dimension_numbers = #tpu.dot_dimension_numbers<[1], [0], [0], [1], [0, 0, 1, 1], [], []>} : vector<32x32xf32>, vector<32x192xf32>, vector<32x192xf32> -> vector<32x192xf32>
    %140 = vector.extract_strided_slice %139 {offsets = [0, 0], sizes = [32, 128], strides = [1, 1]} : vector<32x192xf32> to vector<32x128xf32>
    %141 = vector.extract_strided_slice %139 {offsets = [0, 128], sizes = [32, 32], strides = [1, 1]} : vector<32x192xf32> to vector<32x32xf32>
    %c3 = arith.constant 3 : index
    %c0_59 = arith.constant 0 : index
    %142 = vector.load %arg6[%c3, %c0_59] : memref<8x128xf32, #tpu.memory_space<vmem>>, vector<1x32xf32>
    %143 = vector.broadcast %142 : vector<1x32xf32> to vector<32x32xf32>
    %144 = arith.addf %141, %143 : vector<32x32xf32>
    %145 = vector.extract_strided_slice %139 {offsets = [0, 160], sizes = [32, 32], strides = [1, 1]} : vector<32x192xf32> to vector<32x32xf32>
    %c3_60 = arith.constant 3 : index
    %c32_61 = arith.constant 32 : index
    %146 = vector.load %arg6[%c3_60, %c32_61] : memref<8x128xf32, #tpu.memory_space<vmem>>, vector<1x32xf32>
    %147 = vector.broadcast %146 : vector<1x32xf32> to vector<32x32xf32>
    %148 = arith.addf %145, %147 : vector<32x32xf32>
    %c1_62 = arith.constant 1 : index
    %c0_63 = arith.constant 0 : index
    %c0_64 = arith.constant 0 : index
    %149 = vector.load %arg1[%c1_62, %c0_63, %c0_64] : memref<2x32x128xf32, #tpu.memory_space<vmem>>, vector<1x32x128xf32>
    %150 = vector.shape_cast %149 : vector<1x32x128xf32> to vector<32x128xf32>
    %c3_65 = arith.constant 3 : index
    %c64_66 = arith.constant 64 : index
    %151 = vector.load %arg6[%c3_65, %c64_66] : memref<8x128xf32, #tpu.memory_space<vmem>>, vector<1x32xf32>
    %152 = vector.extract_strided_slice %144 {offsets = [0, 0], sizes = [32, 8], strides = [1, 1]} : vector<32x32xf32> to vector<32x8xf32>
    %153 = vector.extract_strided_slice %148 {offsets = [0, 0], sizes = [32, 8], strides = [1, 1]} : vector<32x32xf32> to vector<32x8xf32>
    %cst_67 = arith.constant dense<0.000000e+00> : vector<32x32xf32>
    %154 = tpu.matmul %152, %153, %cst_67 {dimension_numbers = #tpu.dot_dimension_numbers<[1], [1], [0], [0], [0, 0, 1, 0], [], []>} : vector<32x8xf32>, vector<32x8xf32>, vector<32x32xf32> -> vector<32x32xf32>
    %155 = vector.extract_strided_slice %150 {offsets = [0, 0], sizes = [32, 32], strides = [1, 1]} : vector<32x128xf32> to vector<32x32xf32>
    %156 = arith.addf %154, %155 : vector<32x32xf32>
    %157 = math.exp %156 : vector<32x32xf32>
    %cst_68 = arith.constant dense<0.000000e+00> : vector<32xf32>
    %158 = vector.multi_reduction <add>, %157, %cst_68 [1] : vector<32x32xf32> to vector<32xf32>
    %159 = vector.shape_cast %158 : vector<32xf32> to vector<32x1xf32>
    %cst_69 = arith.constant 1.000000e+00 : f32
    %160 = vector.broadcast %cst_69 : f32 to vector<32x1xf32>
    %161 = arith.divf %160, %159 : vector<32x1xf32>
    %162 = vector.broadcast %161 : vector<32x1xf32> to vector<32x32xf32>
    %163 = arith.mulf %157, %162 : vector<32x32xf32>
    %164 = vector.extract_strided_slice %140 {offsets = [0, 0], sizes = [32, 32], strides = [1, 1]} : vector<32x128xf32> to vector<32x32xf32>
    %cst_70 = arith.constant dense<0.000000e+00> : vector<32x32xf32>
    %165 = tpu.matmul %163, %164, %cst_70 {dimension_numbers = #tpu.dot_dimension_numbers<[1], [0], [0], [1], [0, 0, 1, 1], [], []>} : vector<32x32xf32>, vector<32x32xf32>, vector<32x32xf32> -> vector<32x32xf32>
    %166 = vector.broadcast %151 : vector<1x32xf32> to vector<32x32xf32>
    %167 = arith.addf %166, %165 : vector<32x32xf32>
    %168 = vector.extract_strided_slice %144 {offsets = [0, 8], sizes = [32, 8], strides = [1, 1]} : vector<32x32xf32> to vector<32x8xf32>
    %169 = vector.extract_strided_slice %148 {offsets = [0, 8], sizes = [32, 8], strides = [1, 1]} : vector<32x32xf32> to vector<32x8xf32>
    %cst_71 = arith.constant dense<0.000000e+00> : vector<32x32xf32>
    %170 = tpu.matmul %168, %169, %cst_71 {dimension_numbers = #tpu.dot_dimension_numbers<[1], [1], [0], [0], [0, 0, 1, 0], [], []>} : vector<32x8xf32>, vector<32x8xf32>, vector<32x32xf32> -> vector<32x32xf32>
    %171 = vector.extract_strided_slice %150 {offsets = [0, 32], sizes = [32, 32], strides = [1, 1]} : vector<32x128xf32> to vector<32x32xf32>
    %172 = arith.addf %170, %171 : vector<32x32xf32>
    %173 = math.exp %172 : vector<32x32xf32>
    %cst_72 = arith.constant dense<0.000000e+00> : vector<32xf32>
    %174 = vector.multi_reduction <add>, %173, %cst_72 [1] : vector<32x32xf32> to vector<32xf32>
    %175 = vector.shape_cast %174 : vector<32xf32> to vector<32x1xf32>
    %cst_73 = arith.constant 1.000000e+00 : f32
    %176 = vector.broadcast %cst_73 : f32 to vector<32x1xf32>
    %177 = arith.divf %176, %175 : vector<32x1xf32>
    %178 = vector.broadcast %177 : vector<32x1xf32> to vector<32x32xf32>
    %179 = arith.mulf %173, %178 : vector<32x32xf32>
    %180 = vector.extract_strided_slice %140 {offsets = [0, 32], sizes = [32, 32], strides = [1, 1]} : vector<32x128xf32> to vector<32x32xf32>
    %cst_74 = arith.constant dense<0.000000e+00> : vector<32x32xf32>
    %181 = tpu.matmul %179, %180, %cst_74 {dimension_numbers = #tpu.dot_dimension_numbers<[1], [0], [0], [1], [0, 0, 1, 1], [], []>} : vector<32x32xf32>, vector<32x32xf32>, vector<32x32xf32> -> vector<32x32xf32>
    %182 = arith.addf %167, %181 : vector<32x32xf32>
    %183 = vector.extract_strided_slice %144 {offsets = [0, 16], sizes = [32, 8], strides = [1, 1]} : vector<32x32xf32> to vector<32x8xf32>
    %184 = vector.extract_strided_slice %148 {offsets = [0, 16], sizes = [32, 8], strides = [1, 1]} : vector<32x32xf32> to vector<32x8xf32>
    %cst_75 = arith.constant dense<0.000000e+00> : vector<32x32xf32>
    %185 = tpu.matmul %183, %184, %cst_75 {dimension_numbers = #tpu.dot_dimension_numbers<[1], [1], [0], [0], [0, 0, 1, 0], [], []>} : vector<32x8xf32>, vector<32x8xf32>, vector<32x32xf32> -> vector<32x32xf32>
    %186 = vector.extract_strided_slice %150 {offsets = [0, 64], sizes = [32, 32], strides = [1, 1]} : vector<32x128xf32> to vector<32x32xf32>
    %187 = arith.addf %185, %186 : vector<32x32xf32>
    %188 = math.exp %187 : vector<32x32xf32>
    %cst_76 = arith.constant dense<0.000000e+00> : vector<32xf32>
    %189 = vector.multi_reduction <add>, %188, %cst_76 [1] : vector<32x32xf32> to vector<32xf32>
    %190 = vector.shape_cast %189 : vector<32xf32> to vector<32x1xf32>
    %cst_77 = arith.constant 1.000000e+00 : f32
    %191 = vector.broadcast %cst_77 : f32 to vector<32x1xf32>
    %192 = arith.divf %191, %190 : vector<32x1xf32>
    %193 = vector.broadcast %192 : vector<32x1xf32> to vector<32x32xf32>
    %194 = arith.mulf %188, %193 : vector<32x32xf32>
    %195 = vector.extract_strided_slice %140 {offsets = [0, 64], sizes = [32, 32], strides = [1, 1]} : vector<32x128xf32> to vector<32x32xf32>
    %cst_78 = arith.constant dense<0.000000e+00> : vector<32x32xf32>
    %196 = tpu.matmul %194, %195, %cst_78 {dimension_numbers = #tpu.dot_dimension_numbers<[1], [0], [0], [1], [0, 0, 1, 1], [], []>} : vector<32x32xf32>, vector<32x32xf32>, vector<32x32xf32> -> vector<32x32xf32>
    %197 = arith.addf %182, %196 : vector<32x32xf32>
    %198 = vector.extract_strided_slice %144 {offsets = [0, 24], sizes = [32, 8], strides = [1, 1]} : vector<32x32xf32> to vector<32x8xf32>
    %199 = vector.extract_strided_slice %148 {offsets = [0, 24], sizes = [32, 8], strides = [1, 1]} : vector<32x32xf32> to vector<32x8xf32>
    %cst_79 = arith.constant dense<0.000000e+00> : vector<32x32xf32>
    %200 = tpu.matmul %198, %199, %cst_79 {dimension_numbers = #tpu.dot_dimension_numbers<[1], [1], [0], [0], [0, 0, 1, 0], [], []>} : vector<32x8xf32>, vector<32x8xf32>, vector<32x32xf32> -> vector<32x32xf32>
    %201 = vector.extract_strided_slice %150 {offsets = [0, 96], sizes = [32, 32], strides = [1, 1]} : vector<32x128xf32> to vector<32x32xf32>
    %202 = arith.addf %200, %201 : vector<32x32xf32>
    %203 = math.exp %202 : vector<32x32xf32>
    %cst_80 = arith.constant dense<0.000000e+00> : vector<32xf32>
    %204 = vector.multi_reduction <add>, %203, %cst_80 [1] : vector<32x32xf32> to vector<32xf32>
    %205 = vector.shape_cast %204 : vector<32xf32> to vector<32x1xf32>
    %cst_81 = arith.constant 1.000000e+00 : f32
    %206 = vector.broadcast %cst_81 : f32 to vector<32x1xf32>
    %207 = arith.divf %206, %205 : vector<32x1xf32>
    %208 = vector.broadcast %207 : vector<32x1xf32> to vector<32x32xf32>
    %209 = arith.mulf %203, %208 : vector<32x32xf32>
    %210 = vector.extract_strided_slice %140 {offsets = [0, 96], sizes = [32, 32], strides = [1, 1]} : vector<32x128xf32> to vector<32x32xf32>
    %cst_82 = arith.constant dense<0.000000e+00> : vector<32x32xf32>
    %211 = tpu.matmul %209, %210, %cst_82 {dimension_numbers = #tpu.dot_dimension_numbers<[1], [0], [0], [1], [0, 0, 1, 1], [], []>} : vector<32x32xf32>, vector<32x32xf32>, vector<32x32xf32> -> vector<32x32xf32>
    %212 = arith.addf %197, %211 : vector<32x32xf32>
    %213 = arith.addf %136, %212 : vector<32x32xf32>
    %c4 = arith.constant 4 : index
    %c0_83 = arith.constant 0 : index
    %214 = vector.load %arg6[%c4, %c0_83] : memref<8x128xf32, #tpu.memory_space<vmem>>, vector<1x32xf32>
    %c4_84 = arith.constant 4 : index
    %c32_85 = arith.constant 32 : index
    %215 = vector.load %arg6[%c4_84, %c32_85] : memref<8x128xf32, #tpu.memory_space<vmem>>, vector<1x32xf32>
    %cst_86 = arith.constant dense<0.000000e+00> : vector<32xf32>
    %216 = vector.multi_reduction <add>, %213, %cst_86 [1] : vector<32x32xf32> to vector<32xf32>
    %217 = vector.shape_cast %216 : vector<32xf32> to vector<32x1xf32>
    %cst_87 = arith.constant 3.200000e+01 : f32
    %218 = vector.broadcast %cst_87 : f32 to vector<32x1xf32>
    %219 = arith.divf %217, %218 : vector<32x1xf32>
    %220 = vector.broadcast %219 : vector<32x1xf32> to vector<32x32xf32>
    %221 = arith.subf %213, %220 : vector<32x32xf32>
    %222 = arith.mulf %221, %221 : vector<32x32xf32>
    %cst_88 = arith.constant dense<0.000000e+00> : vector<32xf32>
    %223 = vector.multi_reduction <add>, %222, %cst_88 [1] : vector<32x32xf32> to vector<32xf32>
    %224 = vector.shape_cast %223 : vector<32xf32> to vector<32x1xf32>
    %cst_89 = arith.constant 3.200000e+01 : f32
    %225 = vector.broadcast %cst_89 : f32 to vector<32x1xf32>
    %226 = arith.divf %224, %225 : vector<32x1xf32>
    %cst_90 = arith.constant 9.99999974E-6 : f32
    %227 = vector.broadcast %cst_90 : f32 to vector<32x1xf32>
    %228 = arith.addf %226, %227 : vector<32x1xf32>
    %229 = math.rsqrt %228 : vector<32x1xf32>
    %230 = vector.broadcast %229 : vector<32x1xf32> to vector<32x32xf32>
    %231 = arith.mulf %221, %230 : vector<32x32xf32>
    %232 = vector.broadcast %214 : vector<1x32xf32> to vector<32x32xf32>
    %233 = arith.mulf %231, %232 : vector<32x32xf32>
    %234 = vector.broadcast %215 : vector<1x32xf32> to vector<32x32xf32>
    %235 = arith.addf %233, %234 : vector<32x32xf32>
    %c1_91 = arith.constant 1 : index
    %c0_92 = arith.constant 0 : index
    %c0_93 = arith.constant 0 : index
    %236 = vector.load %arg3[%c1_91, %c0_92, %c0_93] : memref<2x96x64xf32, #tpu.memory_space<vmem>>, vector<1x32x64xf32>
    %237 = vector.shape_cast %236 : vector<1x32x64xf32> to vector<32x64xf32>
    %c1_94 = arith.constant 1 : index
    %c32_95 = arith.constant 32 : index
    %c0_96 = arith.constant 0 : index
    %238 = vector.load %arg3[%c1_94, %c32_95, %c0_96] : memref<2x96x64xf32, #tpu.memory_space<vmem>>, vector<1x64x32xf32>
    %239 = vector.shape_cast %238 : vector<1x64x32xf32> to vector<64x32xf32>
    %cst_97 = arith.constant dense<0.000000e+00> : vector<32x64xf32>
    %240 = tpu.matmul %235, %237, %cst_97 {dimension_numbers = #tpu.dot_dimension_numbers<[1], [0], [0], [1], [0, 0, 1, 1], [], []>} : vector<32x32xf32>, vector<32x64xf32>, vector<32x64xf32> -> vector<32x64xf32>
    %c5 = arith.constant 5 : index
    %c0_98 = arith.constant 0 : index
    %241 = vector.load %arg6[%c5, %c0_98] : memref<8x128xf32, #tpu.memory_space<vmem>>, vector<1x64xf32>
    %242 = vector.broadcast %241 : vector<1x64xf32> to vector<32x64xf32>
    %243 = arith.addf %240, %242 : vector<32x64xf32>
    %cst_99 = arith.constant 0.000000e+00 : f32
    %244 = vector.broadcast %cst_99 : f32 to vector<32x64xf32>
    %245 = arith.maximumf %243, %244 : vector<32x64xf32>
    %cst_100 = arith.constant dense<0.000000e+00> : vector<32x32xf32>
    %246 = tpu.matmul %245, %239, %cst_100 {dimension_numbers = #tpu.dot_dimension_numbers<[1], [0], [0], [1], [0, 0, 1, 1], [], []>} : vector<32x64xf32>, vector<64x32xf32>, vector<32x32xf32> -> vector<32x32xf32>
    %c5_101 = arith.constant 5 : index
    %c64_102 = arith.constant 64 : index
    %247 = vector.load %arg6[%c5_101, %c64_102] : memref<8x128xf32, #tpu.memory_space<vmem>>, vector<1x32xf32>
    %248 = vector.broadcast %247 : vector<1x32xf32> to vector<32x32xf32>
    %249 = arith.addf %246, %248 : vector<32x32xf32>
    %250 = arith.addf %235, %249 : vector<32x32xf32>
    %c4_103 = arith.constant 4 : index
    %c64_104 = arith.constant 64 : index
    %251 = vector.load %arg6[%c4_103, %c64_104] : memref<8x128xf32, #tpu.memory_space<vmem>>, vector<1x32xf32>
    %c4_105 = arith.constant 4 : index
    %c96_106 = arith.constant 96 : index
    %252 = vector.load %arg6[%c4_105, %c96_106] : memref<8x128xf32, #tpu.memory_space<vmem>>, vector<1x32xf32>
    %cst_107 = arith.constant dense<0.000000e+00> : vector<32xf32>
    %253 = vector.multi_reduction <add>, %250, %cst_107 [1] : vector<32x32xf32> to vector<32xf32>
    %254 = vector.shape_cast %253 : vector<32xf32> to vector<32x1xf32>
    %cst_108 = arith.constant 3.200000e+01 : f32
    %255 = vector.broadcast %cst_108 : f32 to vector<32x1xf32>
    %256 = arith.divf %254, %255 : vector<32x1xf32>
    %257 = vector.broadcast %256 : vector<32x1xf32> to vector<32x32xf32>
    %258 = arith.subf %250, %257 : vector<32x32xf32>
    %259 = arith.mulf %258, %258 : vector<32x32xf32>
    %cst_109 = arith.constant dense<0.000000e+00> : vector<32xf32>
    %260 = vector.multi_reduction <add>, %259, %cst_109 [1] : vector<32x32xf32> to vector<32xf32>
    %261 = vector.shape_cast %260 : vector<32xf32> to vector<32x1xf32>
    %cst_110 = arith.constant 3.200000e+01 : f32
    %262 = vector.broadcast %cst_110 : f32 to vector<32x1xf32>
    %263 = arith.divf %261, %262 : vector<32x1xf32>
    %cst_111 = arith.constant 9.99999974E-6 : f32
    %264 = vector.broadcast %cst_111 : f32 to vector<32x1xf32>
    %265 = arith.addf %263, %264 : vector<32x1xf32>
    %266 = math.rsqrt %265 : vector<32x1xf32>
    %267 = vector.broadcast %266 : vector<32x1xf32> to vector<32x32xf32>
    %268 = arith.mulf %258, %267 : vector<32x32xf32>
    %269 = vector.broadcast %251 : vector<1x32xf32> to vector<32x32xf32>
    %270 = arith.mulf %268, %269 : vector<32x32xf32>
    %271 = vector.broadcast %252 : vector<1x32xf32> to vector<32x32xf32>
    %272 = arith.addf %270, %271 : vector<32x32xf32>
    %c0_112 = arith.constant 0 : index
    %c0_113 = arith.constant 0 : index
    %273 = vector.load %arg5[%c0_112, %c0_113] : memref<32x64xf32, #tpu.memory_space<vmem>>, vector<32x32xf32>
    %c0_114 = arith.constant 0 : index
    %c32_115 = arith.constant 32 : index
    %274 = vector.load %arg5[%c0_114, %c32_115] : memref<32x64xf32, #tpu.memory_space<vmem>>, vector<32x32xf32>
    %c0_116 = arith.constant 0 : index
    %c0_117 = arith.constant 0 : index
    %275 = vector.load %arg4[%c0_116, %c0_117] : memref<32x512xf32, #tpu.memory_space<vmem>>, vector<32x96xf32>
    %cst_118 = arith.constant dense<0.000000e+00> : vector<32x96xf32>
    %276 = tpu.matmul %272, %275, %cst_118 {dimension_numbers = #tpu.dot_dimension_numbers<[1], [0], [0], [1], [0, 0, 1, 1], [], []>} : vector<32x32xf32>, vector<32x96xf32>, vector<32x96xf32> -> vector<32x96xf32>
    %277 = vector.extract_strided_slice %276 {offsets = [0, 0], sizes = [32, 32], strides = [1, 1]} : vector<32x96xf32> to vector<32x32xf32>
    %cst_119 = arith.constant dense<0.000000e+00> : vector<32x32xf32>
    %278 = tpu.matmul %273, %277, %cst_119 {dimension_numbers = #tpu.dot_dimension_numbers<[1], [0], [0], [1], [0, 0, 1, 1], [], []>} : vector<32x32xf32>, vector<32x32xf32>, vector<32x32xf32> -> vector<32x32xf32>
    %279 = vector.extract_strided_slice %276 {offsets = [0, 32], sizes = [32, 32], strides = [1, 1]} : vector<32x96xf32> to vector<32x32xf32>
    %280 = arith.addf %278, %279 : vector<32x32xf32>
    %281 = vector.extract_strided_slice %276 {offsets = [0, 64], sizes = [32, 32], strides = [1, 1]} : vector<32x96xf32> to vector<32x32xf32>
    %cst_120 = arith.constant dense<0.000000e+00> : vector<32x32xf32>
    %282 = tpu.matmul %274, %281, %cst_120 {dimension_numbers = #tpu.dot_dimension_numbers<[1], [0], [0], [1], [0, 0, 1, 1], [], []>} : vector<32x32xf32>, vector<32x32xf32>, vector<32x32xf32> -> vector<32x32xf32>
    %283 = arith.addf %280, %282 : vector<32x32xf32>
    %c6 = arith.constant 6 : index
    %c0_121 = arith.constant 0 : index
    %284 = vector.load %arg6[%c6, %c0_121] : memref<8x128xf32, #tpu.memory_space<vmem>>, vector<1x32xf32>
    %285 = vector.broadcast %284 : vector<1x32xf32> to vector<32x32xf32>
    %286 = arith.addf %283, %285 : vector<32x32xf32>
    %cst_122 = arith.constant 0.000000e+00 : f32
    %287 = vector.broadcast %cst_122 : f32 to vector<32x32xf32>
    %288 = arith.maximumf %286, %287 : vector<32x32xf32>
    %c0_123 = arith.constant 0 : index
    %c128 = arith.constant 128 : index
    %289 = vector.load %arg4[%c0_123, %c128] : memref<32x512xf32, #tpu.memory_space<vmem>>, vector<32x384xf32>
    %cst_124 = arith.constant dense<0.000000e+00> : vector<32x384xf32>
    %290 = tpu.matmul %288, %289, %cst_124 {dimension_numbers = #tpu.dot_dimension_numbers<[1], [0], [0], [1], [0, 0, 1, 1], [], []>} : vector<32x32xf32>, vector<32x384xf32>, vector<32x384xf32> -> vector<32x384xf32>
    %291 = vector.extract_strided_slice %290 {offsets = [0, 0], sizes = [32, 128], strides = [1, 1]} : vector<32x384xf32> to vector<32x128xf32>
    %cst_125 = arith.constant dense<0.000000e+00> : vector<32x128xf32>
    %292 = tpu.matmul %273, %291, %cst_125 {dimension_numbers = #tpu.dot_dimension_numbers<[1], [0], [0], [1], [0, 0, 1, 1], [], []>} : vector<32x32xf32>, vector<32x128xf32>, vector<32x128xf32> -> vector<32x128xf32>
    %293 = vector.extract_strided_slice %290 {offsets = [0, 128], sizes = [32, 128], strides = [1, 1]} : vector<32x384xf32> to vector<32x128xf32>
    %294 = arith.addf %292, %293 : vector<32x128xf32>
    %295 = vector.extract_strided_slice %290 {offsets = [0, 256], sizes = [32, 128], strides = [1, 1]} : vector<32x384xf32> to vector<32x128xf32>
    %cst_126 = arith.constant dense<0.000000e+00> : vector<32x128xf32>
    %296 = tpu.matmul %274, %295, %cst_126 {dimension_numbers = #tpu.dot_dimension_numbers<[1], [0], [0], [1], [0, 0, 1, 1], [], []>} : vector<32x32xf32>, vector<32x128xf32>, vector<32x128xf32> -> vector<32x128xf32>
    %297 = arith.addf %294, %296 : vector<32x128xf32>
    %c7 = arith.constant 7 : index
    %c0_127 = arith.constant 0 : index
    %298 = vector.load %arg6[%c7, %c0_127] : memref<8x128xf32, #tpu.memory_space<vmem>>, vector<1x128xf32>
    %299 = vector.broadcast %298 : vector<1x128xf32> to vector<32x128xf32>
    %300 = arith.addf %297, %299 : vector<32x128xf32>
    %c0_128 = arith.constant 0 : index
    %c0_129 = arith.constant 0 : index
    %301 = vector.load %arg7[%c0_128, %c0_129] : memref<32x128xf32, #tpu.memory_space<vmem>>, vector<32x128xf32>
    tpu.vector_store %arg7[%c0_128, %c0_129], %300 {strides = array<i32>} : memref<32x128xf32, #tpu.memory_space<vmem>>, vector<32x128xf32>,
    return
  }
}

</mosaic_0001>

<llo_original>
// kernel: tr_egnn_forward.1
$region0: #{tr_egnn_forward.1}
  #allocation0 [shape = 'u32[]', space=smem, size = 0x4, offset = 0x4, fixed_abs, tag = 'smem constant byte address 0x4 - core index']
  #allocation1 [shape = 'u32[144,128]{1,0:T(1,128)}', space=vmem, size = 0x12000, scoped, tag = 'internal scratch']
  %s0 = inlined_call_operand.vmem [shape: f32[32,32], index: 0, kind: input, shape index: {}]
  %s1 = inlined_call_operand.vmem [shape: f32[2,32,128], index: 1, kind: input, shape index: {}]
  %s2 = inlined_call_operand.vmem [shape: f32[2,32,192], index: 2, kind: input, shape index: {}]
  %s3 = inlined_call_operand.vmem [shape: f32[2,96,64], index: 3, kind: input, shape index: {}]
  %s4 = inlined_call_operand.vmem [shape: f32[32,512], index: 4, kind: input, shape index: {}]
  %s5 = inlined_call_operand.vmem [shape: f32[32,64], index: 5, kind: input, shape index: {}]
  %s6 = inlined_call_operand.vmem [shape: f32[8,128], index: 6, kind: input, shape index: {}]
  %s7 = inlined_call_operand.vmem [shape: f32[32,128], index: 7, kind: output, shape index: {}]
  %s8 = sld [smem:[#allocation0]]
  $region38: #{tr_egnn_forward.1} parent=0
    _
  %s10 = ssub.s32 1, %s8
  %s11 = scalar_select 0, %s10, %s8
  // Predicated region
  $region2: #{tr_egnn_forward.1} parent=0 // pred_check
    _
  $region3: #{tr_egnn_forward.1} parent=0 // pred_check_branch
    %13 = sbr.rel (0) target = $region5
  $region4: #{tr_egnn_forward.1} parent=0 // pred_region
    _
  $region5: #{tr_egnn_forward.1} parent=0 // pred_fallthru
    _
  // Predicated region
  $region6: #{tr_egnn_forward.1} parent=0 // pred_check
    _
  $region7: #{tr_egnn_forward.1} parent=0 // pred_check_branch
    %15 = sbr.rel (0) target = $region9
  $region8: #{tr_egnn_forward.1} parent=0 // pred_region
    _
  $region9: #{tr_egnn_forward.1} parent=0 // pred_fallthru
    _
  // Predicated region
  $region10: #{tr_egnn_forward.1} parent=0 // pred_check
    _
  $region11: #{tr_egnn_forward.1} parent=0 // pred_check_branch
    %17 = sbr.rel (0) target = $region13
  $region12: #{tr_egnn_forward.1} parent=0 // pred_region
    _
  $region13: #{tr_egnn_forward.1} parent=0 // pred_fallthru
    _
  // Predicated region
  $region14: #{tr_egnn_forward.1} parent=0 // pred_check
    _
  $region15: #{tr_egnn_forward.1} parent=0 // pred_check_branch
    %19 = sbr.rel (0) target = $region17
  $region16: #{tr_egnn_forward.1} parent=0 // pred_region
    _
  $region17: #{tr_egnn_forward.1} parent=0 // pred_fallthru
    _
  // Predicated region
  $region18: #{tr_egnn_forward.1} parent=0 // pred_check
    _
  $region19: #{tr_egnn_forward.1} parent=0 // pred_check_branch
    %21 = sbr.rel (0) target = $region21
  $region20: #{tr_egnn_forward.1} parent=0 // pred_region
    _
  $region21: #{tr_egnn_forward.1} parent=0 // pred_fallthru
    _
  // Predicated region
  $region22: #{tr_egnn_forward.1} parent=0 // pred_check
    _
  $region23: #{tr_egnn_forward.1} parent=0 // pred_check_branch
    %23 = sbr.rel (0) target = $region25
  $region24: #{tr_egnn_forward.1} parent=0 // pred_region
    _
  $region25: #{tr_egnn_forward.1} parent=0 // pred_fallthru
    _
  // Predicated region
  $region26: #{tr_egnn_forward.1} parent=0 // pred_check
    _
  $region27: #{tr_egnn_forward.1} parent=0 // pred_check_branch
    %25 = sbr.rel (0) target = $region29
  $region28: #{tr_egnn_forward.1} parent=0 // pred_region
    _
  $region29: #{tr_egnn_forward.1} parent=0 // pred_fallthru
    _
  %v26 = vld [vmem:[%s0] sm:$0xff]
  %v27 = vld [vmem:[%s0 + $0x8] sm:$0xff]
  %v28 = vld [vmem:[%s0 + $0x10] sm:$0xff]
  %v29 = vld [vmem:[%s0 + $0x18] sm:$0xff]
  %v30 = vld [vmem:[%s2] sm:$0xff]
  %v31 = vld [vmem:[%s2 + $0x8] sm:$0xff]
  %v32 = vld [vmem:[%s2 + $0x10] sm:$0xff]
  %v33 = vld [vmem:[%s2 + $0x18] sm:$0xff]
  %v34 = vld [vmem:[%s2 + $0x20] sm:$0xff]
  %v35 = vld [vmem:[%s2 + $0x28] sm:$0xff]
  %v36 = vld [vmem:[%s2 + $0x30] sm:$0xff]
  %v37 = vld [vmem:[%s2 + $0x38] sm:$0xff]
  %vm38 = vcmask 261120
  %v40 = vsel %vm38, %v26, 0
  %v43 = vsel %vm38, %v27, 0
  %v46 = vsel %vm38, %v28, 0
  %v49 = vsel %vm38, %v29, 0
  %51 = vmatprep.subr.mxu0 0.0
  %52 = vmatpush1.msra.mxu0 0.0
  %53 = vmatprep.subr.mxu0 0.0
  %54 = vmatpush1.msra.mxu0 0.0
  %55 = vmatprep.subr.mxu0 0.0
  %56 = vmatpush1.msra.mxu0 0.0
  %57 = vmatprep.subr.mxu0 0.0
  %58 = vmatpush1.msra.mxu0 0.0
  %59 = vmatprep.subr.mxu0 0.0
  %60 = vmatpush1.msra.mxu0 0.0
  %61 = vmatprep.subr.mxu0 0.0
  %62 = vmatpush1.msra.mxu0 0.0
  %63 = vmatprep.subr.mxu0 0.0
  %64 = vmatpush1.msra.mxu0 0.0
  %65 = vmatprep.subr.mxu0 0.0
  %66 = vmatpush1.msra.mxu0 0.0
  %67 = vmatprep.subr.mxu0 0.0
  %68 = vmatpush1.msra.mxu0 0.0
  %69 = vmatprep.subr.mxu0 0.0
  %70 = vmatpush1.msra.mxu0 0.0
  %71 = vmatprep.subr.mxu0 0.0
  %72 = vmatpush1.msra.mxu0 0.0
  %73 = vmatprep.subr.mxu0 0.0
  %74 = vmatpush1.msra.mxu0 0.0
  %75 = vmatprep.subr.mxu0 %v37
  %76 = vmatpush1.msra.mxu0 %v36
  %77 = vmatprep.subr.mxu0 %v35
  %78 = vmatpush1.msra.mxu0 %v34
  %79 = vmatprep.subr.mxu0 %v33
  %80 = vmatpush1.msra.mxu0 %v32
  %81 = vmatprep.subr.mxu0 %v31
  %82 = vmatpush1.msra.mxu0 %v30
  %83 = vmatprep.subr.mxu0 0.0
  %84 = vmatpush2.msra.mxu0 0.0
  %85 = vmatprep.subr.mxu0 0.0
  %86 = vmatpush2.msra.mxu0 0.0
  %87 = vmatprep.subr.mxu0 0.0
  %88 = vmatpush2.msra.mxu0 0.0
  %89 = vmatprep.subr.mxu0 0.0
  %90 = vmatpush2.msra.mxu0 0.0
  %91 = vmatprep.subr.mxu0 0.0
  %92 = vmatpush2.msra.mxu0 0.0
  %93 = vmatprep.subr.mxu0 0.0
  %94 = vmatpush2.msra.mxu0 0.0
  %95 = vmatprep.subr.mxu0 0.0
  %96 = vmatpush2.msra.mxu0 0.0
  %97 = vmatprep.subr.mxu0 0.0
  %98 = vmatpush2.msra.mxu0 0.0
  %99 = vmatprep.subr.mxu0 0.0
  %100 = vmatpush2.msra.mxu0 0.0
  %101 = vmatprep.subr.mxu0 0.0
  %102 = vmatpush2.msra.mxu0 0.0
  %103 = vmatprep.subr.mxu0 0.0
  %104 = vmatpush2.msra.mxu0 0.0
  %105 = vmatprep.subr.mxu0 0.0
  %106 = vmatpush2.msra.mxu0 0.0
  %107 = vmatprep.subr.mxu0 0.0
  %108 = vmatpush2.msra.mxu0 0.0
  %109 = vmatprep.subr.mxu0 0.0
  %110 = vmatpush2.msra.mxu0 0.0
  %111 = vmatprep.subr.mxu0 0.0
  %112 = vmatpush2.msra.mxu0 0.0
  %113 = vmatprep.subr.mxu0 0.0
  %114 = vmatpush2.msra.mxu0 0.0
  %115 = vmatprep.mubr.f32.mxu0 0.0
  %116 = vmatmul.mubr.f32.gmra.mxu0 %v40
  %v117 = vpop.f32.mrf.mxu0
  %v118 = vadd.f32 0.0, %v117
  %v119 = vpop.f32.mrf.mxu0
  %v120 = vadd.f32 0.0, %v119
  %121 = vmatprep.mubr.f32.mxu0 0.0
  %122 = vmatmul.mubr.f32.gmra.mxu0 %v43
  %v123 = vpop.f32.mrf.mxu0
  %v124 = vadd.f32 0.0, %v123
  %v125 = vpop.f32.mrf.mxu0
  %v126 = vadd.f32 0.0, %v125
  %127 = vmatprep.mubr.f32.mxu0 0.0
  %128 = vmatmul.mubr.f32.gmra.mxu0 %v46
  %v129 = vpop.f32.mrf.mxu0
  %v130 = vadd.f32 0.0, %v129
  %v131 = vpop.f32.mrf.mxu0
  %v132 = vadd.f32 0.0, %v131
  %133 = vmatprep.mubr.f32.mxu0 0.0
  %134 = vmatmul.mubr.f32.gmra.mxu0 %v49
  %v135 = vpop.f32.mrf.mxu0
  %v136 = vadd.f32 0.0, %v135
  %v137 = vpop.f32.mrf.mxu0
  %v138 = vadd.f32 0.0, %v137
  %139 = vdwg.mxu0
  %v140 = vld [vmem:[%s6] sm:$0x1]
  %v141 = vlaneseq
  %v142 = vshrl.u32 %v141, 7
  %v143 = vsub.s32 0, %v142
  %v144 = vrot.slane %v140, %v143
  %v145 = vadd.f32 %v120, %v144
  %v146 = vadd.f32 %v126, %v144
  %v147 = vadd.f32 %v132, %v144
  %v148 = vadd.f32 %v138, %v144
  %v149 = vld [vmem:[%s1] sm:$0xff]
  %v150 = vld [vmem:[%s1 + $0x8] sm:$0xff]
  %v151 = vld [vmem:[%s1 + $0x10] sm:$0xff]
  %v152 = vld [vmem:[%s1 + $0x18] sm:$0xff]
  %157 = vrot.lane.b32.xlu0 %v145, 96
  %v158 = vpop.permute.xlu0 %157
  %159 = vrot.lane.b32.xlu0 %v146, 96
  %v160 = vpop.permute.xlu0 %159
  %161 = vrot.lane.b32.xlu0 %v147, 96
  %v162 = vpop.permute.xlu0 %161
  %163 = vrot.lane.b32.xlu0 %v148, 96
  %v164 = vpop.permute.xlu0 %163
  %vm165 = vcmask 64512
  %v166 = vsel %vm165, %v145, 0
  %v168 = vsel %vm165, %v146, 0
  %v170 = vsel %vm165, %v147, 0
  %v172 = vsel %vm165, %v148, 0
  %v174 = vsel %vm165, %v158, 0
  %v176 = vsel %vm165, %v160, 0
  %v178 = vsel %vm165, %v162, 0
  %v180 = vsel %vm165, %v164, 0
  %182 = vmatprep.subr.mxu0 0.0
  %183 = vmatpush1.xpose.msra.mxu0 0.0
  %184 = vmatprep.subr.mxu0 0.0
  %185 = vmatpush1.xpose.msra.mxu0 0.0
  %186 = vmatprep.subr.mxu0 0.0
  %187 = vmatpush1.xpose.msra.mxu0 0.0
  %188 = vmatprep.subr.mxu0 0.0
  %189 = vmatpush1.xpose.msra.mxu0 0.0
  %190 = vmatprep.subr.mxu0 0.0
  %191 = vmatpush1.xpose.msra.mxu0 0.0
  %192 = vmatprep.subr.mxu0 0.0
  %193 = vmatpush1.xpose.msra.mxu0 0.0
  %194 = vmatprep.subr.mxu0 0.0
  %195 = vmatpush1.xpose.msra.mxu0 0.0
  %196 = vmatprep.subr.mxu0 0.0
  %197 = vmatpush1.xpose.msra.mxu0 0.0
  %198 = vmatprep.subr.mxu0 0.0
  %199 = vmatpush1.xpose.msra.mxu0 0.0
  %200 = vmatprep.subr.mxu0 0.0
  %201 = vmatpush1.xpose.msra.mxu0 0.0
  %202 = vmatprep.subr.mxu0 0.0
  %203 = vmatpush1.xpose.msra.mxu0 0.0
  %204 = vmatprep.subr.mxu0 0.0
  %205 = vmatpush1.xpose.msra.mxu0 0.0
  %206 = vmatprep.subr.mxu0 0.0
  %207 = vmatpush1.xpose.msra.mxu0 %v180
  %208 = vmatprep.subr.mxu0 0.0
  %209 = vmatpush1.xpose.msra.mxu0 %v178
  %210 = vmatprep.subr.mxu0 0.0
  %211 = vmatpush1.xpose.msra.mxu0 %v176
  %212 = vmatprep.subr.mxu0 0.0
  %213 = vmatpush1.xpose.msra.mxu0 %v174
  %214 = vmatprep.subr.mxu0 0.0
  %215 = vmatpush2.xpose.msra.mxu0 0.0
  %216 = vmatprep.subr.mxu0 0.0
  %217 = vmatpush2.xpose.msra.mxu0 0.0
  %218 = vmatprep.subr.mxu0 0.0
  %219 = vmatpush2.xpose.msra.mxu0 0.0
  %220 = vmatprep.subr.mxu0 0.0
  %221 = vmatpush2.xpose.msra.mxu0 0.0
  %222 = vmatprep.subr.mxu0 0.0
  %223 = vmatpush2.xpose.msra.mxu0 0.0
  %224 = vmatprep.subr.mxu0 0.0
  %225 = vmatpush2.xpose.msra.mxu0 0.0
  %226 = vmatprep.subr.mxu0 0.0
  %227 = vmatpush2.xpose.msra.mxu0 0.0
  %228 = vmatprep.subr.mxu0 0.0
  %229 = vmatpush2.xpose.msra.mxu0 0.0
  %230 = vmatprep.subr.mxu0 0.0
  %231 = vmatpush2.xpose.msra.mxu0 0.0
  %232 = vmatprep.subr.mxu0 0.0
  %233 = vmatpush2.xpose.msra.mxu0 0.0
  %234 = vmatprep.subr.mxu0 0.0
  %235 = vmatpush2.xpose.msra.mxu0 0.0
  %236 = vmatprep.subr.mxu0 0.0
  %237 = vmatpush2.xpose.msra.mxu0 0.0
  %238 = vmatprep.subr.mxu0 0.0
  %239 = vmatpush2.xpose.msra.mxu0 0.0
  %240 = vmatprep.subr.mxu0 0.0
  %241 = vmatpush2.xpose.msra.mxu0 0.0
  %242 = vmatprep.subr.mxu0 0.0
  %243 = vmatpush2.xpose.msra.mxu0 0.0
  %244 = vmatprep.subr.mxu0 0.0
  %245 = vmatpush2.xpose.msra.mxu0 0.0
  %246 = vmatprep.mubr.f32.mxu0 0.0
  %247 = vmatmul.mubr.f32.gmra.mxu0 %v166
  %v248 = vpop.f32.mrf.mxu0
  %v249 = vadd.f32 %v149, %v248
  %v250 = vpop.f32.mrf.mxu0
  %251 = vmatprep.mubr.f32.mxu0 0.0
  %252 = vmatmul.mubr.f32.gmra.mxu0 %v168
  %v253 = vpop.f32.mrf.mxu0
  %v254 = vadd.f32 %v150, %v253
  %v255 = vpop.f32.mrf.mxu0
  %256 = vmatprep.mubr.f32.mxu0 0.0
  %257 = vmatmul.mubr.f32.gmra.mxu0 %v170
  %v258 = vpop.f32.mrf.mxu0
  %v259 = vadd.f32 %v151, %v258
  %v260 = vpop.f32.mrf.mxu0
  %261 = vmatprep.mubr.f32.mxu0 0.0
  %262 = vmatmul.mubr.f32.gmra.mxu0 %v172
  %v263 = vpop.f32.mrf.mxu0
  %v264 = vadd.f32 %v152, %v263
  %v265 = vpop.f32.mrf.mxu0
  %266 = vdwg.mxu0
  %v267 = vmul.f32 %v249, 1.442695
  %v268 = vpow.pop %v267
  %v269 = vmul.f32 %v254, 1.442695
  %v270 = vpow.pop %v269
  %v271 = vmul.f32 %v259, 1.442695
  %v272 = vpow.pop %v271
  %v273 = vmul.f32 %v264, 1.442695
  %v274 = vpow.pop %v273
  %v275 = vsel %vm38, %v268, 0.0
  %276 = vadd.xlane.f32.xlu0 %v275
  %v277 = vpop.xlane.xlu0 %276
  %v278 = vsel %vm38, %v270, 0.0
  %279 = vadd.xlane.f32.xlu0 %v278
  %v280 = vpop.xlane.xlu0 %279
  %v281 = vsel %vm38, %v272, 0.0
  %282 = vadd.xlane.f32.xlu0 %v281
  %v283 = vpop.xlane.xlu0 %282
  %v284 = vsel %vm38, %v274, 0.0
  %285 = vadd.xlane.f32.xlu0 %v284
  %v286 = vpop.xlane.xlu0 %285
  %v287 = vrcp.pop %v277
  %v288 = vmul.f32 1.0, %v287
  %v289 = vrcp.pop %v280
  %v290 = vmul.f32 1.0, %v289
  %v291 = vrcp.pop %v283
  %v292 = vmul.f32 1.0, %v291
  %v293 = vrcp.pop %v286
  %v294 = vmul.f32 1.0, %v293
  %v295 = vmul.f32 %v268, %v288
  %v296 = vmul.f32 %v270, %v290
  %v297 = vmul.f32 %v272, %v292
  %v298 = vmul.f32 %v274, %v294
  %v300 = vsel %vm38, %v295, 0
  %v303 = vsel %vm38, %v296, 0
  %v306 = vsel %vm38, %v297, 0
  %v309 = vsel %vm38, %v298, 0
  %311 = vmatprep.subr.mxu0 0.0
  %312 = vmatpush1.msra.mxu0 0.0
  %313 = vmatprep.subr.mxu0 0.0
  %314 = vmatpush1.msra.mxu0 0.0
  %315 = vmatprep.subr.mxu0 0.0
  %316 = vmatpush1.msra.mxu0 0.0
  %317 = vmatprep.subr.mxu0 0.0
  %318 = vmatpush1.msra.mxu0 0.0
  %319 = vmatprep.subr.mxu0 0.0
  %320 = vmatpush1.msra.mxu0 0.0
  %321 = vmatprep.subr.mxu0 0.0
  %322 = vmatpush1.msra.mxu0 0.0
  %323 = vmatprep.subr.mxu0 0.0
  %324 = vmatpush1.msra.mxu0 0.0
  %325 = vmatprep.subr.mxu0 0.0
  %326 = vmatpush1.msra.mxu0 0.0
  %327 = vmatprep.subr.mxu0 0.0
  %328 = vmatpush1.msra.mxu0 0.0
  %329 = vmatprep.subr.mxu0 0.0
  %330 = vmatpush1.msra.mxu0 0.0
  %331 = vmatprep.subr.mxu0 0.0
  %332 = vmatpush1.msra.mxu0 0.0
  %333 = vmatprep.subr.mxu0 0.0
  %334 = vmatpush1.msra.mxu0 0.0
  %335 = vmatprep.subr.mxu0 0.0
  %336 = vmatpush1.msra.mxu0 %v136
  %337 = vmatprep.subr.mxu0 0.0
  %338 = vmatpush1.msra.mxu0 %v130
  %339 = vmatprep.subr.mxu0 0.0
  %340 = vmatpush1.msra.mxu0 %v124
  %341 = vmatprep.subr.mxu0 0.0
  %342 = vmatpush1.msra.mxu0 %v118
  %343 = vmatprep.subr.mxu0 0.0
  %344 = vmatpush2.msra.mxu0 0.0
  %345 = vmatprep.subr.mxu0 0.0
  %346 = vmatpush2.msra.mxu0 0.0
  %347 = vmatprep.subr.mxu0 0.0
  %348 = vmatpush2.msra.mxu0 0.0
  %349 = vmatprep.subr.mxu0 0.0
  %350 = vmatpush2.msra.mxu0 0.0
  %351 = vmatprep.subr.mxu0 0.0
  %352 = vmatpush2.msra.mxu0 0.0
  %353 = vmatprep.subr.mxu0 0.0
  %354 = vmatpush2.msra.mxu0 0.0
  %355 = vmatprep.subr.mxu0 0.0
  %356 = vmatpush2.msra.mxu0 0.0
  %357 = vmatprep.subr.mxu0 0.0
  %358 = vmatpush2.msra.mxu0 0.0
  %359 = vmatprep.subr.mxu0 0.0
  %360 = vmatpush2.msra.mxu0 0.0
  %361 = vmatprep.subr.mxu0 0.0
  %362 = vmatpush2.msra.mxu0 0.0
  %363 = vmatprep.subr.mxu0 0.0
  %364 = vmatpush2.msra.mxu0 0.0
  %365 = vmatprep.subr.mxu0 0.0
  %366 = vmatpush2.msra.mxu0 0.0
  %367 = vmatprep.subr.mxu0 0.0
  %368 = vmatpush2.msra.mxu0 0.0
  %369 = vmatprep.subr.mxu0 0.0
  %370 = vmatpush2.msra.mxu0 0.0
  %371 = vmatprep.subr.mxu0 0.0
  %372 = vmatpush2.msra.mxu0 0.0
  %373 = vmatprep.subr.mxu0 0.0
  %374 = vmatpush2.msra.mxu0 0.0
  %375 = vmatprep.mubr.f32.mxu0 0.0
  %376 = vmatmul.mubr.f32.gmra.mxu0 %v300
  %v377 = vpop.f32.mrf.mxu0
  %v378 = vadd.f32 0.0, %v377
  %v379 = vpop.f32.mrf.mxu0
  %380 = vmatprep.mubr.f32.mxu0 0.0
  %381 = vmatmul.mubr.f32.gmra.mxu0 %v303
  %v382 = vpop.f32.mrf.mxu0
  %v383 = vadd.f32 0.0, %v382
  %v384 = vpop.f32.mrf.mxu0
  %385 = vmatprep.mubr.f32.mxu0 0.0
  %386 = vmatmul.mubr.f32.gmra.mxu0 %v306
  %v387 = vpop.f32.mrf.mxu0
  %v388 = vadd.f32 0.0, %v387
  %v389 = vpop.f32.mrf.mxu0
  %390 = vmatprep.mubr.f32.mxu0 0.0
  %391 = vmatmul.mubr.f32.gmra.mxu0 %v309
  %v392 = vpop.f32.mrf.mxu0
  %v393 = vadd.f32 0.0, %v392
  %v394 = vpop.f32.mrf.mxu0
  %395 = vdwg.mxu0
  %400 = vrot.lane.b32.xlu0 %v378, 64
  %v401 = vpop.permute.xlu0 %400
  %402 = vrot.lane.b32.xlu0 %v383, 64
  %v403 = vpop.permute.xlu0 %402
  %404 = vrot.lane.b32.xlu0 %v388, 64
  %v405 = vpop.permute.xlu0 %404
  %406 = vrot.lane.b32.xlu0 %v393, 64
  %v407 = vpop.permute.xlu0 %406
  %v412 = vadd.f32 %v144, %v401
  %v413 = vadd.f32 %v144, %v403
  %v414 = vadd.f32 %v144, %v405
  %v415 = vadd.f32 %v144, %v407
  %416 = vrot.lane.b32.xlu0 %v145, 120
  %v417 = vpop.permute.xlu0 %416
  %418 = vrot.lane.b32.xlu0 %v146, 120
  %v419 = vpop.permute.xlu0 %418
  %420 = vrot.lane.b32.xlu0 %v147, 120
  %v421 = vpop.permute.xlu0 %420
  %422 = vrot.lane.b32.xlu0 %v148, 120
  %v423 = vpop.permute.xlu0 %422
  %424 = vrot.lane.b32.xlu0 %v145, 88
  %v425 = vpop.permute.xlu0 %424
  %426 = vrot.lane.b32.xlu0 %v146, 88
  %v427 = vpop.permute.xlu0 %426
  %428 = vrot.lane.b32.xlu0 %v147, 88
  %v429 = vpop.permute.xlu0 %428
  %430 = vrot.lane.b32.xlu0 %v148, 88
  %v431 = vpop.permute.xlu0 %430
  %436 = vrot.lane.b32.xlu0 %v149, 96
  %v437 = vpop.permute.xlu0 %436
  %438 = vrot.lane.b32.xlu0 %v150, 96
  %v439 = vpop.permute.xlu0 %438
  %440 = vrot.lane.b32.xlu0 %v151, 96
  %v441 = vpop.permute.xlu0 %440
  %442 = vrot.lane.b32.xlu0 %v152, 96
  %v443 = vpop.permute.xlu0 %442
  %v448 = vsel %vm165, %v417, 0
  %v450 = vsel %vm165, %v419, 0
  %v452 = vsel %vm165, %v421, 0
  %v454 = vsel %vm165, %v423, 0
  %v456 = vsel %vm165, %v425, 0
  %v458 = vsel %vm165, %v427, 0
  %v460 = vsel %vm165, %v429, 0
  %v462 = vsel %vm165, %v431, 0
  %464 = vmatprep.subr.mxu0 0.0
  %465 = vmatpush1.xpose.msra.mxu0 0.0
  %466 = vmatprep.subr.mxu0 0.0
  %467 = vmatpush1.xpose.msra.mxu0 0.0
  %468 = vmatprep.subr.mxu0 0.0
  %469 = vmatpush1.xpose.msra.mxu0 0.0
  %470 = vmatprep.subr.mxu0 0.0
  %471 = vmatpush1.xpose.msra.mxu0 0.0
  %472 = vmatprep.subr.mxu0 0.0
  %473 = vmatpush1.xpose.msra.mxu0 0.0
  %474 = vmatprep.subr.mxu0 0.0
  %475 = vmatpush1.xpose.msra.mxu0 0.0
  %476 = vmatprep.subr.mxu0 0.0
  %477 = vmatpush1.xpose.msra.mxu0 0.0
  %478 = vmatprep.subr.mxu0 0.0
  %479 = vmatpush1.xpose.msra.mxu0 0.0
  %480 = vmatprep.subr.mxu0 0.0
  %481 = vmatpush1.xpose.msra.mxu0 0.0
  %482 = vmatprep.subr.mxu0 0.0
  %483 = vmatpush1.xpose.msra.mxu0 0.0
  %484 = vmatprep.subr.mxu0 0.0
  %485 = vmatpush1.xpose.msra.mxu0 0.0
  %486 = vmatprep.subr.mxu0 0.0
  %487 = vmatpush1.xpose.msra.mxu0 0.0
  %488 = vmatprep.subr.mxu0 0.0
  %489 = vmatpush1.xpose.msra.mxu0 %v462
  %490 = vmatprep.subr.mxu0 0.0
  %491 = vmatpush1.xpose.msra.mxu0 %v460
  %492 = vmatprep.subr.mxu0 0.0
  %493 = vmatpush1.xpose.msra.mxu0 %v458
  %494 = vmatprep.subr.mxu0 0.0
  %495 = vmatpush1.xpose.msra.mxu0 %v456
  %496 = vmatprep.subr.mxu0 0.0
  %497 = vmatpush2.xpose.msra.mxu0 0.0
  %498 = vmatprep.subr.mxu0 0.0
  %499 = vmatpush2.xpose.msra.mxu0 0.0
  %500 = vmatprep.subr.mxu0 0.0
  %501 = vmatpush2.xpose.msra.mxu0 0.0
  %502 = vmatprep.subr.mxu0 0.0
  %503 = vmatpush2.xpose.msra.mxu0 0.0
  %504 = vmatprep.subr.mxu0 0.0
  %505 = vmatpush2.xpose.msra.mxu0 0.0
  %506 = vmatprep.subr.mxu0 0.0
  %507 = vmatpush2.xpose.msra.mxu0 0.0
  %508 = vmatprep.subr.mxu0 0.0
  %509 = vmatpush2.xpose.msra.mxu0 0.0
  %510 = vmatprep.subr.mxu0 0.0
  %511 = vmatpush2.xpose.msra.mxu0 0.0
  %512 = vmatprep.subr.mxu0 0.0
  %513 = vmatpush2.xpose.msra.mxu0 0.0
  %514 = vmatprep.subr.mxu0 0.0
  %515 = vmatpush2.xpose.msra.mxu0 0.0
  %516 = vmatprep.subr.mxu0 0.0
  %517 = vmatpush2.xpose.msra.mxu0 0.0
  %518 = vmatprep.subr.mxu0 0.0
  %519 = vmatpush2.xpose.msra.mxu0 0.0
  %520 = vmatprep.subr.mxu0 0.0
  %521 = vmatpush2.xpose.msra.mxu0 0.0
  %522 = vmatprep.subr.mxu0 0.0
  %523 = vmatpush2.xpose.msra.mxu0 0.0
  %524 = vmatprep.subr.mxu0 0.0
  %525 = vmatpush2.xpose.msra.mxu0 0.0
  %526 = vmatprep.subr.mxu0 0.0
  %527 = vmatpush2.xpose.msra.mxu0 0.0
  %528 = vmatprep.mubr.f32.mxu0 0.0
  %529 = vmatmul.mubr.f32.gmra.mxu0 %v448
  %v530 = vpop.f32.mrf.mxu0
  %v531 = vadd.f32 %v437, %v530
  %v532 = vpop.f32.mrf.mxu0
  %533 = vmatprep.mubr.f32.mxu0 0.0
  %534 = vmatmul.mubr.f32.gmra.mxu0 %v450
  %v535 = vpop.f32.mrf.mxu0
  %v536 = vadd.f32 %v439, %v535
  %v537 = vpop.f32.mrf.mxu0
  %538 = vmatprep.mubr.f32.mxu0 0.0
  %539 = vmatmul.mubr.f32.gmra.mxu0 %v452
  %v540 = vpop.f32.mrf.mxu0
  %v541 = vadd.f32 %v441, %v540
  %v542 = vpop.f32.mrf.mxu0
  %543 = vmatprep.mubr.f32.mxu0 0.0
  %544 = vmatmul.mubr.f32.gmra.mxu0 %v454
  %v545 = vpop.f32.mrf.mxu0
  %v546 = vadd.f32 %v443, %v545
  %v547 = vpop.f32.mrf.mxu0
  %548 = vdwg.mxu0
  %v549 = vmul.f32 %v531, 1.442695
  %v550 = vpow.pop %v549
  %v551 = vmul.f32 %v536, 1.442695
  %v552 = vpow.pop %v551
  %v553 = vmul.f32 %v541, 1.442695
  %v554 = vpow.pop %v553
  %v555 = vmul.f32 %v546, 1.442695
  %v556 = vpow.pop %v555
  %v557 = vsel %vm38, %v550, 0.0
  %558 = vadd.xlane.f32.xlu0 %v557
  %v559 = vpop.xlane.xlu0 %558
  %v560 = vsel %vm38, %v552, 0.0
  %561 = vadd.xlane.f32.xlu0 %v560
  %v562 = vpop.xlane.xlu0 %561
  %v563 = vsel %vm38, %v554, 0.0
  %564 = vadd.xlane.f32.xlu0 %v563
  %v565 = vpop.xlane.xlu0 %564
  %v566 = vsel %vm38, %v556, 0.0
  %567 = vadd.xlane.f32.xlu0 %v566
  %v568 = vpop.xlane.xlu0 %567
  %v569 = vrcp.pop %v559
  %v570 = vmul.f32 1.0, %v569
  %v571 = vrcp.pop %v562
  %v572 = vmul.f32 1.0, %v571
  %v573 = vrcp.pop %v565
  %v574 = vmul.f32 1.0, %v573
  %v575 = vrcp.pop %v568
  %v576 = vmul.f32 1.0, %v575
  %v577 = vmul.f32 %v550, %v570
  %v578 = vmul.f32 %v552, %v572
  %v579 = vmul.f32 %v554, %v574
  %v580 = vmul.f32 %v556, %v576
  %585 = vrot.lane.b32.xlu0 %v118, 96
  %v586 = vpop.permute.xlu0 %585
  %587 = vrot.lane.b32.xlu0 %v124, 96
  %v588 = vpop.permute.xlu0 %587
  %589 = vrot.lane.b32.xlu0 %v130, 96
  %v590 = vpop.permute.xlu0 %589
  %591 = vrot.lane.b32.xlu0 %v136, 96
  %v592 = vpop.permute.xlu0 %591
  %v598 = vsel %vm38, %v577, 0
  %v601 = vsel %vm38, %v578, 0
  %v604 = vsel %vm38, %v579, 0
  %v607 = vsel %vm38, %v580, 0
  %609 = vmatprep.subr.mxu0 0.0
  %610 = vmatpush1.msra.mxu0 0.0
  %611 = vmatprep.subr.mxu0 0.0
  %612 = vmatpush1.msra.mxu0 0.0
  %613 = vmatprep.subr.mxu0 0.0
  %614 = vmatpush1.msra.mxu0 0.0
  %615 = vmatprep.subr.mxu0 0.0
  %616 = vmatpush1.msra.mxu0 0.0
  %617 = vmatprep.subr.mxu0 0.0
  %618 = vmatpush1.msra.mxu0 0.0
  %619 = vmatprep.subr.mxu0 0.0
  %620 = vmatpush1.msra.mxu0 0.0
  %621 = vmatprep.subr.mxu0 0.0
  %622 = vmatpush1.msra.mxu0 0.0
  %623 = vmatprep.subr.mxu0 0.0
  %624 = vmatpush1.msra.mxu0 0.0
  %625 = vmatprep.subr.mxu0 0.0
  %626 = vmatpush1.msra.mxu0 0.0
  %627 = vmatprep.subr.mxu0 0.0
  %628 = vmatpush1.msra.mxu0 0.0
  %629 = vmatprep.subr.mxu0 0.0
  %630 = vmatpush1.msra.mxu0 0.0
  %631 = vmatprep.subr.mxu0 0.0
  %632 = vmatpush1.msra.mxu0 0.0
  %633 = vmatprep.subr.mxu0 0.0
  %634 = vmatpush1.msra.mxu0 %v592
  %635 = vmatprep.subr.mxu0 0.0
  %636 = vmatpush1.msra.mxu0 %v590
  %637 = vmatprep.subr.mxu0 0.0
  %638 = vmatpush1.msra.mxu0 %v588
  %639 = vmatprep.subr.mxu0 0.0
  %640 = vmatpush1.msra.mxu0 %v586
  %641 = vmatprep.subr.mxu0 0.0
  %642 = vmatpush2.msra.mxu0 0.0
  %643 = vmatprep.subr.mxu0 0.0
  %644 = vmatpush2.msra.mxu0 0.0
  %645 = vmatprep.subr.mxu0 0.0
  %646 = vmatpush2.msra.mxu0 0.0
  %647 = vmatprep.subr.mxu0 0.0
  %648 = vmatpush2.msra.mxu0 0.0
  %649 = vmatprep.subr.mxu0 0.0
  %650 = vmatpush2.msra.mxu0 0.0
  %651 = vmatprep.subr.mxu0 0.0
  %652 = vmatpush2.msra.mxu0 0.0
  %653 = vmatprep.subr.mxu0 0.0
  %654 = vmatpush2.msra.mxu0 0.0
  %655 = vmatprep.subr.mxu0 0.0
  %656 = vmatpush2.msra.mxu0 0.0
  %657 = vmatprep.subr.mxu0 0.0
  %658 = vmatpush2.msra.mxu0 0.0
  %659 = vmatprep.subr.mxu0 0.0
  %660 = vmatpush2.msra.mxu0 0.0
  %661 = vmatprep.subr.mxu0 0.0
  %662 = vmatpush2.msra.mxu0 0.0
  %663 = vmatprep.subr.mxu0 0.0
  %664 = vmatpush2.msra.mxu0 0.0
  %665 = vmatprep.subr.mxu0 0.0
  %666 = vmatpush2.msra.mxu0 0.0
  %667 = vmatprep.subr.mxu0 0.0
  %668 = vmatpush2.msra.mxu0 0.0
  %669 = vmatprep.subr.mxu0 0.0
  %670 = vmatpush2.msra.mxu0 0.0
  %671 = vmatprep.subr.mxu0 0.0
  %672 = vmatpush2.msra.mxu0 0.0
  %673 = vmatprep.mubr.f32.mxu0 0.0
  %674 = vmatmul.mubr.f32.gmra.mxu0 %v598
  %v675 = vpop.f32.mrf.mxu0
  %v676 = vadd.f32 0.0, %v675
  %v677 = vpop.f32.mrf.mxu0
  %678 = vmatprep.mubr.f32.mxu0 0.0
  %679 = vmatmul.mubr.f32.gmra.mxu0 %v601
  %v680 = vpop.f32.mrf.mxu0
  %v681 = vadd.f32 0.0, %v680
  %v682 = vpop.f32.mrf.mxu0
  %683 = vmatprep.mubr.f32.mxu0 0.0
  %684 = vmatmul.mubr.f32.gmra.mxu0 %v604
  %v685 = vpop.f32.mrf.mxu0
  %v686 = vadd.f32 0.0, %v685
  %v687 = vpop.f32.mrf.mxu0
  %688 = vmatprep.mubr.f32.mxu0 0.0
  %689 = vmatmul.mubr.f32.gmra.mxu0 %v607
  %v690 = vpop.f32.mrf.mxu0
  %v691 = vadd.f32 0.0, %v690
  %v692 = vpop.f32.mrf.mxu0
  %693 = vdwg.mxu0
  %698 = vrot.lane.b32.xlu0 %v676, 64
  %v699 = vpop.permute.xlu0 %698
  %700 = vrot.lane.b32.xlu0 %v681, 64
  %v701 = vpop.permute.xlu0 %700
  %702 = vrot.lane.b32.xlu0 %v686, 64
  %v703 = vpop.permute.xlu0 %702
  %704 = vrot.lane.b32.xlu0 %v691, 64
  %v705 = vpop.permute.xlu0 %704
  %v710 = vadd.f32 %v412, %v699
  %v711 = vadd.f32 %v413, %v701
  %v712 = vadd.f32 %v414, %v703
  %v713 = vadd.f32 %v415, %v705
  %714 = vrot.lane.b32.xlu0 %v145, 112
  %v715 = vpop.permute.xlu0 %714
  %716 = vrot.lane.b32.xlu0 %v146, 112
  %v717 = vpop.permute.xlu0 %716
  %718 = vrot.lane.b32.xlu0 %v147, 112
  %v719 = vpop.permute.xlu0 %718
  %720 = vrot.lane.b32.xlu0 %v148, 112
  %v721 = vpop.permute.xlu0 %720
  %722 = vrot.lane.b32.xlu0 %v145, 80
  %v723 = vpop.permute.xlu0 %722
  %724 = vrot.lane.b32.xlu0 %v146, 80
  %v725 = vpop.permute.xlu0 %724
  %726 = vrot.lane.b32.xlu0 %v147, 80
  %v727 = vpop.permute.xlu0 %726
  %728 = vrot.lane.b32.xlu0 %v148, 80
  %v729 = vpop.permute.xlu0 %728
  %730 = vrot.lane.b32.xlu0 %v149, 64
  %v731 = vpop.permute.xlu0 %730
  %732 = vrot.lane.b32.xlu0 %v150, 64
  %v733 = vpop.permute.xlu0 %732
  %734 = vrot.lane.b32.xlu0 %v151, 64
  %v735 = vpop.permute.xlu0 %734
  %736 = vrot.lane.b32.xlu0 %v152, 64
  %v737 = vpop.permute.xlu0 %736
  %v742 = vsel %vm165, %v715, 0
  %v744 = vsel %vm165, %v717, 0
  %v746 = vsel %vm165, %v719, 0
  %v748 = vsel %vm165, %v721, 0
  %v750 = vsel %vm165, %v723, 0
  %v752 = vsel %vm165, %v725, 0
  %v754 = vsel %vm165, %v727, 0
  %v756 = vsel %vm165, %v729, 0
  %758 = vmatprep.subr.mxu0 0.0
  %759 = vmatpush1.xpose.msra.mxu0 0.0
  %760 = vmatprep.subr.mxu0 0.0
  %761 = vmatpush1.xpose.msra.mxu0 0.0
  %762 = vmatprep.subr.mxu0 0.0
  %763 = vmatpush1.xpose.msra.mxu0 0.0
  %764 = vmatprep.subr.mxu0 0.0
  %765 = vmatpush1.xpose.msra.mxu0 0.0
  %766 = vmatprep.subr.mxu0 0.0
  %767 = vmatpush1.xpose.msra.mxu0 0.0
  %768 = vmatprep.subr.mxu0 0.0
  %769 = vmatpush1.xpose.msra.mxu0 0.0
  %770 = vmatprep.subr.mxu0 0.0
  %771 = vmatpush1.xpose.msra.mxu0 0.0
  %772 = vmatprep.subr.mxu0 0.0
  %773 = vmatpush1.xpose.msra.mxu0 0.0
  %774 = vmatprep.subr.mxu0 0.0
  %775 = vmatpush1.xpose.msra.mxu0 0.0
  %776 = vmatprep.subr.mxu0 0.0
  %777 = vmatpush1.xpose.msra.mxu0 0.0
  %778 = vmatprep.subr.mxu0 0.0
  %779 = vmatpush1.xpose.msra.mxu0 0.0
  %780 = vmatprep.subr.mxu0 0.0
  %781 = vmatpush1.xpose.msra.mxu0 0.0
  %782 = vmatprep.subr.mxu0 0.0
  %783 = vmatpush1.xpose.msra.mxu0 %v756
  %784 = vmatprep.subr.mxu0 0.0
  %785 = vmatpush1.xpose.msra.mxu0 %v754
  %786 = vmatprep.subr.mxu0 0.0
  %787 = vmatpush1.xpose.msra.mxu0 %v752
  %788 = vmatprep.subr.mxu0 0.0
  %789 = vmatpush1.xpose.msra.mxu0 %v750
  %790 = vmatprep.subr.mxu0 0.0
  %791 = vmatpush2.xpose.msra.mxu0 0.0
  %792 = vmatprep.subr.mxu0 0.0
  %793 = vmatpush2.xpose.msra.mxu0 0.0
  %794 = vmatprep.subr.mxu0 0.0
  %795 = vmatpush2.xpose.msra.mxu0 0.0
  %796 = vmatprep.subr.mxu0 0.0
  %797 = vmatpush2.xpose.msra.mxu0 0.0
  %798 = vmatprep.subr.mxu0 0.0
  %799 = vmatpush2.xpose.msra.mxu0 0.0
  %800 = vmatprep.subr.mxu0 0.0
  %801 = vmatpush2.xpose.msra.mxu0 0.0
  %802 = vmatprep.subr.mxu0 0.0
  %803 = vmatpush2.xpose.msra.mxu0 0.0
  %804 = vmatprep.subr.mxu0 0.0
  %805 = vmatpush2.xpose.msra.mxu0 0.0
  %806 = vmatprep.subr.mxu0 0.0
  %807 = vmatpush2.xpose.msra.mxu0 0.0
  %808 = vmatprep.subr.mxu0 0.0
  %809 = vmatpush2.xpose.msra.mxu0 0.0
  %810 = vmatprep.subr.mxu0 0.0
  %811 = vmatpush2.xpose.msra.mxu0 0.0
  %812 = vmatprep.subr.mxu0 0.0
  %813 = vmatpush2.xpose.msra.mxu0 0.0
  %814 = vmatprep.subr.mxu0 0.0
  %815 = vmatpush2.xpose.msra.mxu0 0.0
  %816 = vmatprep.subr.mxu0 0.0
  %817 = vmatpush2.xpose.msra.mxu0 0.0
  %818 = vmatprep.subr.mxu0 0.0
  %819 = vmatpush2.xpose.msra.mxu0 0.0
  %820 = vmatprep.subr.mxu0 0.0
  %821 = vmatpush2.xpose.msra.mxu0 0.0
  %822 = vmatprep.mubr.f32.mxu0 0.0
  %823 = vmatmul.mubr.f32.gmra.mxu0 %v742
  %v824 = vpop.f32.mrf.mxu0
  %v825 = vadd.f32 %v731, %v824
  %v826 = vpop.f32.mrf.mxu0
  %827 = vmatprep.mubr.f32.mxu0 0.0
  %828 = vmatmul.mubr.f32.gmra.mxu0 %v744
  %v829 = vpop.f32.mrf.mxu0
  %v830 = vadd.f32 %v733, %v829
  %v831 = vpop.f32.mrf.mxu0
  %832 = vmatprep.mubr.f32.mxu0 0.0
  %833 = vmatmul.mubr.f32.gmra.mxu0 %v746
  %v834 = vpop.f32.mrf.mxu0
  %v835 = vadd.f32 %v735, %v834
  %v836 = vpop.f32.mrf.mxu0
  %837 = vmatprep.mubr.f32.mxu0 0.0
  %838 = vmatmul.mubr.f32.gmra.mxu0 %v748
  %v839 = vpop.f32.mrf.mxu0
  %v840 = vadd.f32 %v737, %v839
  %v841 = vpop.f32.mrf.mxu0
  %842 = vdwg.mxu0
  %v843 = vmul.f32 %v825, 1.442695
  %v844 = vpow.pop %v843
  %v845 = vmul.f32 %v830, 1.442695
  %v846 = vpow.pop %v845
  %v847 = vmul.f32 %v835, 1.442695
  %v848 = vpow.pop %v847
  %v849 = vmul.f32 %v840, 1.442695
  %v850 = vpow.pop %v849
  %v851 = vsel %vm38, %v844, 0.0
  %852 = vadd.xlane.f32.xlu0 %v851
  %v853 = vpop.xlane.xlu0 %852
  %v854 = vsel %vm38, %v846, 0.0
  %855 = vadd.xlane.f32.xlu0 %v854
  %v856 = vpop.xlane.xlu0 %855
  %v857 = vsel %vm38, %v848, 0.0
  %858 = vadd.xlane.f32.xlu0 %v857
  %v859 = vpop.xlane.xlu0 %858
  %v860 = vsel %vm38, %v850, 0.0
  %861 = vadd.xlane.f32.xlu0 %v860
  %v862 = vpop.xlane.xlu0 %861
  %v863 = vrcp.pop %v853
  %v864 = vmul.f32 1.0, %v863
  %v865 = vrcp.pop %v856
  %v866 = vmul.f32 1.0, %v865
  %v867 = vrcp.pop %v859
  %v868 = vmul.f32 1.0, %v867
  %v869 = vrcp.pop %v862
  %v870 = vmul.f32 1.0, %v869
  %v871 = vmul.f32 %v844, %v864
  %v872 = vmul.f32 %v846, %v866
  %v873 = vmul.f32 %v848, %v868
  %v874 = vmul.f32 %v850, %v870
  %875 = vrot.lane.b32.xlu0 %v118, 64
  %v876 = vpop.permute.xlu0 %875
  %877 = vrot.lane.b32.xlu0 %v124, 64
  %v878 = vpop.permute.xlu0 %877
  %879 = vrot.lane.b32.xlu0 %v130, 64
  %v880 = vpop.permute.xlu0 %879
  %881 = vrot.lane.b32.xlu0 %v136, 64
  %v882 = vpop.permute.xlu0 %881
  %v888 = vsel %vm38, %v871, 0
  %v891 = vsel %vm38, %v872, 0
  %v894 = vsel %vm38, %v873, 0
  %v897 = vsel %vm38, %v874, 0
  %899 = vmatprep.subr.mxu0 0.0
  %900 = vmatpush1.msra.mxu0 0.0
  %901 = vmatprep.subr.mxu0 0.0
  %902 = vmatpush1.msra.mxu0 0.0
  %903 = vmatprep.subr.mxu0 0.0
  %904 = vmatpush1.msra.mxu0 0.0
  %905 = vmatprep.subr.mxu0 0.0
  %906 = vmatpush1.msra.mxu0 0.0
  %907 = vmatprep.subr.mxu0 0.0
  %908 = vmatpush1.msra.mxu0 0.0
  %909 = vmatprep.subr.mxu0 0.0
  %910 = vmatpush1.msra.mxu0 0.0
  %911 = vmatprep.subr.mxu0 0.0
  %912 = vmatpush1.msra.mxu0 0.0
  %913 = vmatprep.subr.mxu0 0.0
  %914 = vmatpush1.msra.mxu0 0.0
  %915 = vmatprep.subr.mxu0 0.0
  %916 = vmatpush1.msra.mxu0 0.0
  %917 = vmatprep.subr.mxu0 0.0
  %918 = vmatpush1.msra.mxu0 0.0
  %919 = vmatprep.subr.mxu0 0.0
  %920 = vmatpush1.msra.mxu0 0.0
  %921 = vmatprep.subr.mxu0 0.0
  %922 = vmatpush1.msra.mxu0 0.0
  %923 = vmatprep.subr.mxu0 0.0
  %924 = vmatpush1.msra.mxu0 %v882
  %925 = vmatprep.subr.mxu0 0.0
  %926 = vmatpush1.msra.mxu0 %v880
  %927 = vmatprep.subr.mxu0 0.0
  %928 = vmatpush1.msra.mxu0 %v878
  %929 = vmatprep.subr.mxu0 0.0
  %930 = vmatpush1.msra.mxu0 %v876
  %931 = vmatprep.subr.mxu0 0.0
  %932 = vmatpush2.msra.mxu0 0.0
  %933 = vmatprep.subr.mxu0 0.0
  %934 = vmatpush2.msra.mxu0 0.0
  %935 = vmatprep.subr.mxu0 0.0
  %936 = vmatpush2.msra.mxu0 0.0
  %937 = vmatprep.subr.mxu0 0.0
  %938 = vmatpush2.msra.mxu0 0.0
  %939 = vmatprep.subr.mxu0 0.0
  %940 = vmatpush2.msra.mxu0 0.0
  %941 = vmatprep.subr.mxu0 0.0
  %942 = vmatpush2.msra.mxu0 0.0
  %943 = vmatprep.subr.mxu0 0.0
  %944 = vmatpush2.msra.mxu0 0.0
  %945 = vmatprep.subr.mxu0 0.0
  %946 = vmatpush2.msra.mxu0 0.0
  %947 = vmatprep.subr.mxu0 0.0
  %948 = vmatpush2.msra.mxu0 0.0
  %949 = vmatprep.subr.mxu0 0.0
  %950 = vmatpush2.msra.mxu0 0.0
  %951 = vmatprep.subr.mxu0 0.0
  %952 = vmatpush2.msra.mxu0 0.0
  %953 = vmatprep.subr.mxu0 0.0
  %954 = vmatpush2.msra.mxu0 0.0
  %955 = vmatprep.subr.mxu0 0.0
  %956 = vmatpush2.msra.mxu0 0.0
  %957 = vmatprep.subr.mxu0 0.0
  %958 = vmatpush2.msra.mxu0 0.0
  %959 = vmatprep.subr.mxu0 0.0
  %960 = vmatpush2.msra.mxu0 0.0
  %961 = vmatprep.subr.mxu0 0.0
  %962 = vmatpush2.msra.mxu0 0.0
  %963 = vmatprep.mubr.f32.mxu0 0.0
  %964 = vmatmul.mubr.f32.gmra.mxu0 %v888
  %v965 = vpop.f32.mrf.mxu0
  %v966 = vadd.f32 0.0, %v965
  %v967 = vpop.f32.mrf.mxu0
  %968 = vmatprep.mubr.f32.mxu0 0.0
  %969 = vmatmul.mubr.f32.gmra.mxu0 %v891
  %v970 = vpop.f32.mrf.mxu0
  %v971 = vadd.f32 0.0, %v970
  %v972 = vpop.f32.mrf.mxu0
  %973 = vmatprep.mubr.f32.mxu0 0.0
  %974 = vmatmul.mubr.f32.gmra.mxu0 %v894
  %v975 = vpop.f32.mrf.mxu0
  %v976 = vadd.f32 0.0, %v975
  %v977 = vpop.f32.mrf.mxu0
  %978 = vmatprep.mubr.f32.mxu0 0.0
  %979 = vmatmul.mubr.f32.gmra.mxu0 %v897
  %v980 = vpop.f32.mrf.mxu0
  %v981 = vadd.f32 0.0, %v980
  %v982 = vpop.f32.mrf.mxu0
  %983 = vdwg.mxu0
  %988 = vrot.lane.b32.xlu0 %v966, 64
  %v989 = vpop.permute.xlu0 %988
  %990 = vrot.lane.b32.xlu0 %v971, 64
  %v991 = vpop.permute.xlu0 %990
  %992 = vrot.lane.b32.xlu0 %v976, 64
  %v993 = vpop.permute.xlu0 %992
  %994 = vrot.lane.b32.xlu0 %v981, 64
  %v995 = vpop.permute.xlu0 %994
  %v1000 = vadd.f32 %v710, %v989
  %v1001 = vadd.f32 %v711, %v991
  %v1002 = vadd.f32 %v712, %v993
  %v1003 = vadd.f32 %v713, %v995
  %1004 = vrot.lane.b32.xlu0 %v145, 104
  %v1005 = vpop.permute.xlu0 %1004
  %1006 = vrot.lane.b32.xlu0 %v146, 104
  %v1007 = vpop.permute.xlu0 %1006
  %1008 = vrot.lane.b32.xlu0 %v147, 104
  %v1009 = vpop.permute.xlu0 %1008
  %1010 = vrot.lane.b32.xlu0 %v148, 104
  %v1011 = vpop.permute.xlu0 %1010
  %1012 = vrot.lane.b32.xlu0 %v145, 72
  %v1013 = vpop.permute.xlu0 %1012
  %1014 = vrot.lane.b32.xlu0 %v146, 72
  %v1015 = vpop.permute.xlu0 %1014
  %1016 = vrot.lane.b32.xlu0 %v147, 72
  %v1017 = vpop.permute.xlu0 %1016
  %1018 = vrot.lane.b32.xlu0 %v148, 72
  %v1019 = vpop.permute.xlu0 %1018
  %1020 = vrot.lane.b32.xlu0 %v149, 32
  %v1021 = vpop.permute.xlu0 %1020
  %1022 = vrot.lane.b32.xlu0 %v150, 32
  %v1023 = vpop.permute.xlu0 %1022
  %1024 = vrot.lane.b32.xlu0 %v151, 32
  %v1025 = vpop.permute.xlu0 %1024
  %1026 = vrot.lane.b32.xlu0 %v152, 32
  %v1027 = vpop.permute.xlu0 %1026
  %v1032 = vsel %vm165, %v1005, 0
  %v1034 = vsel %vm165, %v1007, 0
  %v1036 = vsel %vm165, %v1009, 0
  %v1038 = vsel %vm165, %v1011, 0
  %v1040 = vsel %vm165, %v1013, 0
  %v1042 = vsel %vm165, %v1015, 0
  %v1044 = vsel %vm165, %v1017, 0
  %v1046 = vsel %vm165, %v1019, 0
  %1048 = vmatprep.subr.mxu0 0.0
  %1049 = vmatpush1.xpose.msra.mxu0 0.0
  %1050 = vmatprep.subr.mxu0 0.0
  %1051 = vmatpush1.xpose.msra.mxu0 0.0
  %1052 = vmatprep.subr.mxu0 0.0
  %1053 = vmatpush1.xpose.msra.mxu0 0.0
  %1054 = vmatprep.subr.mxu0 0.0
  %1055 = vmatpush1.xpose.msra.mxu0 0.0
  %1056 = vmatprep.subr.mxu0 0.0
  %1057 = vmatpush1.xpose.msra.mxu0 0.0
  %1058 = vmatprep.subr.mxu0 0.0
  %1059 = vmatpush1.xpose.msra.mxu0 0.0
  %1060 = vmatprep.subr.mxu0 0.0
  %1061 = vmatpush1.xpose.msra.mxu0 0.0
  %1062 = vmatprep.subr.mxu0 0.0
  %1063 = vmatpush1.xpose.msra.mxu0 0.0
  %1064 = vmatprep.subr.mxu0 0.0
  %1065 = vmatpush1.xpose.msra.mxu0 0.0
  %1066 = vmatprep.subr.mxu0 0.0
  %1067 = vmatpush1.xpose.msra.mxu0 0.0
  %1068 = vmatprep.subr.mxu0 0.0
  %1069 = vmatpush1.xpose.msra.mxu0 0.0
  %1070 = vmatprep.subr.mxu0 0.0
  %1071 = vmatpush1.xpose.msra.mxu0 0.0
  %1072 = vmatprep.subr.mxu0 0.0
  %1073 = vmatpush1.xpose.msra.mxu0 %v1046
  %1074 = vmatprep.subr.mxu0 0.0
  %1075 = vmatpush1.xpose.msra.mxu0 %v1044
  %1076 = vmatprep.subr.mxu0 0.0
  %1077 = vmatpush1.xpose.msra.mxu0 %v1042
  %1078 = vmatprep.subr.mxu0 0.0
  %1079 = vmatpush1.xpose.msra.mxu0 %v1040
  %1080 = vmatprep.subr.mxu0 0.0
  %1081 = vmatpush2.xpose.msra.mxu0 0.0
  %1082 = vmatprep.subr.mxu0 0.0
  %1083 = vmatpush2.xpose.msra.mxu0 0.0
  %1084 = vmatprep.subr.mxu0 0.0
  %1085 = vmatpush2.xpose.msra.mxu0 0.0
  %1086 = vmatprep.subr.mxu0 0.0
  %1087 = vmatpush2.xpose.msra.mxu0 0.0
  %1088 = vmatprep.subr.mxu0 0.0
  %1089 = vmatpush2.xpose.msra.mxu0 0.0
  %1090 = vmatprep.subr.mxu0 0.0
  %1091 = vmatpush2.xpose.msra.mxu0 0.0
  %1092 = vmatprep.subr.mxu0 0.0
  %1093 = vmatpush2.xpose.msra.mxu0 0.0
  %1094 = vmatprep.subr.mxu0 0.0
  %1095 = vmatpush2.xpose.msra.mxu0 0.0
  %1096 = vmatprep.subr.mxu0 0.0
  %1097 = vmatpush2.xpose.msra.mxu0 0.0
  %1098 = vmatprep.subr.mxu0 0.0
  %1099 = vmatpush2.xpose.msra.mxu0 0.0
  %1100 = vmatprep.subr.mxu0 0.0
  %1101 = vmatpush2.xpose.msra.mxu0 0.0
  %1102 = vmatprep.subr.mxu0 0.0
  %1103 = vmatpush2.xpose.msra.mxu0 0.0
  %1104 = vmatprep.subr.mxu0 0.0
  %1105 = vmatpush2.xpose.msra.mxu0 0.0
  %1106 = vmatprep.subr.mxu0 0.0
  %1107 = vmatpush2.xpose.msra.mxu0 0.0
  %1108 = vmatprep.subr.mxu0 0.0
  %1109 = vmatpush2.xpose.msra.mxu0 0.0
  %1110 = vmatprep.subr.mxu0 0.0
  %1111 = vmatpush2.xpose.msra.mxu0 0.0
  %1112 = vmatprep.mubr.f32.mxu0 0.0
  %1113 = vmatmul.mubr.f32.gmra.mxu0 %v1032
  %v1114 = vpop.f32.mrf.mxu0
  %v1115 = vadd.f32 %v1021, %v1114
  %v1116 = vpop.f32.mrf.mxu0
  %1117 = vmatprep.mubr.f32.mxu0 0.0
  %1118 = vmatmul.mubr.f32.gmra.mxu0 %v1034
  %v1119 = vpop.f32.mrf.mxu0
  %v1120 = vadd.f32 %v1023, %v1119
  %v1121 = vpop.f32.mrf.mxu0
  %1122 = vmatprep.mubr.f32.mxu0 0.0
  %1123 = vmatmul.mubr.f32.gmra.mxu0 %v1036
  %v1124 = vpop.f32.mrf.mxu0
  %v1125 = vadd.f32 %v1025, %v1124
  %v1126 = vpop.f32.mrf.mxu0
  %1127 = vmatprep.mubr.f32.mxu0 0.0
  %1128 = vmatmul.mubr.f32.gmra.mxu0 %v1038
  %v1129 = vpop.f32.mrf.mxu0
  %v1130 = vadd.f32 %v1027, %v1129
  %v1131 = vpop.f32.mrf.mxu0
  %1132 = vdwg.mxu0
  %v1133 = vmul.f32 %v1115, 1.442695
  %v1134 = vpow.pop %v1133
  %v1135 = vmul.f32 %v1120, 1.442695
  %v1136 = vpow.pop %v1135
  %v1137 = vmul.f32 %v1125, 1.442695
  %v1138 = vpow.pop %v1137
  %v1139 = vmul.f32 %v1130, 1.442695
  %v1140 = vpow.pop %v1139
  %v1141 = vsel %vm38, %v1134, 0.0
  %1142 = vadd.xlane.f32.xlu0 %v1141
  %v1143 = vpop.xlane.xlu0 %1142
  %v1144 = vsel %vm38, %v1136, 0.0
  %1145 = vadd.xlane.f32.xlu0 %v1144
  %v1146 = vpop.xlane.xlu0 %1145
  %v1147 = vsel %vm38, %v1138, 0.0
  %1148 = vadd.xlane.f32.xlu0 %v1147
  %v1149 = vpop.xlane.xlu0 %1148
  %v1150 = vsel %vm38, %v1140, 0.0
  %1151 = vadd.xlane.f32.xlu0 %v1150
  %v1152 = vpop.xlane.xlu0 %1151
  %v1153 = vrcp.pop %v1143
  %v1154 = vmul.f32 1.0, %v1153
  %v1155 = vrcp.pop %v1146
  %v1156 = vmul.f32 1.0, %v1155
  %v1157 = vrcp.pop %v1149
  %v1158 = vmul.f32 1.0, %v1157
  %v1159 = vrcp.pop %v1152
  %v1160 = vmul.f32 1.0, %v1159
  %v1161 = vmul.f32 %v1134, %v1154
  %v1162 = vmul.f32 %v1136, %v1156
  %v1163 = vmul.f32 %v1138, %v1158
  %v1164 = vmul.f32 %v1140, %v1160
  %1165 = vrot.lane.b32.xlu0 %v118, 32
  %v1166 = vpop.permute.xlu0 %1165
  %1167 = vrot.lane.b32.xlu0 %v124, 32
  %v1168 = vpop.permute.xlu0 %1167
  %1169 = vrot.lane.b32.xlu0 %v130, 32
  %v1170 = vpop.permute.xlu0 %1169
  %1171 = vrot.lane.b32.xlu0 %v136, 32
  %v1172 = vpop.permute.xlu0 %1171
  %v1178 = vsel %vm38, %v1161, 0
  %v1181 = vsel %vm38, %v1162, 0
  %v1184 = vsel %vm38, %v1163, 0
  %v1187 = vsel %vm38, %v1164, 0
  %1189 = vmatprep.subr.mxu0 0.0
  %1190 = vmatpush1.msra.mxu0 0.0
  %1191 = vmatprep.subr.mxu0 0.0
  %1192 = vmatpush1.msra.mxu0 0.0
  %1193 = vmatprep.subr.mxu0 0.0
  %1194 = vmatpush1.msra.mxu0 0.0
  %1195 = vmatprep.subr.mxu0 0.0
  %1196 = vmatpush1.msra.mxu0 0.0
  %1197 = vmatprep.subr.mxu0 0.0
  %1198 = vmatpush1.msra.mxu0 0.0
  %1199 = vmatprep.subr.mxu0 0.0
  %1200 = vmatpush1.msra.mxu0 0.0
  %1201 = vmatprep.subr.mxu0 0.0
  %1202 = vmatpush1.msra.mxu0 0.0
  %1203 = vmatprep.subr.mxu0 0.0
  %1204 = vmatpush1.msra.mxu0 0.0
  %1205 = vmatprep.subr.mxu0 0.0
  %1206 = vmatpush1.msra.mxu0 0.0
  %1207 = vmatprep.subr.mxu0 0.0
  %1208 = vmatpush1.msra.mxu0 0.0
  %1209 = vmatprep.subr.mxu0 0.0
  %1210 = vmatpush1.msra.mxu0 0.0
  %1211 = vmatprep.subr.mxu0 0.0
  %1212 = vmatpush1.msra.mxu0 0.0
  %1213 = vmatprep.subr.mxu0 0.0
  %1214 = vmatpush1.msra.mxu0 %v1172
  %1215 = vmatprep.subr.mxu0 0.0
  %1216 = vmatpush1.msra.mxu0 %v1170
  %1217 = vmatprep.subr.mxu0 0.0
  %1218 = vmatpush1.msra.mxu0 %v1168
  %1219 = vmatprep.subr.mxu0 0.0
  %1220 = vmatpush1.msra.mxu0 %v1166
  %1221 = vmatprep.subr.mxu0 0.0
  %1222 = vmatpush2.msra.mxu0 0.0
  %1223 = vmatprep.subr.mxu0 0.0
  %1224 = vmatpush2.msra.mxu0 0.0
  %1225 = vmatprep.subr.mxu0 0.0
  %1226 = vmatpush2.msra.mxu0 0.0
  %1227 = vmatprep.subr.mxu0 0.0
  %1228 = vmatpush2.msra.mxu0 0.0
  %1229 = vmatprep.subr.mxu0 0.0
  %1230 = vmatpush2.msra.mxu0 0.0
  %1231 = vmatprep.subr.mxu0 0.0
  %1232 = vmatpush2.msra.mxu0 0.0
  %1233 = vmatprep.subr.mxu0 0.0
  %1234 = vmatpush2.msra.mxu0 0.0
  %1235 = vmatprep.subr.mxu0 0.0
  %1236 = vmatpush2.msra.mxu0 0.0
  %1237 = vmatprep.subr.mxu0 0.0
  %1238 = vmatpush2.msra.mxu0 0.0
  %1239 = vmatprep.subr.mxu0 0.0
  %1240 = vmatpush2.msra.mxu0 0.0
  %1241 = vmatprep.subr.mxu0 0.0
  %1242 = vmatpush2.msra.mxu0 0.0
  %1243 = vmatprep.subr.mxu0 0.0
  %1244 = vmatpush2.msra.mxu0 0.0
  %1245 = vmatprep.subr.mxu0 0.0
  %1246 = vmatpush2.msra.mxu0 0.0
  %1247 = vmatprep.subr.mxu0 0.0
  %1248 = vmatpush2.msra.mxu0 0.0
  %1249 = vmatprep.subr.mxu0 0.0
  %1250 = vmatpush2.msra.mxu0 0.0
  %1251 = vmatprep.subr.mxu0 0.0
  %1252 = vmatpush2.msra.mxu0 0.0
  %1253 = vmatprep.mubr.f32.mxu0 0.0
  %1254 = vmatmul.mubr.f32.gmra.mxu0 %v1178
  %v1255 = vpop.f32.mrf.mxu0
  %v1256 = vadd.f32 0.0, %v1255
  %v1257 = vpop.f32.mrf.mxu0
  %1258 = vmatprep.mubr.f32.mxu0 0.0
  %1259 = vmatmul.mubr.f32.gmra.mxu0 %v1181
  %v1260 = vpop.f32.mrf.mxu0
  %v1261 = vadd.f32 0.0, %v1260
  %v1262 = vpop.f32.mrf.mxu0
  %1263 = vmatprep.mubr.f32.mxu0 0.0
  %1264 = vmatmul.mubr.f32.gmra.mxu0 %v1184
  %v1265 = vpop.f32.mrf.mxu0
  %v1266 = vadd.f32 0.0, %v1265
  %v1267 = vpop.f32.mrf.mxu0
  %1268 = vmatprep.mubr.f32.mxu0 0.0
  %1269 = vmatmul.mubr.f32.gmra.mxu0 %v1187
  %v1270 = vpop.f32.mrf.mxu0
  %v1271 = vadd.f32 0.0, %v1270
  %v1272 = vpop.f32.mrf.mxu0
  %1273 = vdwg.mxu0
  %1278 = vrot.lane.b32.xlu0 %v1256, 64
  %v1279 = vpop.permute.xlu0 %1278
  %1280 = vrot.lane.b32.xlu0 %v1261, 64
  %v1281 = vpop.permute.xlu0 %1280
  %1282 = vrot.lane.b32.xlu0 %v1266, 64
  %v1283 = vpop.permute.xlu0 %1282
  %1284 = vrot.lane.b32.xlu0 %v1271, 64
  %v1285 = vpop.permute.xlu0 %1284
  %v1290 = vadd.f32 %v1000, %v1279
  %v1291 = vadd.f32 %v1001, %v1281
  %v1292 = vadd.f32 %v1002, %v1283
  %v1293 = vadd.f32 %v1003, %v1285
  %1298 = vrot.lane.b32.xlu0 %v1290, 64
  %v1299 = vpop.permute.xlu0 %1298
  %1300 = vrot.lane.b32.xlu0 %v1291, 64
  %v1301 = vpop.permute.xlu0 %1300
  %1302 = vrot.lane.b32.xlu0 %v1292, 64
  %v1303 = vpop.permute.xlu0 %1302
  %1304 = vrot.lane.b32.xlu0 %v1293, 64
  %v1305 = vpop.permute.xlu0 %1304
  %v1310 = vadd.f32 %v26, %v1299
  %v1311 = vadd.f32 %v27, %v1301
  %v1312 = vadd.f32 %v28, %v1303
  %v1313 = vadd.f32 %v29, %v1305
  %v1314 = vld [vmem:[%s6 + $0x1] sm:$0x1]
  %v1315 = vsel %vm38, %v1310, 0.0
  %1316 = vadd.xlane.f32.xlu0 %v1315
  %v1317 = vpop.xlane.xlu0 %1316
  %v1318 = vsel %vm38, %v1311, 0.0
  %1319 = vadd.xlane.f32.xlu0 %v1318
  %v1320 = vpop.xlane.xlu0 %1319
  %v1321 = vsel %vm38, %v1312, 0.0
  %1322 = vadd.xlane.f32.xlu0 %v1321
  %v1323 = vpop.xlane.xlu0 %1322
  %v1324 = vsel %vm38, %v1313, 0.0
  %1325 = vadd.xlane.f32.xlu0 %v1324
  %v1326 = vpop.xlane.xlu0 %1325
  %v1327 = vrcp.pop 32.0
  %v1328 = vmul.f32 %v1317, %v1327
  %v1329 = vmul.f32 %v1320, %v1327
  %v1330 = vmul.f32 %v1323, %v1327
  %v1331 = vmul.f32 %v1326, %v1327
  %v1332 = vsub.f32 %v1310, %v1328
  %v1333 = vsub.f32 %v1311, %v1329
  %v1334 = vsub.f32 %v1312, %v1330
  %v1335 = vsub.f32 %v1313, %v1331
  %v1336 = vmul.f32 %v1332, %v1332
  %v1337 = vmul.f32 %v1333, %v1333
  %v1338 = vmul.f32 %v1334, %v1334
  %v1339 = vmul.f32 %v1335, %v1335
  %v1340 = vsel %vm38, %v1336, 0.0
  %1341 = vadd.xlane.f32.xlu0 %v1340
  %v1342 = vpop.xlane.xlu0 %1341
  %v1343 = vsel %vm38, %v1337, 0.0
  %1344 = vadd.xlane.f32.xlu0 %v1343
  %v1345 = vpop.xlane.xlu0 %1344
  %v1346 = vsel %vm38, %v1338, 0.0
  %1347 = vadd.xlane.f32.xlu0 %v1346
  %v1348 = vpop.xlane.xlu0 %1347
  %v1349 = vsel %vm38, %v1339, 0.0
  %1350 = vadd.xlane.f32.xlu0 %v1349
  %v1351 = vpop.xlane.xlu0 %1350
  %v1352 = vmul.f32 %v1342, %v1327
  %v1353 = vmul.f32 %v1345, %v1327
  %v1354 = vmul.f32 %v1348, %v1327
  %v1355 = vmul.f32 %v1351, %v1327
  %v1356 = vadd.f32 %v1352, 1e-05
  %v1357 = vadd.f32 %v1353, 1e-05
  %v1358 = vadd.f32 %v1354, 1e-05
  %v1359 = vadd.f32 %v1355, 1e-05
  %v1360 = vrsqrt.pop %v1356
  %v1361 = vrsqrt.pop %v1357
  %v1362 = vrsqrt.pop %v1358
  %v1363 = vrsqrt.pop %v1359
  %v1364 = vmul.f32 %v1332, %v1360
  %v1365 = vmul.f32 %v1333, %v1361
  %v1366 = vmul.f32 %v1334, %v1362
  %v1367 = vmul.f32 %v1335, %v1363
  %v1368 = vlaneseq
  %v1369 = vshrl.u32 %v1368, 7
  %v1370 = vsub.s32 0, %v1369
  %v1371 = vrot.slane %v1314, %v1370
  %v1372 = vmul.f32 %v1364, %v1371
  %v1373 = vmul.f32 %v1365, %v1371
  %v1374 = vmul.f32 %v1366, %v1371
  %v1375 = vmul.f32 %v1367, %v1371
  %1377 = vrot.lane.b32.xlu0 %v1371, 96
  %v1378 = vpop.permute.xlu0 %1377
  %v1380 = vadd.f32 %v1372, %v1378
  %v1381 = vadd.f32 %v1373, %v1378
  %v1382 = vadd.f32 %v1374, %v1378
  %v1383 = vadd.f32 %v1375, %v1378
  %v1384 = vld [vmem:[%s3] sm:$0xff]
  %v1385 = vld [vmem:[%s3 + $0x8] sm:$0xff]
  %v1386 = vld [vmem:[%s3 + $0x10] sm:$0xff]
  %v1387 = vld [vmem:[%s3 + $0x18] sm:$0xff]
  %v1388 = vld [vmem:[%s3 + $0x20] sm:$0xff]
  %v1389 = vld [vmem:[%s3 + $0x28] sm:$0xff]
  %v1390 = vld [vmem:[%s3 + $0x30] sm:$0xff]
  %v1391 = vld [vmem:[%s3 + $0x38] sm:$0xff]
  %v1392 = vld [vmem:[%s3 + $0x40] sm:$0xff]
  %v1393 = vld [vmem:[%s3 + $0x48] sm:$0xff]
  %v1394 = vld [vmem:[%s3 + $0x50] sm:$0xff]
  %v1395 = vld [vmem:[%s3 + $0x58] sm:$0xff]
  %v1396 = vld [vmem:[%s6 + $0x2] sm:$0x1]
  %v1397 = vlaneseq
  %v1398 = vshrl.u32 %v1397, 7
  %v1399 = vsub.s32 0, %v1398
  %v1400 = vrot.slane %v1396, %v1399
  %v1402 = vsel %vm38, %v1380, 0
  %v1405 = vsel %vm38, %v1381, 0
  %v1408 = vsel %vm38, %v1382, 0
  %v1411 = vsel %vm38, %v1383, 0
  %1413 = vmatprep.subr.mxu0 0.0
  %1414 = vmatpush1.msra.mxu0 0.0
  %1415 = vmatprep.subr.mxu0 0.0
  %1416 = vmatpush1.msra.mxu0 0.0
  %1417 = vmatprep.subr.mxu0 0.0
  %1418 = vmatpush1.msra.mxu0 0.0
  %1419 = vmatprep.subr.mxu0 0.0
  %1420 = vmatpush1.msra.mxu0 0.0
  %1421 = vmatprep.subr.mxu0 0.0
  %1422 = vmatpush1.msra.mxu0 0.0
  %1423 = vmatprep.subr.mxu0 0.0
  %1424 = vmatpush1.msra.mxu0 0.0
  %1425 = vmatprep.subr.mxu0 0.0
  %1426 = vmatpush1.msra.mxu0 0.0
  %1427 = vmatprep.subr.mxu0 0.0
  %1428 = vmatpush1.msra.mxu0 0.0
  %1429 = vmatprep.subr.mxu0 0.0
  %1430 = vmatpush1.msra.mxu0 0.0
  %1431 = vmatprep.subr.mxu0 0.0
  %1432 = vmatpush1.msra.mxu0 0.0
  %1433 = vmatprep.subr.mxu0 0.0
  %1434 = vmatpush1.msra.mxu0 0.0
  %1435 = vmatprep.subr.mxu0 0.0
  %1436 = vmatpush1.msra.mxu0 0.0
  %1437 = vmatprep.subr.mxu0 0.0
  %1438 = vmatpush1.msra.mxu0 %v1387
  %1439 = vmatprep.subr.mxu0 0.0
  %1440 = vmatpush1.msra.mxu0 %v1386
  %1441 = vmatprep.subr.mxu0 0.0
  %1442 = vmatpush1.msra.mxu0 %v1385
  %1443 = vmatprep.subr.mxu0 0.0
  %1444 = vmatpush1.msra.mxu0 %v1384
  %1445 = vmatprep.subr.mxu0 0.0
  %1446 = vmatpush2.msra.mxu0 0.0
  %1447 = vmatprep.subr.mxu0 0.0
  %1448 = vmatpush2.msra.mxu0 0.0
  %1449 = vmatprep.subr.mxu0 0.0
  %1450 = vmatpush2.msra.mxu0 0.0
  %1451 = vmatprep.subr.mxu0 0.0
  %1452 = vmatpush2.msra.mxu0 0.0
  %1453 = vmatprep.subr.mxu0 0.0
  %1454 = vmatpush2.msra.mxu0 0.0
  %1455 = vmatprep.subr.mxu0 0.0
  %1456 = vmatpush2.msra.mxu0 0.0
  %1457 = vmatprep.subr.mxu0 0.0
  %1458 = vmatpush2.msra.mxu0 0.0
  %1459 = vmatprep.subr.mxu0 0.0
  %1460 = vmatpush2.msra.mxu0 0.0
  %1461 = vmatprep.subr.mxu0 0.0
  %1462 = vmatpush2.msra.mxu0 0.0
  %1463 = vmatprep.subr.mxu0 0.0
  %1464 = vmatpush2.msra.mxu0 0.0
  %1465 = vmatprep.subr.mxu0 0.0
  %1466 = vmatpush2.msra.mxu0 0.0
  %1467 = vmatprep.subr.mxu0 0.0
  %1468 = vmatpush2.msra.mxu0 0.0
  %1469 = vmatprep.subr.mxu0 0.0
  %1470 = vmatpush2.msra.mxu0 0.0
  %1471 = vmatprep.subr.mxu0 0.0
  %1472 = vmatpush2.msra.mxu0 0.0
  %1473 = vmatprep.subr.mxu0 0.0
  %1474 = vmatpush2.msra.mxu0 0.0
  %1475 = vmatprep.subr.mxu0 0.0
  %1476 = vmatpush2.msra.mxu0 0.0
  %1477 = vmatprep.mubr.f32.mxu0 0.0
  %1478 = vmatmul.mubr.f32.gmra.mxu0 %v1402
  %v1479 = vpop.f32.mrf.mxu0
  %v1480 = vadd.f32 %v1400, %v1479
  %v1481 = vpop.f32.mrf.mxu0
  %1482 = vmatprep.mubr.f32.mxu0 0.0
  %1483 = vmatmul.mubr.f32.gmra.mxu0 %v1405
  %v1484 = vpop.f32.mrf.mxu0
  %v1485 = vadd.f32 %v1400, %v1484
  %v1486 = vpop.f32.mrf.mxu0
  %1487 = vmatprep.mubr.f32.mxu0 0.0
  %1488 = vmatmul.mubr.f32.gmra.mxu0 %v1408
  %v1489 = vpop.f32.mrf.mxu0
  %v1490 = vadd.f32 %v1400, %v1489
  %v1491 = vpop.f32.mrf.mxu0
  %1492 = vmatprep.mubr.f32.mxu0 0.0
  %1493 = vmatmul.mubr.f32.gmra.mxu0 %v1411
  %v1494 = vpop.f32.mrf.mxu0
  %v1495 = vadd.f32 %v1400, %v1494
  %v1496 = vpop.f32.mrf.mxu0
  %1497 = vdwg.mxu0
  %v1498 = vmax.f32 %v1480, 0.0
  %v1499 = vmax.f32 %v1485, 0.0
  %v1500 = vmax.f32 %v1490, 0.0
  %v1501 = vmax.f32 %v1495, 0.0
  %1503 = vrot.lane.b32.xlu0 %v1400, 64
  %v1504 = vpop.permute.xlu0 %1503
  %vm1506 = vcmask 523264
  %v1508 = vsel %vm1506, %v1498, 0
  %v1511 = vsel %vm1506, %v1499, 0
  %v1514 = vsel %vm1506, %v1500, 0
  %v1517 = vsel %vm1506, %v1501, 0
  %1519 = vmatprep.subr.mxu0 0.0
  %1520 = vmatpush1.msra.mxu0 0.0
  %1521 = vmatprep.subr.mxu0 0.0
  %1522 = vmatpush1.msra.mxu0 0.0
  %1523 = vmatprep.subr.mxu0 0.0
  %1524 = vmatpush1.msra.mxu0 0.0
  %1525 = vmatprep.subr.mxu0 0.0
  %1526 = vmatpush1.msra.mxu0 0.0
  %1527 = vmatprep.subr.mxu0 0.0
  %1528 = vmatpush1.msra.mxu0 0.0
  %1529 = vmatprep.subr.mxu0 0.0
  %1530 = vmatpush1.msra.mxu0 0.0
  %1531 = vmatprep.subr.mxu0 0.0
  %1532 = vmatpush1.msra.mxu0 0.0
  %1533 = vmatprep.subr.mxu0 0.0
  %1534 = vmatpush1.msra.mxu0 0.0
  %1535 = vmatprep.subr.mxu0 0.0
  %1536 = vmatpush1.msra.mxu0 %v1395
  %1537 = vmatprep.subr.mxu0 0.0
  %1538 = vmatpush1.msra.mxu0 %v1394
  %1539 = vmatprep.subr.mxu0 0.0
  %1540 = vmatpush1.msra.mxu0 %v1393
  %1541 = vmatprep.subr.mxu0 0.0
  %1542 = vmatpush1.msra.mxu0 %v1392
  %1543 = vmatprep.subr.mxu0 0.0
  %1544 = vmatpush1.msra.mxu0 %v1391
  %1545 = vmatprep.subr.mxu0 0.0
  %1546 = vmatpush1.msra.mxu0 %v1390
  %1547 = vmatprep.subr.mxu0 0.0
  %1548 = vmatpush1.msra.mxu0 %v1389
  %1549 = vmatprep.subr.mxu0 0.0
  %1550 = vmatpush1.msra.mxu0 %v1388
  %1551 = vmatprep.subr.mxu0 0.0
  %1552 = vmatpush2.msra.mxu0 0.0
  %1553 = vmatprep.subr.mxu0 0.0
  %1554 = vmatpush2.msra.mxu0 0.0
  %1555 = vmatprep.subr.mxu0 0.0
  %1556 = vmatpush2.msra.mxu0 0.0
  %1557 = vmatprep.subr.mxu0 0.0
  %1558 = vmatpush2.msra.mxu0 0.0
  %1559 = vmatprep.subr.mxu0 0.0
  %1560 = vmatpush2.msra.mxu0 0.0
  %1561 = vmatprep.subr.mxu0 0.0
  %1562 = vmatpush2.msra.mxu0 0.0
  %1563 = vmatprep.subr.mxu0 0.0
  %1564 = vmatpush2.msra.mxu0 0.0
  %1565 = vmatprep.subr.mxu0 0.0
  %1566 = vmatpush2.msra.mxu0 0.0
  %1567 = vmatprep.subr.mxu0 0.0
  %1568 = vmatpush2.msra.mxu0 0.0
  %1569 = vmatprep.subr.mxu0 0.0
  %1570 = vmatpush2.msra.mxu0 0.0
  %1571 = vmatprep.subr.mxu0 0.0
  %1572 = vmatpush2.msra.mxu0 0.0
  %1573 = vmatprep.subr.mxu0 0.0
  %1574 = vmatpush2.msra.mxu0 0.0
  %1575 = vmatprep.subr.mxu0 0.0
  %1576 = vmatpush2.msra.mxu0 0.0
  %1577 = vmatprep.subr.mxu0 0.0
  %1578 = vmatpush2.msra.mxu0 0.0
  %1579 = vmatprep.subr.mxu0 0.0
  %1580 = vmatpush2.msra.mxu0 0.0
  %1581 = vmatprep.subr.mxu0 0.0
  %1582 = vmatpush2.msra.mxu0 0.0
  %1583 = vmatprep.mubr.f32.mxu0 0.0
  %1584 = vmatmul.mubr.f32.gmra.mxu0 %v1508
  %v1585 = vpop.f32.mrf.mxu0
  %v1586 = vadd.f32 %v1504, %v1585
  %v1587 = vpop.f32.mrf.mxu0
  %1588 = vmatprep.mubr.f32.mxu0 0.0
  %1589 = vmatmul.mubr.f32.gmra.mxu0 %v1511
  %v1590 = vpop.f32.mrf.mxu0
  %v1591 = vadd.f32 %v1504, %v1590
  %v1592 = vpop.f32.mrf.mxu0
  %1593 = vmatprep.mubr.f32.mxu0 0.0
  %1594 = vmatmul.mubr.f32.gmra.mxu0 %v1514
  %v1595 = vpop.f32.mrf.mxu0
  %v1596 = vadd.f32 %v1504, %v1595
  %v1597 = vpop.f32.mrf.mxu0
  %1598 = vmatprep.mubr.f32.mxu0 0.0
  %1599 = vmatmul.mubr.f32.gmra.mxu0 %v1517
  %v1600 = vpop.f32.mrf.mxu0
  %v1601 = vadd.f32 %v1504, %v1600
  %v1602 = vpop.f32.mrf.mxu0
  %1603 = vdwg.mxu0
  %v1604 = vadd.f32 %v1380, %v1586
  %v1605 = vadd.f32 %v1381, %v1591
  %v1606 = vadd.f32 %v1382, %v1596
  %v1607 = vadd.f32 %v1383, %v1601
  %v1608 = vsel %vm38, %v1604, 0.0
  %1609 = vadd.xlane.f32.xlu0 %v1608
  %v1610 = vpop.xlane.xlu0 %1609
  %v1611 = vsel %vm38, %v1605, 0.0
  %1612 = vadd.xlane.f32.xlu0 %v1611
  %v1613 = vpop.xlane.xlu0 %1612
  %v1614 = vsel %vm38, %v1606, 0.0
  %1615 = vadd.xlane.f32.xlu0 %v1614
  %v1616 = vpop.xlane.xlu0 %1615
  %v1617 = vsel %vm38, %v1607, 0.0
  %1618 = vadd.xlane.f32.xlu0 %v1617
  %v1619 = vpop.xlane.xlu0 %1618
  %v1620 = vmul.f32 %v1610, %v1327
  %v1621 = vmul.f32 %v1613, %v1327
  %v1622 = vmul.f32 %v1616, %v1327
  %v1623 = vmul.f32 %v1619, %v1327
  %v1624 = vsub.f32 %v1604, %v1620
  %v1625 = vsub.f32 %v1605, %v1621
  %v1626 = vsub.f32 %v1606, %v1622
  %v1627 = vsub.f32 %v1607, %v1623
  %v1628 = vmul.f32 %v1624, %v1624
  %v1629 = vmul.f32 %v1625, %v1625
  %v1630 = vmul.f32 %v1626, %v1626
  %v1631 = vmul.f32 %v1627, %v1627
  %v1632 = vsel %vm38, %v1628, 0.0
  %1633 = vadd.xlane.f32.xlu0 %v1632
  %v1634 = vpop.xlane.xlu0 %1633
  %v1635 = vsel %vm38, %v1629, 0.0
  %1636 = vadd.xlane.f32.xlu0 %v1635
  %v1637 = vpop.xlane.xlu0 %1636
  %v1638 = vsel %vm38, %v1630, 0.0
  %1639 = vadd.xlane.f32.xlu0 %v1638
  %v1640 = vpop.xlane.xlu0 %1639
  %v1641 = vsel %vm38, %v1631, 0.0
  %1642 = vadd.xlane.f32.xlu0 %v1641
  %v1643 = vpop.xlane.xlu0 %1642
  %v1644 = vmul.f32 %v1634, %v1327
  %v1645 = vmul.f32 %v1637, %v1327
  %v1646 = vmul.f32 %v1640, %v1327
  %v1647 = vmul.f32 %v1643, %v1327
  %v1648 = vadd.f32 %v1644, 1e-05
  %v1649 = vadd.f32 %v1645, 1e-05
  %v1650 = vadd.f32 %v1646, 1e-05
  %v1651 = vadd.f32 %v1647, 1e-05
  %v1652 = vrsqrt.pop %v1648
  %v1653 = vrsqrt.pop %v1649
  %v1654 = vrsqrt.pop %v1650
  %v1655 = vrsqrt.pop %v1651
  %v1656 = vmul.f32 %v1624, %v1652
  %v1657 = vmul.f32 %v1625, %v1653
  %v1658 = vmul.f32 %v1626, %v1654
  %v1659 = vmul.f32 %v1627, %v1655
  %1660 = vrot.lane.b32.xlu0 %v1371, 64
  %v1661 = vpop.permute.xlu0 %1660
  %v1663 = vmul.f32 %v1656, %v1661
  %v1664 = vmul.f32 %v1657, %v1661
  %v1665 = vmul.f32 %v1658, %v1661
  %v1666 = vmul.f32 %v1659, %v1661
  %1667 = vrot.lane.b32.xlu0 %v1371, 32
  %v1668 = vpop.permute.xlu0 %1667
  %v1670 = vadd.f32 %v1663, %v1668
  %v1671 = vadd.f32 %v1664, %v1668
  %v1672 = vadd.f32 %v1665, %v1668
  %v1673 = vadd.f32 %v1666, %v1668
  %s1674 = scalar_lea.vmem %s2, 64
  %v1675 = vld [vmem:[%s1674] sm:$0xff]
  %v1676 = vld [vmem:[%s1674 + $0x8] sm:$0xff]
  %v1677 = vld [vmem:[%s1674 + $0x10] sm:$0xff]
  %v1678 = vld [vmem:[%s1674 + $0x18] sm:$0xff]
  %v1679 = vld [vmem:[%s1674 + $0x20] sm:$0xff]
  %v1680 = vld [vmem:[%s1674 + $0x28] sm:$0xff]
  %v1681 = vld [vmem:[%s1674 + $0x30] sm:$0xff]
  %v1682 = vld [vmem:[%s1674 + $0x38] sm:$0xff]
  %v1684 = vsel %vm38, %v1670, 0
  %v1687 = vsel %vm38, %v1671, 0
  %v1690 = vsel %vm38, %v1672, 0
  %v1693 = vsel %vm38, %v1673, 0
  %1695 = vmatprep.subr.mxu0 0.0
  %1696 = vmatpush1.msra.mxu0 0.0
  %1697 = vmatprep.subr.mxu0 0.0
  %1698 = vmatpush1.msra.mxu0 0.0
  %1699 = vmatprep.subr.mxu0 0.0
  %1700 = vmatpush1.msra.mxu0 0.0
  %1701 = vmatprep.subr.mxu0 0.0
  %1702 = vmatpush1.msra.mxu0 0.0
  %1703 = vmatprep.subr.mxu0 0.0
  %1704 = vmatpush1.msra.mxu0 0.0
  %1705 = vmatprep.subr.mxu0 0.0
  %1706 = vmatpush1.msra.mxu0 0.0
  %1707 = vmatprep.subr.mxu0 0.0
  %1708 = vmatpush1.msra.mxu0 0.0
  %1709 = vmatprep.subr.mxu0 0.0
  %1710 = vmatpush1.msra.mxu0 0.0
  %1711 = vmatprep.subr.mxu0 0.0
  %1712 = vmatpush1.msra.mxu0 0.0
  %1713 = vmatprep.subr.mxu0 0.0
  %1714 = vmatpush1.msra.mxu0 0.0
  %1715 = vmatprep.subr.mxu0 0.0
  %1716 = vmatpush1.msra.mxu0 0.0
  %1717 = vmatprep.subr.mxu0 0.0
  %1718 = vmatpush1.msra.mxu0 0.0
  %1719 = vmatprep.subr.mxu0 %v1682
  %1720 = vmatpush1.msra.mxu0 %v1681
  %1721 = vmatprep.subr.mxu0 %v1680
  %1722 = vmatpush1.msra.mxu0 %v1679
  %1723 = vmatprep.subr.mxu0 %v1678
  %1724 = vmatpush1.msra.mxu0 %v1677
  %1725 = vmatprep.subr.mxu0 %v1676
  %1726 = vmatpush1.msra.mxu0 %v1675
  %1727 = vmatprep.subr.mxu0 0.0
  %1728 = vmatpush2.msra.mxu0 0.0
  %1729 = vmatprep.subr.mxu0 0.0
  %1730 = vmatpush2.msra.mxu0 0.0
  %1731 = vmatprep.subr.mxu0 0.0
  %1732 = vmatpush2.msra.mxu0 0.0
  %1733 = vmatprep.subr.mxu0 0.0
  %1734 = vmatpush2.msra.mxu0 0.0
  %1735 = vmatprep.subr.mxu0 0.0
  %1736 = vmatpush2.msra.mxu0 0.0
  %1737 = vmatprep.subr.mxu0 0.0
  %1738 = vmatpush2.msra.mxu0 0.0
  %1739 = vmatprep.subr.mxu0 0.0
  %1740 = vmatpush2.msra.mxu0 0.0
  %1741 = vmatprep.subr.mxu0 0.0
  %1742 = vmatpush2.msra.mxu0 0.0
  %1743 = vmatprep.subr.mxu0 0.0
  %1744 = vmatpush2.msra.mxu0 0.0
  %1745 = vmatprep.subr.mxu0 0.0
  %1746 = vmatpush2.msra.mxu0 0.0
  %1747 = vmatprep.subr.mxu0 0.0
  %1748 = vmatpush2.msra.mxu0 0.0
  %1749 = vmatprep.subr.mxu0 0.0
  %1750 = vmatpush2.msra.mxu0 0.0
  %1751 = vmatprep.subr.mxu0 0.0
  %1752 = vmatpush2.msra.mxu0 0.0
  %1753 = vmatprep.subr.mxu0 0.0
  %1754 = vmatpush2.msra.mxu0 0.0
  %1755 = vmatprep.subr.mxu0 0.0
  %1756 = vmatpush2.msra.mxu0 0.0
  %1757 = vmatprep.subr.mxu0 0.0
  %1758 = vmatpush2.msra.mxu0 0.0
  %1759 = vmatprep.mubr.f32.mxu0 0.0
  %1760 = vmatmul.mubr.f32.gmra.mxu0 %v1684
  %v1761 = vpop.f32.mrf.mxu0
  %v1762 = vadd.f32 0.0, %v1761
  %v1763 = vpop.f32.mrf.mxu0
  %v1764 = vadd.f32 0.0, %v1763
  %1765 = vmatprep.mubr.f32.mxu0 0.0
  %1766 = vmatmul.mubr.f32.gmra.mxu0 %v1687
  %v1767 = vpop.f32.mrf.mxu0
  %v1768 = vadd.f32 0.0, %v1767
  %v1769 = vpop.f32.mrf.mxu0
  %v1770 = vadd.f32 0.0, %v1769
  %1771 = vmatprep.mubr.f32.mxu0 0.0
  %1772 = vmatmul.mubr.f32.gmra.mxu0 %v1690
  %v1773 = vpop.f32.mrf.mxu0
  %v1774 = vadd.f32 0.0, %v1773
  %v1775 = vpop.f32.mrf.mxu0
  %v1776 = vadd.f32 0.0, %v1775
  %1777 = vmatprep.mubr.f32.mxu0 0.0
  %1778 = vmatmul.mubr.f32.gmra.mxu0 %v1693
  %v1779 = vpop.f32.mrf.mxu0
  %v1780 = vadd.f32 0.0, %v1779
  %v1781 = vpop.f32.mrf.mxu0
  %v1782 = vadd.f32 0.0, %v1781
  %1783 = vdwg.mxu0
  %v1784 = vld [vmem:[%s6 + $0x3] sm:$0x1]
  %v1785 = vlaneseq
  %v1786 = vshrl.u32 %v1785, 7
  %v1787 = vsub.s32 0, %v1786
  %v1788 = vrot.slane %v1784, %v1787
  %v1789 = vadd.f32 %v1764, %v1788
  %v1790 = vadd.f32 %v1770, %v1788
  %v1791 = vadd.f32 %v1776, %v1788
  %v1792 = vadd.f32 %v1782, %v1788
  %s1793 = scalar_lea.vmem %s1, 32
  %v1794 = vld [vmem:[%s1793] sm:$0xff]
  %v1795 = vld [vmem:[%s1793 + $0x8] sm:$0xff]
  %v1796 = vld [vmem:[%s1793 + $0x10] sm:$0xff]
  %v1797 = vld [vmem:[%s1793 + $0x18] sm:$0xff]
  %1802 = vrot.lane.b32.xlu0 %v1789, 96
  %v1803 = vpop.permute.xlu0 %1802
  %1804 = vrot.lane.b32.xlu0 %v1790, 96
  %v1805 = vpop.permute.xlu0 %1804
  %1806 = vrot.lane.b32.xlu0 %v1791, 96
  %v1807 = vpop.permute.xlu0 %1806
  %1808 = vrot.lane.b32.xlu0 %v1792, 96
  %v1809 = vpop.permute.xlu0 %1808
  %v1810 = vsel %vm165, %v1789, 0
  %v1812 = vsel %vm165, %v1790, 0
  %v1814 = vsel %vm165, %v1791, 0
  %v1816 = vsel %vm165, %v1792, 0
  %v1818 = vsel %vm165, %v1803, 0
  %v1820 = vsel %vm165, %v1805, 0
  %v1822 = vsel %vm165, %v1807, 0
  %v1824 = vsel %vm165, %v1809, 0
  %1826 = vmatprep.subr.mxu0 0.0
  %1827 = vmatpush1.xpose.msra.mxu0 0.0
  %1828 = vmatprep.subr.mxu0 0.0
  %1829 = vmatpush1.xpose.msra.mxu0 0.0
  %1830 = vmatprep.subr.mxu0 0.0
  %1831 = vmatpush1.xpose.msra.mxu0 0.0
  %1832 = vmatprep.subr.mxu0 0.0
  %1833 = vmatpush1.xpose.msra.mxu0 0.0
  %1834 = vmatprep.subr.mxu0 0.0
  %1835 = vmatpush1.xpose.msra.mxu0 0.0
  %1836 = vmatprep.subr.mxu0 0.0
  %1837 = vmatpush1.xpose.msra.mxu0 0.0
  %1838 = vmatprep.subr.mxu0 0.0
  %1839 = vmatpush1.xpose.msra.mxu0 0.0
  %1840 = vmatprep.subr.mxu0 0.0
  %1841 = vmatpush1.xpose.msra.mxu0 0.0
  %1842 = vmatprep.subr.mxu0 0.0
  %1843 = vmatpush1.xpose.msra.mxu0 0.0
  %1844 = vmatprep.subr.mxu0 0.0
  %1845 = vmatpush1.xpose.msra.mxu0 0.0
  %1846 = vmatprep.subr.mxu0 0.0
  %1847 = vmatpush1.xpose.msra.mxu0 0.0
  %1848 = vmatprep.subr.mxu0 0.0
  %1849 = vmatpush1.xpose.msra.mxu0 0.0
  %1850 = vmatprep.subr.mxu0 0.0
  %1851 = vmatpush1.xpose.msra.mxu0 %v1824
  %1852 = vmatprep.subr.mxu0 0.0
  %1853 = vmatpush1.xpose.msra.mxu0 %v1822
  %1854 = vmatprep.subr.mxu0 0.0
  %1855 = vmatpush1.xpose.msra.mxu0 %v1820
  %1856 = vmatprep.subr.mxu0 0.0
  %1857 = vmatpush1.xpose.msra.mxu0 %v1818
  %1858 = vmatprep.subr.mxu0 0.0
  %1859 = vmatpush2.xpose.msra.mxu0 0.0
  %1860 = vmatprep.subr.mxu0 0.0
  %1861 = vmatpush2.xpose.msra.mxu0 0.0
  %1862 = vmatprep.subr.mxu0 0.0
  %1863 = vmatpush2.xpose.msra.mxu0 0.0
  %1864 = vmatprep.subr.mxu0 0.0
  %1865 = vmatpush2.xpose.msra.mxu0 0.0
  %1866 = vmatprep.subr.mxu0 0.0
  %1867 = vmatpush2.xpose.msra.mxu0 0.0
  %1868 = vmatprep.subr.mxu0 0.0
  %1869 = vmatpush2.xpose.msra.mxu0 0.0
  %1870 = vmatprep.subr.mxu0 0.0
  %1871 = vmatpush2.xpose.msra.mxu0 0.0
  %1872 = vmatprep.subr.mxu0 0.0
  %1873 = vmatpush2.xpose.msra.mxu0 0.0
  %1874 = vmatprep.subr.mxu0 0.0
  %1875 = vmatpush2.xpose.msra.mxu0 0.0
  %1876 = vmatprep.subr.mxu0 0.0
  %1877 = vmatpush2.xpose.msra.mxu0 0.0
  %1878 = vmatprep.subr.mxu0 0.0
  %1879 = vmatpush2.xpose.msra.mxu0 0.0
  %1880 = vmatprep.subr.mxu0 0.0
  %1881 = vmatpush2.xpose.msra.mxu0 0.0
  %1882 = vmatprep.subr.mxu0 0.0
  %1883 = vmatpush2.xpose.msra.mxu0 0.0
  %1884 = vmatprep.subr.mxu0 0.0
  %1885 = vmatpush2.xpose.msra.mxu0 0.0
  %1886 = vmatprep.subr.mxu0 0.0
  %1887 = vmatpush2.xpose.msra.mxu0 0.0
  %1888 = vmatprep.subr.mxu0 0.0
  %1889 = vmatpush2.xpose.msra.mxu0 0.0
  %1890 = vmatprep.mubr.f32.mxu0 0.0
  %1891 = vmatmul.mubr.f32.gmra.mxu0 %v1810
  %v1892 = vpop.f32.mrf.mxu0
  %v1893 = vadd.f32 %v1794, %v1892
  %v1894 = vpop.f32.mrf.mxu0
  %1895 = vmatprep.mubr.f32.mxu0 0.0
  %1896 = vmatmul.mubr.f32.gmra.mxu0 %v1812
  %v1897 = vpop.f32.mrf.mxu0
  %v1898 = vadd.f32 %v1795, %v1897
  %v1899 = vpop.f32.mrf.mxu0
  %1900 = vmatprep.mubr.f32.mxu0 0.0
  %1901 = vmatmul.mubr.f32.gmra.mxu0 %v1814
  %v1902 = vpop.f32.mrf.mxu0
  %v1903 = vadd.f32 %v1796, %v1902
  %v1904 = vpop.f32.mrf.mxu0
  %1905 = vmatprep.mubr.f32.mxu0 0.0
  %1906 = vmatmul.mubr.f32.gmra.mxu0 %v1816
  %v1907 = vpop.f32.mrf.mxu0
  %v1908 = vadd.f32 %v1797, %v1907
  %v1909 = vpop.f32.mrf.mxu0
  %1910 = vdwg.mxu0
  %v1911 = vmul.f32 %v1893, 1.442695
  %v1912 = vpow.pop %v1911
  %v1913 = vmul.f32 %v1898, 1.442695
  %v1914 = vpow.pop %v1913
  %v1915 = vmul.f32 %v1903, 1.442695
  %v1916 = vpow.pop %v1915
  %v1917 = vmul.f32 %v1908, 1.442695
  %v1918 = vpow.pop %v1917
  %v1919 = vsel %vm38, %v1912, 0.0
  %1920 = vadd.xlane.f32.xlu0 %v1919
  %v1921 = vpop.xlane.xlu0 %1920
  %v1922 = vsel %vm38, %v1914, 0.0
  %1923 = vadd.xlane.f32.xlu0 %v1922
  %v1924 = vpop.xlane.xlu0 %1923
  %v1925 = vsel %vm38, %v1916, 0.0
  %1926 = vadd.xlane.f32.xlu0 %v1925
  %v1927 = vpop.xlane.xlu0 %1926
  %v1928 = vsel %vm38, %v1918, 0.0
  %1929 = vadd.xlane.f32.xlu0 %v1928
  %v1930 = vpop.xlane.xlu0 %1929
  %v1931 = vrcp.pop %v1921
  %v1932 = vmul.f32 1.0, %v1931
  %v1933 = vrcp.pop %v1924
  %v1934 = vmul.f32 1.0, %v1933
  %v1935 = vrcp.pop %v1927
  %v1936 = vmul.f32 1.0, %v1935
  %v1937 = vrcp.pop %v1930
  %v1938 = vmul.f32 1.0, %v1937
  %v1939 = vmul.f32 %v1912, %v1932
  %v1940 = vmul.f32 %v1914, %v1934
  %v1941 = vmul.f32 %v1916, %v1936
  %v1942 = vmul.f32 %v1918, %v1938
  %v1944 = vsel %vm38, %v1939, 0
  %v1947 = vsel %vm38, %v1940, 0
  %v1950 = vsel %vm38, %v1941, 0
  %v1953 = vsel %vm38, %v1942, 0
  %1955 = vmatprep.subr.mxu0 0.0
  %1956 = vmatpush1.msra.mxu0 0.0
  %1957 = vmatprep.subr.mxu0 0.0
  %1958 = vmatpush1.msra.mxu0 0.0
  %1959 = vmatprep.subr.mxu0 0.0
  %1960 = vmatpush1.msra.mxu0 0.0
  %1961 = vmatprep.subr.mxu0 0.0
  %1962 = vmatpush1.msra.mxu0 0.0
  %1963 = vmatprep.subr.mxu0 0.0
  %1964 = vmatpush1.msra.mxu0 0.0
  %1965 = vmatprep.subr.mxu0 0.0
  %1966 = vmatpush1.msra.mxu0 0.0
  %1967 = vmatprep.subr.mxu0 0.0
  %1968 = vmatpush1.msra.mxu0 0.0
  %1969 = vmatprep.subr.mxu0 0.0
  %1970 = vmatpush1.msra.mxu0 0.0
  %1971 = vmatprep.subr.mxu0 0.0
  %1972 = vmatpush1.msra.mxu0 0.0
  %1973 = vmatprep.subr.mxu0 0.0
  %1974 = vmatpush1.msra.mxu0 0.0
  %1975 = vmatprep.subr.mxu0 0.0
  %1976 = vmatpush1.msra.mxu0 0.0
  %1977 = vmatprep.subr.mxu0 0.0
  %1978 = vmatpush1.msra.mxu0 0.0
  %1979 = vmatprep.subr.mxu0 0.0
  %1980 = vmatpush1.msra.mxu0 %v1780
  %1981 = vmatprep.subr.mxu0 0.0
  %1982 = vmatpush1.msra.mxu0 %v1774
  %1983 = vmatprep.subr.mxu0 0.0
  %1984 = vmatpush1.msra.mxu0 %v1768
  %1985 = vmatprep.subr.mxu0 0.0
  %1986 = vmatpush1.msra.mxu0 %v1762
  %1987 = vmatprep.subr.mxu0 0.0
  %1988 = vmatpush2.msra.mxu0 0.0
  %1989 = vmatprep.subr.mxu0 0.0
  %1990 = vmatpush2.msra.mxu0 0.0
  %1991 = vmatprep.subr.mxu0 0.0
  %1992 = vmatpush2.msra.mxu0 0.0
  %1993 = vmatprep.subr.mxu0 0.0
  %1994 = vmatpush2.msra.mxu0 0.0
  %1995 = vmatprep.subr.mxu0 0.0
  %1996 = vmatpush2.msra.mxu0 0.0
  %1997 = vmatprep.subr.mxu0 0.0
  %1998 = vmatpush2.msra.mxu0 0.0
  %1999 = vmatprep.subr.mxu0 0.0
  %2000 = vmatpush2.msra.mxu0 0.0
  %2001 = vmatprep.subr.mxu0 0.0
  %2002 = vmatpush2.msra.mxu0 0.0
  %2003 = vmatprep.subr.mxu0 0.0
  %2004 = vmatpush2.msra.mxu0 0.0
  %2005 = vmatprep.subr.mxu0 0.0
  %2006 = vmatpush2.msra.mxu0 0.0
  %2007 = vmatprep.subr.mxu0 0.0
  %2008 = vmatpush2.msra.mxu0 0.0
  %2009 = vmatprep.subr.mxu0 0.0
  %2010 = vmatpush2.msra.mxu0 0.0
  %2011 = vmatprep.subr.mxu0 0.0
  %2012 = vmatpush2.msra.mxu0 0.0
  %2013 = vmatprep.subr.mxu0 0.0
  %2014 = vmatpush2.msra.mxu0 0.0
  %2015 = vmatprep.subr.mxu0 0.0
  %2016 = vmatpush2.msra.mxu0 0.0
  %2017 = vmatprep.subr.mxu0 0.0
  %2018 = vmatpush2.msra.mxu0 0.0
  %2019 = vmatprep.mubr.f32.mxu0 0.0
  %2020 = vmatmul.mubr.f32.gmra.mxu0 %v1944
  %v2021 = vpop.f32.mrf.mxu0
  %v2022 = vadd.f32 0.0, %v2021
  %v2023 = vpop.f32.mrf.mxu0
  %2024 = vmatprep.mubr.f32.mxu0 0.0
  %2025 = vmatmul.mubr.f32.gmra.mxu0 %v1947
  %v2026 = vpop.f32.mrf.mxu0
  %v2027 = vadd.f32 0.0, %v2026
  %v2028 = vpop.f32.mrf.mxu0
  %2029 = vmatprep.mubr.f32.mxu0 0.0
  %2030 = vmatmul.mubr.f32.gmra.mxu0 %v1950
  %v2031 = vpop.f32.mrf.mxu0
  %v2032 = vadd.f32 0.0, %v2031
  %v2033 = vpop.f32.mrf.mxu0
  %2034 = vmatprep.mubr.f32.mxu0 0.0
  %2035 = vmatmul.mubr.f32.gmra.mxu0 %v1953
  %v2036 = vpop.f32.mrf.mxu0
  %v2037 = vadd.f32 0.0, %v2036
  %v2038 = vpop.f32.mrf.mxu0
  %2039 = vdwg.mxu0
  %2044 = vrot.lane.b32.xlu0 %v2022, 64
  %v2045 = vpop.permute.xlu0 %2044
  %2046 = vrot.lane.b32.xlu0 %v2027, 64
  %v2047 = vpop.permute.xlu0 %2046
  %2048 = vrot.lane.b32.xlu0 %v2032, 64
  %v2049 = vpop.permute.xlu0 %2048
  %2050 = vrot.lane.b32.xlu0 %v2037, 64
  %v2051 = vpop.permute.xlu0 %2050
  %v2056 = vadd.f32 %v1788, %v2045
  %v2057 = vadd.f32 %v1788, %v2047
  %v2058 = vadd.f32 %v1788, %v2049
  %v2059 = vadd.f32 %v1788, %v2051
  %2060 = vrot.lane.b32.xlu0 %v1789, 120
  %v2061 = vpop.permute.xlu0 %2060
  %2062 = vrot.lane.b32.xlu0 %v1790, 120
  %v2063 = vpop.permute.xlu0 %2062
  %2064 = vrot.lane.b32.xlu0 %v1791, 120
  %v2065 = vpop.permute.xlu0 %2064
  %2066 = vrot.lane.b32.xlu0 %v1792, 120
  %v2067 = vpop.permute.xlu0 %2066
  %2068 = vrot.lane.b32.xlu0 %v1789, 88
  %v2069 = vpop.permute.xlu0 %2068
  %2070 = vrot.lane.b32.xlu0 %v1790, 88
  %v2071 = vpop.permute.xlu0 %2070
  %2072 = vrot.lane.b32.xlu0 %v1791, 88
  %v2073 = vpop.permute.xlu0 %2072
  %2074 = vrot.lane.b32.xlu0 %v1792, 88
  %v2075 = vpop.permute.xlu0 %2074
  %2080 = vrot.lane.b32.xlu0 %v1794, 96
  %v2081 = vpop.permute.xlu0 %2080
  %2082 = vrot.lane.b32.xlu0 %v1795, 96
  %v2083 = vpop.permute.xlu0 %2082
  %2084 = vrot.lane.b32.xlu0 %v1796, 96
  %v2085 = vpop.permute.xlu0 %2084
  %2086 = vrot.lane.b32.xlu0 %v1797, 96
  %v2087 = vpop.permute.xlu0 %2086
  %v2092 = vsel %vm165, %v2061, 0
  %v2094 = vsel %vm165, %v2063, 0
  %v2096 = vsel %vm165, %v2065, 0
  %v2098 = vsel %vm165, %v2067, 0
  %v2100 = vsel %vm165, %v2069, 0
  %v2102 = vsel %vm165, %v2071, 0
  %v2104 = vsel %vm165, %v2073, 0
  %v2106 = vsel %vm165, %v2075, 0
  %2108 = vmatprep.subr.mxu0 0.0
  %2109 = vmatpush1.xpose.msra.mxu0 0.0
  %2110 = vmatprep.subr.mxu0 0.0
  %2111 = vmatpush1.xpose.msra.mxu0 0.0
  %2112 = vmatprep.subr.mxu0 0.0
  %2113 = vmatpush1.xpose.msra.mxu0 0.0
  %2114 = vmatprep.subr.mxu0 0.0
  %2115 = vmatpush1.xpose.msra.mxu0 0.0
  %2116 = vmatprep.subr.mxu0 0.0
  %2117 = vmatpush1.xpose.msra.mxu0 0.0
  %2118 = vmatprep.subr.mxu0 0.0
  %2119 = vmatpush1.xpose.msra.mxu0 0.0
  %2120 = vmatprep.subr.mxu0 0.0
  %2121 = vmatpush1.xpose.msra.mxu0 0.0
  %2122 = vmatprep.subr.mxu0 0.0
  %2123 = vmatpush1.xpose.msra.mxu0 0.0
  %2124 = vmatprep.subr.mxu0 0.0
  %2125 = vmatpush1.xpose.msra.mxu0 0.0
  %2126 = vmatprep.subr.mxu0 0.0
  %2127 = vmatpush1.xpose.msra.mxu0 0.0
  %2128 = vmatprep.subr.mxu0 0.0
  %2129 = vmatpush1.xpose.msra.mxu0 0.0
  %2130 = vmatprep.subr.mxu0 0.0
  %2131 = vmatpush1.xpose.msra.mxu0 0.0
  %2132 = vmatprep.subr.mxu0 0.0
  %2133 = vmatpush1.xpose.msra.mxu0 %v2106
  %2134 = vmatprep.subr.mxu0 0.0
  %2135 = vmatpush1.xpose.msra.mxu0 %v2104
  %2136 = vmatprep.subr.mxu0 0.0
  %2137 = vmatpush1.xpose.msra.mxu0 %v2102
  %2138 = vmatprep.subr.mxu0 0.0
  %2139 = vmatpush1.xpose.msra.mxu0 %v2100
  %2140 = vmatprep.subr.mxu0 0.0
  %2141 = vmatpush2.xpose.msra.mxu0 0.0
  %2142 = vmatprep.subr.mxu0 0.0
  %2143 = vmatpush2.xpose.msra.mxu0 0.0
  %2144 = vmatprep.subr.mxu0 0.0
  %2145 = vmatpush2.xpose.msra.mxu0 0.0
  %2146 = vmatprep.subr.mxu0 0.0
  %2147 = vmatpush2.xpose.msra.mxu0 0.0
  %2148 = vmatprep.subr.mxu0 0.0
  %2149 = vmatpush2.xpose.msra.mxu0 0.0
  %2150 = vmatprep.subr.mxu0 0.0
  %2151 = vmatpush2.xpose.msra.mxu0 0.0
  %2152 = vmatprep.subr.mxu0 0.0
  %2153 = vmatpush2.xpose.msra.mxu0 0.0
  %2154 = vmatprep.subr.mxu0 0.0
  %2155 = vmatpush2.xpose.msra.mxu0 0.0
  %2156 = vmatprep.subr.mxu0 0.0
  %2157 = vmatpush2.xpose.msra.mxu0 0.0
  %2158 = vmatprep.subr.mxu0 0.0
  %2159 = vmatpush2.xpose.msra.mxu0 0.0
  %2160 = vmatprep.subr.mxu0 0.0
  %2161 = vmatpush2.xpose.msra.mxu0 0.0
  %2162 = vmatprep.subr.mxu0 0.0
  %2163 = vmatpush2.xpose.msra.mxu0 0.0
  %2164 = vmatprep.subr.mxu0 0.0
  %2165 = vmatpush2.xpose.msra.mxu0 0.0
  %2166 = vmatprep.subr.mxu0 0.0
  %2167 = vmatpush2.xpose.msra.mxu0 0.0
  %2168 = vmatprep.subr.mxu0 0.0
  %2169 = vmatpush2.xpose.msra.mxu0 0.0
  %2170 = vmatprep.subr.mxu0 0.0
  %2171 = vmatpush2.xpose.msra.mxu0 0.0
  %2172 = vmatprep.mubr.f32.mxu0 0.0
  %2173 = vmatmul.mubr.f32.gmra.mxu0 %v2092
  %v2174 = vpop.f32.mrf.mxu0
  %v2175 = vadd.f32 %v2081, %v2174
  %v2176 = vpop.f32.mrf.mxu0
  %2177 = vmatprep.mubr.f32.mxu0 0.0
  %2178 = vmatmul.mubr.f32.gmra.mxu0 %v2094
  %v2179 = vpop.f32.mrf.mxu0
  %v2180 = vadd.f32 %v2083, %v2179
  %v2181 = vpop.f32.mrf.mxu0
  %2182 = vmatprep.mubr.f32.mxu0 0.0
  %2183 = vmatmul.mubr.f32.gmra.mxu0 %v2096
  %v2184 = vpop.f32.mrf.mxu0
  %v2185 = vadd.f32 %v2085, %v2184
  %v2186 = vpop.f32.mrf.mxu0
  %2187 = vmatprep.mubr.f32.mxu0 0.0
  %2188 = vmatmul.mubr.f32.gmra.mxu0 %v2098
  %v2189 = vpop.f32.mrf.mxu0
  %v2190 = vadd.f32 %v2087, %v2189
  %v2191 = vpop.f32.mrf.mxu0
  %2192 = vdwg.mxu0
  %v2193 = vmul.f32 %v2175, 1.442695
  %v2194 = vpow.pop %v2193
  %v2195 = vmul.f32 %v2180, 1.442695
  %v2196 = vpow.pop %v2195
  %v2197 = vmul.f32 %v2185, 1.442695
  %v2198 = vpow.pop %v2197
  %v2199 = vmul.f32 %v2190, 1.442695
  %v2200 = vpow.pop %v2199
  %v2201 = vsel %vm38, %v2194, 0.0
  %2202 = vadd.xlane.f32.xlu0 %v2201
  %v2203 = vpop.xlane.xlu0 %2202
  %v2204 = vsel %vm38, %v2196, 0.0
  %2205 = vadd.xlane.f32.xlu0 %v2204
  %v2206 = vpop.xlane.xlu0 %2205
  %v2207 = vsel %vm38, %v2198, 0.0
  %2208 = vadd.xlane.f32.xlu0 %v2207
  %v2209 = vpop.xlane.xlu0 %2208
  %v2210 = vsel %vm38, %v2200, 0.0
  %2211 = vadd.xlane.f32.xlu0 %v2210
  %v2212 = vpop.xlane.xlu0 %2211
  %v2213 = vrcp.pop %v2203
  %v2214 = vmul.f32 1.0, %v2213
  %v2215 = vrcp.pop %v2206
  %v2216 = vmul.f32 1.0, %v2215
  %v2217 = vrcp.pop %v2209
  %v2218 = vmul.f32 1.0, %v2217
  %v2219 = vrcp.pop %v2212
  %v2220 = vmul.f32 1.0, %v2219
  %v2221 = vmul.f32 %v2194, %v2214
  %v2222 = vmul.f32 %v2196, %v2216
  %v2223 = vmul.f32 %v2198, %v2218
  %v2224 = vmul.f32 %v2200, %v2220
  %2229 = vrot.lane.b32.xlu0 %v1762, 96
  %v2230 = vpop.permute.xlu0 %2229
  %2231 = vrot.lane.b32.xlu0 %v1768, 96
  %v2232 = vpop.permute.xlu0 %2231
  %2233 = vrot.lane.b32.xlu0 %v1774, 96
  %v2234 = vpop.permute.xlu0 %2233
  %2235 = vrot.lane.b32.xlu0 %v1780, 96
  %v2236 = vpop.permute.xlu0 %2235
  %v2242 = vsel %vm38, %v2221, 0
  %v2245 = vsel %vm38, %v2222, 0
  %v2248 = vsel %vm38, %v2223, 0
  %v2251 = vsel %vm38, %v2224, 0
  %2253 = vmatprep.subr.mxu0 0.0
  %2254 = vmatpush1.msra.mxu0 0.0
  %2255 = vmatprep.subr.mxu0 0.0
  %2256 = vmatpush1.msra.mxu0 0.0
  %2257 = vmatprep.subr.mxu0 0.0
  %2258 = vmatpush1.msra.mxu0 0.0
  %2259 = vmatprep.subr.mxu0 0.0
  %2260 = vmatpush1.msra.mxu0 0.0
  %2261 = vmatprep.subr.mxu0 0.0
  %2262 = vmatpush1.msra.mxu0 0.0
  %2263 = vmatprep.subr.mxu0 0.0
  %2264 = vmatpush1.msra.mxu0 0.0
  %2265 = vmatprep.subr.mxu0 0.0
  %2266 = vmatpush1.msra.mxu0 0.0
  %2267 = vmatprep.subr.mxu0 0.0
  %2268 = vmatpush1.msra.mxu0 0.0
  %2269 = vmatprep.subr.mxu0 0.0
  %2270 = vmatpush1.msra.mxu0 0.0
  %2271 = vmatprep.subr.mxu0 0.0
  %2272 = vmatpush1.msra.mxu0 0.0
  %2273 = vmatprep.subr.mxu0 0.0
  %2274 = vmatpush1.msra.mxu0 0.0
  %2275 = vmatprep.subr.mxu0 0.0
  %2276 = vmatpush1.msra.mxu0 0.0
  %2277 = vmatprep.subr.mxu0 0.0
  %2278 = vmatpush1.msra.mxu0 %v2236
  %2279 = vmatprep.subr.mxu0 0.0
  %2280 = vmatpush1.msra.mxu0 %v2234
  %2281 = vmatprep.subr.mxu0 0.0
  %2282 = vmatpush1.msra.mxu0 %v2232
  %2283 = vmatprep.subr.mxu0 0.0
  %2284 = vmatpush1.msra.mxu0 %v2230
  %2285 = vmatprep.subr.mxu0 0.0
  %2286 = vmatpush2.msra.mxu0 0.0
  %2287 = vmatprep.subr.mxu0 0.0
  %2288 = vmatpush2.msra.mxu0 0.0
  %2289 = vmatprep.subr.mxu0 0.0
  %2290 = vmatpush2.msra.mxu0 0.0
  %2291 = vmatprep.subr.mxu0 0.0
  %2292 = vmatpush2.msra.mxu0 0.0
  %2293 = vmatprep.subr.mxu0 0.0
  %2294 = vmatpush2.msra.mxu0 0.0
  %2295 = vmatprep.subr.mxu0 0.0
  %2296 = vmatpush2.msra.mxu0 0.0
  %2297 = vmatprep.subr.mxu0 0.0
  %2298 = vmatpush2.msra.mxu0 0.0
  %2299 = vmatprep.subr.mxu0 0.0
  %2300 = vmatpush2.msra.mxu0 0.0
  %2301 = vmatprep.subr.mxu0 0.0
  %2302 = vmatpush2.msra.mxu0 0.0
  %2303 = vmatprep.subr.mxu0 0.0
  %2304 = vmatpush2.msra.mxu0 0.0
  %2305 = vmatprep.subr.mxu0 0.0
  %2306 = vmatpush2.msra.mxu0 0.0
  %2307 = vmatprep.subr.mxu0 0.0
  %2308 = vmatpush2.msra.mxu0 0.0
  %2309 = vmatprep.subr.mxu0 0.0
  %2310 = vmatpush2.msra.mxu0 0.0
  %2311 = vmatprep.subr.mxu0 0.0
  %2312 = vmatpush2.msra.mxu0 0.0
  %2313 = vmatprep.subr.mxu0 0.0
  %2314 = vmatpush2.msra.mxu0 0.0
  %2315 = vmatprep.subr.mxu0 0.0
  %2316 = vmatpush2.msra.mxu0 0.0
  %2317 = vmatprep.mubr.f32.mxu0 0.0
  %2318 = vmatmul.mubr.f32.gmra.mxu0 %v2242
  %v2319 = vpop.f32.mrf.mxu0
  %v2320 = vadd.f32 0.0, %v2319
  %v2321 = vpop.f32.mrf.mxu0
  %2322 = vmatprep.mubr.f32.mxu0 0.0
  %2323 = vmatmul.mubr.f32.gmra.mxu0 %v2245
  %v2324 = vpop.f32.mrf.mxu0
  %v2325 = vadd.f32 0.0, %v2324
  %v2326 = vpop.f32.mrf.mxu0
  %2327 = vmatprep.mubr.f32.mxu0 0.0
  %2328 = vmatmul.mubr.f32.gmra.mxu0 %v2248
  %v2329 = vpop.f32.mrf.mxu0
  %v2330 = vadd.f32 0.0, %v2329
  %v2331 = vpop.f32.mrf.mxu0
  %2332 = vmatprep.mubr.f32.mxu0 0.0
  %2333 = vmatmul.mubr.f32.gmra.mxu0 %v2251
  %v2334 = vpop.f32.mrf.mxu0
  %v2335 = vadd.f32 0.0, %v2334
  %v2336 = vpop.f32.mrf.mxu0
  %2337 = vdwg.mxu0
  %2342 = vrot.lane.b32.xlu0 %v2320, 64
  %v2343 = vpop.permute.xlu0 %2342
  %2344 = vrot.lane.b32.xlu0 %v2325, 64
  %v2345 = vpop.permute.xlu0 %2344
  %2346 = vrot.lane.b32.xlu0 %v2330, 64
  %v2347 = vpop.permute.xlu0 %2346
  %2348 = vrot.lane.b32.xlu0 %v2335, 64
  %v2349 = vpop.permute.xlu0 %2348
  %v2354 = vadd.f32 %v2056, %v2343
  %v2355 = vadd.f32 %v2057, %v2345
  %v2356 = vadd.f32 %v2058, %v2347
  %v2357 = vadd.f32 %v2059, %v2349
  %2358 = vrot.lane.b32.xlu0 %v1789, 112
  %v2359 = vpop.permute.xlu0 %2358
  %2360 = vrot.lane.b32.xlu0 %v1790, 112
  %v2361 = vpop.permute.xlu0 %2360
  %2362 = vrot.lane.b32.xlu0 %v1791, 112
  %v2363 = vpop.permute.xlu0 %2362
  %2364 = vrot.lane.b32.xlu0 %v1792, 112
  %v2365 = vpop.permute.xlu0 %2364
  %2366 = vrot.lane.b32.xlu0 %v1789, 80
  %v2367 = vpop.permute.xlu0 %2366
  %2368 = vrot.lane.b32.xlu0 %v1790, 80
  %v2369 = vpop.permute.xlu0 %2368
  %2370 = vrot.lane.b32.xlu0 %v1791, 80
  %v2371 = vpop.permute.xlu0 %2370
  %2372 = vrot.lane.b32.xlu0 %v1792, 80
  %v2373 = vpop.permute.xlu0 %2372
  %2374 = vrot.lane.b32.xlu0 %v1794, 64
  %v2375 = vpop.permute.xlu0 %2374
  %2376 = vrot.lane.b32.xlu0 %v1795, 64
  %v2377 = vpop.permute.xlu0 %2376
  %2378 = vrot.lane.b32.xlu0 %v1796, 64
  %v2379 = vpop.permute.xlu0 %2378
  %2380 = vrot.lane.b32.xlu0 %v1797, 64
  %v2381 = vpop.permute.xlu0 %2380
  %v2386 = vsel %vm165, %v2359, 0
  %v2388 = vsel %vm165, %v2361, 0
  %v2390 = vsel %vm165, %v2363, 0
  %v2392 = vsel %vm165, %v2365, 0
  %v2394 = vsel %vm165, %v2367, 0
  %v2396 = vsel %vm165, %v2369, 0
  %v2398 = vsel %vm165, %v2371, 0
  %v2400 = vsel %vm165, %v2373, 0
  %2402 = vmatprep.subr.mxu0 0.0
  %2403 = vmatpush1.xpose.msra.mxu0 0.0
  %2404 = vmatprep.subr.mxu0 0.0
  %2405 = vmatpush1.xpose.msra.mxu0 0.0
  %2406 = vmatprep.subr.mxu0 0.0
  %2407 = vmatpush1.xpose.msra.mxu0 0.0
  %2408 = vmatprep.subr.mxu0 0.0
  %2409 = vmatpush1.xpose.msra.mxu0 0.0
  %2410 = vmatprep.subr.mxu0 0.0
  %2411 = vmatpush1.xpose.msra.mxu0 0.0
  %2412 = vmatprep.subr.mxu0 0.0
  %2413 = vmatpush1.xpose.msra.mxu0 0.0
  %2414 = vmatprep.subr.mxu0 0.0
  %2415 = vmatpush1.xpose.msra.mxu0 0.0
  %2416 = vmatprep.subr.mxu0 0.0
  %2417 = vmatpush1.xpose.msra.mxu0 0.0
  %2418 = vmatprep.subr.mxu0 0.0
  %2419 = vmatpush1.xpose.msra.mxu0 0.0
  %2420 = vmatprep.subr.mxu0 0.0
  %2421 = vmatpush1.xpose.msra.mxu0 0.0
  %2422 = vmatprep.subr.mxu0 0.0
  %2423 = vmatpush1.xpose.msra.mxu0 0.0
  %2424 = vmatprep.subr.mxu0 0.0
  %2425 = vmatpush1.xpose.msra.mxu0 0.0
  %2426 = vmatprep.subr.mxu0 0.0
  %2427 = vmatpush1.xpose.msra.mxu0 %v2400
  %2428 = vmatprep.subr.mxu0 0.0
  %2429 = vmatpush1.xpose.msra.mxu0 %v2398
  %2430 = vmatprep.subr.mxu0 0.0
  %2431 = vmatpush1.xpose.msra.mxu0 %v2396
  %2432 = vmatprep.subr.mxu0 0.0
  %2433 = vmatpush1.xpose.msra.mxu0 %v2394
  %2434 = vmatprep.subr.mxu0 0.0
  %2435 = vmatpush2.xpose.msra.mxu0 0.0
  %2436 = vmatprep.subr.mxu0 0.0
  %2437 = vmatpush2.xpose.msra.mxu0 0.0
  %2438 = vmatprep.subr.mxu0 0.0
  %2439 = vmatpush2.xpose.msra.mxu0 0.0
  %2440 = vmatprep.subr.mxu0 0.0
  %2441 = vmatpush2.xpose.msra.mxu0 0.0
  %2442 = vmatprep.subr.mxu0 0.0
  %2443 = vmatpush2.xpose.msra.mxu0 0.0
  %2444 = vmatprep.subr.mxu0 0.0
  %2445 = vmatpush2.xpose.msra.mxu0 0.0
  %2446 = vmatprep.subr.mxu0 0.0
  %2447 = vmatpush2.xpose.msra.mxu0 0.0
  %2448 = vmatprep.subr.mxu0 0.0
  %2449 = vmatpush2.xpose.msra.mxu0 0.0
  %2450 = vmatprep.subr.mxu0 0.0
  %2451 = vmatpush2.xpose.msra.mxu0 0.0
  %2452 = vmatprep.subr.mxu0 0.0
  %2453 = vmatpush2.xpose.msra.mxu0 0.0
  %2454 = vmatprep.subr.mxu0 0.0
  %2455 = vmatpush2.xpose.msra.mxu0 0.0
  %2456 = vmatprep.subr.mxu0 0.0
  %2457 = vmatpush2.xpose.msra.mxu0 0.0
  %2458 = vmatprep.subr.mxu0 0.0
  %2459 = vmatpush2.xpose.msra.mxu0 0.0
  %2460 = vmatprep.subr.mxu0 0.0
  %2461 = vmatpush2.xpose.msra.mxu0 0.0
  %2462 = vmatprep.subr.mxu0 0.0
  %2463 = vmatpush2.xpose.msra.mxu0 0.0
  %2464 = vmatprep.subr.mxu0 0.0
  %2465 = vmatpush2.xpose.msra.mxu0 0.0
  %2466 = vmatprep.mubr.f32.mxu0 0.0
  %2467 = vmatmul.mubr.f32.gmra.mxu0 %v2386
  %v2468 = vpop.f32.mrf.mxu0
  %v2469 = vadd.f32 %v2375, %v2468
  %v2470 = vpop.f32.mrf.mxu0
  %2471 = vmatprep.mubr.f32.mxu0 0.0
  %2472 = vmatmul.mubr.f32.gmra.mxu0 %v2388
  %v2473 = vpop.f32.mrf.mxu0
  %v2474 = vadd.f32 %v2377, %v2473
  %v2475 = vpop.f32.mrf.mxu0
  %2476 = vmatprep.mubr.f32.mxu0 0.0
  %2477 = vmatmul.mubr.f32.gmra.mxu0 %v2390
  %v2478 = vpop.f32.mrf.mxu0
  %v2479 = vadd.f32 %v2379, %v2478
  %v2480 = vpop.f32.mrf.mxu0
  %2481 = vmatprep.mubr.f32.mxu0 0.0
  %2482 = vmatmul.mubr.f32.gmra.mxu0 %v2392
  %v2483 = vpop.f32.mrf.mxu0
  %v2484 = vadd.f32 %v2381, %v2483
  %v2485 = vpop.f32.mrf.mxu0
  %2486 = vdwg.mxu0
  %v2487 = vmul.f32 %v2469, 1.442695
  %v2488 = vpow.pop %v2487
  %v2489 = vmul.f32 %v2474, 1.442695
  %v2490 = vpow.pop %v2489
  %v2491 = vmul.f32 %v2479, 1.442695
  %v2492 = vpow.pop %v2491
  %v2493 = vmul.f32 %v2484, 1.442695
  %v2494 = vpow.pop %v2493
  %v2495 = vsel %vm38, %v2488, 0.0
  %2496 = vadd.xlane.f32.xlu0 %v2495
  %v2497 = vpop.xlane.xlu0 %2496
  %v2498 = vsel %vm38, %v2490, 0.0
  %2499 = vadd.xlane.f32.xlu0 %v2498
  %v2500 = vpop.xlane.xlu0 %2499
  %v2501 = vsel %vm38, %v2492, 0.0
  %2502 = vadd.xlane.f32.xlu0 %v2501
  %v2503 = vpop.xlane.xlu0 %2502
  %v2504 = vsel %vm38, %v2494, 0.0
  %2505 = vadd.xlane.f32.xlu0 %v2504
  %v2506 = vpop.xlane.xlu0 %2505
  %v2507 = vrcp.pop %v2497
  %v2508 = vmul.f32 1.0, %v2507
  %v2509 = vrcp.pop %v2500
  %v2510 = vmul.f32 1.0, %v2509
  %v2511 = vrcp.pop %v2503
  %v2512 = vmul.f32 1.0, %v2511
  %v2513 = vrcp.pop %v2506
  %v2514 = vmul.f32 1.0, %v2513
  %v2515 = vmul.f32 %v2488, %v2508
  %v2516 = vmul.f32 %v2490, %v2510
  %v2517 = vmul.f32 %v2492, %v2512
  %v2518 = vmul.f32 %v2494, %v2514
  %2519 = vrot.lane.b32.xlu0 %v1762, 64
  %v2520 = vpop.permute.xlu0 %2519
  %2521 = vrot.lane.b32.xlu0 %v1768, 64
  %v2522 = vpop.permute.xlu0 %2521
  %2523 = vrot.lane.b32.xlu0 %v1774, 64
  %v2524 = vpop.permute.xlu0 %2523
  %2525 = vrot.lane.b32.xlu0 %v1780, 64
  %v2526 = vpop.permute.xlu0 %2525
  %v2532 = vsel %vm38, %v2515, 0
  %v2535 = vsel %vm38, %v2516, 0
  %v2538 = vsel %vm38, %v2517, 0
  %v2541 = vsel %vm38, %v2518, 0
  %2543 = vmatprep.subr.mxu0 0.0
  %2544 = vmatpush1.msra.mxu0 0.0
  %2545 = vmatprep.subr.mxu0 0.0
  %2546 = vmatpush1.msra.mxu0 0.0
  %2547 = vmatprep.subr.mxu0 0.0
  %2548 = vmatpush1.msra.mxu0 0.0
  %2549 = vmatprep.subr.mxu0 0.0
  %2550 = vmatpush1.msra.mxu0 0.0
  %2551 = vmatprep.subr.mxu0 0.0
  %2552 = vmatpush1.msra.mxu0 0.0
  %2553 = vmatprep.subr.mxu0 0.0
  %2554 = vmatpush1.msra.mxu0 0.0
  %2555 = vmatprep.subr.mxu0 0.0
  %2556 = vmatpush1.msra.mxu0 0.0
  %2557 = vmatprep.subr.mxu0 0.0
  %2558 = vmatpush1.msra.mxu0 0.0
  %2559 = vmatprep.subr.mxu0 0.0
  %2560 = vmatpush1.msra.mxu0 0.0
  %2561 = vmatprep.subr.mxu0 0.0
  %2562 = vmatpush1.msra.mxu0 0.0
  %2563 = vmatprep.subr.mxu0 0.0
  %2564 = vmatpush1.msra.mxu0 0.0
  %2565 = vmatprep.subr.mxu0 0.0
  %2566 = vmatpush1.msra.mxu0 0.0
  %2567 = vmatprep.subr.mxu0 0.0
  %2568 = vmatpush1.msra.mxu0 %v2526
  %2569 = vmatprep.subr.mxu0 0.0
  %2570 = vmatpush1.msra.mxu0 %v2524
  %2571 = vmatprep.subr.mxu0 0.0
  %2572 = vmatpush1.msra.mxu0 %v2522
  %2573 = vmatprep.subr.mxu0 0.0
  %2574 = vmatpush1.msra.mxu0 %v2520
  %2575 = vmatprep.subr.mxu0 0.0
  %2576 = vmatpush2.msra.mxu0 0.0
  %2577 = vmatprep.subr.mxu0 0.0
  %2578 = vmatpush2.msra.mxu0 0.0
  %2579 = vmatprep.subr.mxu0 0.0
  %2580 = vmatpush2.msra.mxu0 0.0
  %2581 = vmatprep.subr.mxu0 0.0
  %2582 = vmatpush2.msra.mxu0 0.0
  %2583 = vmatprep.subr.mxu0 0.0
  %2584 = vmatpush2.msra.mxu0 0.0
  %2585 = vmatprep.subr.mxu0 0.0
  %2586 = vmatpush2.msra.mxu0 0.0
  %2587 = vmatprep.subr.mxu0 0.0
  %2588 = vmatpush2.msra.mxu0 0.0
  %2589 = vmatprep.subr.mxu0 0.0
  %2590 = vmatpush2.msra.mxu0 0.0
  %2591 = vmatprep.subr.mxu0 0.0
  %2592 = vmatpush2.msra.mxu0 0.0
  %2593 = vmatprep.subr.mxu0 0.0
  %2594 = vmatpush2.msra.mxu0 0.0
  %2595 = vmatprep.subr.mxu0 0.0
  %2596 = vmatpush2.msra.mxu0 0.0
  %2597 = vmatprep.subr.mxu0 0.0
  %2598 = vmatpush2.msra.mxu0 0.0
  %2599 = vmatprep.subr.mxu0 0.0
  %2600 = vmatpush2.msra.mxu0 0.0
  %2601 = vmatprep.subr.mxu0 0.0
  %2602 = vmatpush2.msra.mxu0 0.0
  %2603 = vmatprep.subr.mxu0 0.0
  %2604 = vmatpush2.msra.mxu0 0.0
  %2605 = vmatprep.subr.mxu0 0.0
  %2606 = vmatpush2.msra.mxu0 0.0
  %2607 = vmatprep.mubr.f32.mxu0 0.0
  %2608 = vmatmul.mubr.f32.gmra.mxu0 %v2532
  %v2609 = vpop.f32.mrf.mxu0
  %v2610 = vadd.f32 0.0, %v2609
  %v2611 = vpop.f32.mrf.mxu0
  %2612 = vmatprep.mubr.f32.mxu0 0.0
  %2613 = vmatmul.mubr.f32.gmra.mxu0 %v2535
  %v2614 = vpop.f32.mrf.mxu0
  %v2615 = vadd.f32 0.0, %v2614
  %v2616 = vpop.f32.mrf.mxu0
  %2617 = vmatprep.mubr.f32.mxu0 0.0
  %2618 = vmatmul.mubr.f32.gmra.mxu0 %v2538
  %v2619 = vpop.f32.mrf.mxu0
  %v2620 = vadd.f32 0.0, %v2619
  %v2621 = vpop.f32.mrf.mxu0
  %2622 = vmatprep.mubr.f32.mxu0 0.0
  %2623 = vmatmul.mubr.f32.gmra.mxu0 %v2541
  %v2624 = vpop.f32.mrf.mxu0
  %v2625 = vadd.f32 0.0, %v2624
  %v2626 = vpop.f32.mrf.mxu0
  %2627 = vdwg.mxu0
  %2632 = vrot.lane.b32.xlu0 %v2610, 64
  %v2633 = vpop.permute.xlu0 %2632
  %2634 = vrot.lane.b32.xlu0 %v2615, 64
  %v2635 = vpop.permute.xlu0 %2634
  %2636 = vrot.lane.b32.xlu0 %v2620, 64
  %v2637 = vpop.permute.xlu0 %2636
  %2638 = vrot.lane.b32.xlu0 %v2625, 64
  %v2639 = vpop.permute.xlu0 %2638
  %v2644 = vadd.f32 %v2354, %v2633
  %v2645 = vadd.f32 %v2355, %v2635
  %v2646 = vadd.f32 %v2356, %v2637
  %v2647 = vadd.f32 %v2357, %v2639
  %2648 = vrot.lane.b32.xlu0 %v1789, 104
  %v2649 = vpop.permute.xlu0 %2648
  %2650 = vrot.lane.b32.xlu0 %v1790, 104
  %v2651 = vpop.permute.xlu0 %2650
  %2652 = vrot.lane.b32.xlu0 %v1791, 104
  %v2653 = vpop.permute.xlu0 %2652
  %2654 = vrot.lane.b32.xlu0 %v1792, 104
  %v2655 = vpop.permute.xlu0 %2654
  %2656 = vrot.lane.b32.xlu0 %v1789, 72
  %v2657 = vpop.permute.xlu0 %2656
  %2658 = vrot.lane.b32.xlu0 %v1790, 72
  %v2659 = vpop.permute.xlu0 %2658
  %2660 = vrot.lane.b32.xlu0 %v1791, 72
  %v2661 = vpop.permute.xlu0 %2660
  %2662 = vrot.lane.b32.xlu0 %v1792, 72
  %v2663 = vpop.permute.xlu0 %2662
  %2664 = vrot.lane.b32.xlu0 %v1794, 32
  %v2665 = vpop.permute.xlu0 %2664
  %2666 = vrot.lane.b32.xlu0 %v1795, 32
  %v2667 = vpop.permute.xlu0 %2666
  %2668 = vrot.lane.b32.xlu0 %v1796, 32
  %v2669 = vpop.permute.xlu0 %2668
  %2670 = vrot.lane.b32.xlu0 %v1797, 32
  %v2671 = vpop.permute.xlu0 %2670
  %v2676 = vsel %vm165, %v2649, 0
  %v2678 = vsel %vm165, %v2651, 0
  %v2680 = vsel %vm165, %v2653, 0
  %v2682 = vsel %vm165, %v2655, 0
  %v2684 = vsel %vm165, %v2657, 0
  %v2686 = vsel %vm165, %v2659, 0
  %v2688 = vsel %vm165, %v2661, 0
  %v2690 = vsel %vm165, %v2663, 0
  %2692 = vmatprep.subr.mxu0 0.0
  %2693 = vmatpush1.xpose.msra.mxu0 0.0
  %2694 = vmatprep.subr.mxu0 0.0
  %2695 = vmatpush1.xpose.msra.mxu0 0.0
  %2696 = vmatprep.subr.mxu0 0.0
  %2697 = vmatpush1.xpose.msra.mxu0 0.0
  %2698 = vmatprep.subr.mxu0 0.0
  %2699 = vmatpush1.xpose.msra.mxu0 0.0
  %2700 = vmatprep.subr.mxu0 0.0
  %2701 = vmatpush1.xpose.msra.mxu0 0.0
  %2702 = vmatprep.subr.mxu0 0.0
  %2703 = vmatpush1.xpose.msra.mxu0 0.0
  %2704 = vmatprep.subr.mxu0 0.0
  %2705 = vmatpush1.xpose.msra.mxu0 0.0
  %2706 = vmatprep.subr.mxu0 0.0
  %2707 = vmatpush1.xpose.msra.mxu0 0.0
  %2708 = vmatprep.subr.mxu0 0.0
  %2709 = vmatpush1.xpose.msra.mxu0 0.0
  %2710 = vmatprep.subr.mxu0 0.0
  %2711 = vmatpush1.xpose.msra.mxu0 0.0
  %2712 = vmatprep.subr.mxu0 0.0
  %2713 = vmatpush1.xpose.msra.mxu0 0.0
  %2714 = vmatprep.subr.mxu0 0.0
  %2715 = vmatpush1.xpose.msra.mxu0 0.0
  %2716 = vmatprep.subr.mxu0 0.0
  %2717 = vmatpush1.xpose.msra.mxu0 %v2690
  %2718 = vmatprep.subr.mxu0 0.0
  %2719 = vmatpush1.xpose.msra.mxu0 %v2688
  %2720 = vmatprep.subr.mxu0 0.0
  %2721 = vmatpush1.xpose.msra.mxu0 %v2686
  %2722 = vmatprep.subr.mxu0 0.0
  %2723 = vmatpush1.xpose.msra.mxu0 %v2684
  %2724 = vmatprep.subr.mxu0 0.0
  %2725 = vmatpush2.xpose.msra.mxu0 0.0
  %2726 = vmatprep.subr.mxu0 0.0
  %2727 = vmatpush2.xpose.msra.mxu0 0.0
  %2728 = vmatprep.subr.mxu0 0.0
  %2729 = vmatpush2.xpose.msra.mxu0 0.0
  %2730 = vmatprep.subr.mxu0 0.0
  %2731 = vmatpush2.xpose.msra.mxu0 0.0
  %2732 = vmatprep.subr.mxu0 0.0
  %2733 = vmatpush2.xpose.msra.mxu0 0.0
  %2734 = vmatprep.subr.mxu0 0.0
  %2735 = vmatpush2.xpose.msra.mxu0 0.0
  %2736 = vmatprep.subr.mxu0 0.0
  %2737 = vmatpush2.xpose.msra.mxu0 0.0
  %2738 = vmatprep.subr.mxu0 0.0
  %2739 = vmatpush2.xpose.msra.mxu0 0.0
  %2740 = vmatprep.subr.mxu0 0.0
  %2741 = vmatpush2.xpose.msra.mxu0 0.0
  %2742 = vmatprep.subr.mxu0 0.0
  %2743 = vmatpush2.xpose.msra.mxu0 0.0
  %2744 = vmatprep.subr.mxu0 0.0
  %2745 = vmatpush2.xpose.msra.mxu0 0.0
  %2746 = vmatprep.subr.mxu0 0.0
  %2747 = vmatpush2.xpose.msra.mxu0 0.0
  %2748 = vmatprep.subr.mxu0 0.0
  %2749 = vmatpush2.xpose.msra.mxu0 0.0
  %2750 = vmatprep.subr.mxu0 0.0
  %2751 = vmatpush2.xpose.msra.mxu0 0.0
  %2752 = vmatprep.subr.mxu0 0.0
  %2753 = vmatpush2.xpose.msra.mxu0 0.0
  %2754 = vmatprep.subr.mxu0 0.0
  %2755 = vmatpush2.xpose.msra.mxu0 0.0
  %2756 = vmatprep.mubr.f32.mxu0 0.0
  %2757 = vmatmul.mubr.f32.gmra.mxu0 %v2676
  %v2758 = vpop.f32.mrf.mxu0
  %v2759 = vadd.f32 %v2665, %v2758
  %v2760 = vpop.f32.mrf.mxu0
  %2761 = vmatprep.mubr.f32.mxu0 0.0
  %2762 = vmatmul.mubr.f32.gmra.mxu0 %v2678
  %v2763 = vpop.f32.mrf.mxu0
  %v2764 = vadd.f32 %v2667, %v2763
  %v2765 = vpop.f32.mrf.mxu0
  %2766 = vmatprep.mubr.f32.mxu0 0.0
  %2767 = vmatmul.mubr.f32.gmra.mxu0 %v2680
  %v2768 = vpop.f32.mrf.mxu0
  %v2769 = vadd.f32 %v2669, %v2768
  %v2770 = vpop.f32.mrf.mxu0
  %2771 = vmatprep.mubr.f32.mxu0 0.0
  %2772 = vmatmul.mubr.f32.gmra.mxu0 %v2682
  %v2773 = vpop.f32.mrf.mxu0
  %v2774 = vadd.f32 %v2671, %v2773
  %v2775 = vpop.f32.mrf.mxu0
  %2776 = vdwg.mxu0
  %v2777 = vmul.f32 %v2759, 1.442695
  %v2778 = vpow.pop %v2777
  %v2779 = vmul.f32 %v2764, 1.442695
  %v2780 = vpow.pop %v2779
  %v2781 = vmul.f32 %v2769, 1.442695
  %v2782 = vpow.pop %v2781
  %v2783 = vmul.f32 %v2774, 1.442695
  %v2784 = vpow.pop %v2783
  %v2785 = vsel %vm38, %v2778, 0.0
  %2786 = vadd.xlane.f32.xlu0 %v2785
  %v2787 = vpop.xlane.xlu0 %2786
  %v2788 = vsel %vm38, %v2780, 0.0
  %2789 = vadd.xlane.f32.xlu0 %v2788
  %v2790 = vpop.xlane.xlu0 %2789
  %v2791 = vsel %vm38, %v2782, 0.0
  %2792 = vadd.xlane.f32.xlu0 %v2791
  %v2793 = vpop.xlane.xlu0 %2792
  %v2794 = vsel %vm38, %v2784, 0.0
  %2795 = vadd.xlane.f32.xlu0 %v2794
  %v2796 = vpop.xlane.xlu0 %2795
  %v2797 = vrcp.pop %v2787
  %v2798 = vmul.f32 1.0, %v2797
  %v2799 = vrcp.pop %v2790
  %v2800 = vmul.f32 1.0, %v2799
  %v2801 = vrcp.pop %v2793
  %v2802 = vmul.f32 1.0, %v2801
  %v2803 = vrcp.pop %v2796
  %v2804 = vmul.f32 1.0, %v2803
  %v2805 = vmul.f32 %v2778, %v2798
  %v2806 = vmul.f32 %v2780, %v2800
  %v2807 = vmul.f32 %v2782, %v2802
  %v2808 = vmul.f32 %v2784, %v2804
  %2809 = vrot.lane.b32.xlu0 %v1762, 32
  %v2810 = vpop.permute.xlu0 %2809
  %2811 = vrot.lane.b32.xlu0 %v1768, 32
  %v2812 = vpop.permute.xlu0 %2811
  %2813 = vrot.lane.b32.xlu0 %v1774, 32
  %v2814 = vpop.permute.xlu0 %2813
  %2815 = vrot.lane.b32.xlu0 %v1780, 32
  %v2816 = vpop.permute.xlu0 %2815
  %v2822 = vsel %vm38, %v2805, 0
  %v2825 = vsel %vm38, %v2806, 0
  %v2828 = vsel %vm38, %v2807, 0
  %v2831 = vsel %vm38, %v2808, 0
  %2833 = vmatprep.subr.mxu0 0.0
  %2834 = vmatpush1.msra.mxu0 0.0
  %2835 = vmatprep.subr.mxu0 0.0
  %2836 = vmatpush1.msra.mxu0 0.0
  %2837 = vmatprep.subr.mxu0 0.0
  %2838 = vmatpush1.msra.mxu0 0.0
  %2839 = vmatprep.subr.mxu0 0.0
  %2840 = vmatpush1.msra.mxu0 0.0
  %2841 = vmatprep.subr.mxu0 0.0
  %2842 = vmatpush1.msra.mxu0 0.0
  %2843 = vmatprep.subr.mxu0 0.0
  %2844 = vmatpush1.msra.mxu0 0.0
  %2845 = vmatprep.subr.mxu0 0.0
  %2846 = vmatpush1.msra.mxu0 0.0
  %2847 = vmatprep.subr.mxu0 0.0
  %2848 = vmatpush1.msra.mxu0 0.0
  %2849 = vmatprep.subr.mxu0 0.0
  %2850 = vmatpush1.msra.mxu0 0.0
  %2851 = vmatprep.subr.mxu0 0.0
  %2852 = vmatpush1.msra.mxu0 0.0
  %2853 = vmatprep.subr.mxu0 0.0
  %2854 = vmatpush1.msra.mxu0 0.0
  %2855 = vmatprep.subr.mxu0 0.0
  %2856 = vmatpush1.msra.mxu0 0.0
  %2857 = vmatprep.subr.mxu0 0.0
  %2858 = vmatpush1.msra.mxu0 %v2816
  %2859 = vmatprep.subr.mxu0 0.0
  %2860 = vmatpush1.msra.mxu0 %v2814
  %2861 = vmatprep.subr.mxu0 0.0
  %2862 = vmatpush1.msra.mxu0 %v2812
  %2863 = vmatprep.subr.mxu0 0.0
  %2864 = vmatpush1.msra.mxu0 %v2810
  %2865 = vmatprep.subr.mxu0 0.0
  %2866 = vmatpush2.msra.mxu0 0.0
  %2867 = vmatprep.subr.mxu0 0.0
  %2868 = vmatpush2.msra.mxu0 0.0
  %2869 = vmatprep.subr.mxu0 0.0
  %2870 = vmatpush2.msra.mxu0 0.0
  %2871 = vmatprep.subr.mxu0 0.0
  %2872 = vmatpush2.msra.mxu0 0.0
  %2873 = vmatprep.subr.mxu0 0.0
  %2874 = vmatpush2.msra.mxu0 0.0
  %2875 = vmatprep.subr.mxu0 0.0
  %2876 = vmatpush2.msra.mxu0 0.0
  %2877 = vmatprep.subr.mxu0 0.0
  %2878 = vmatpush2.msra.mxu0 0.0
  %2879 = vmatprep.subr.mxu0 0.0
  %2880 = vmatpush2.msra.mxu0 0.0
  %2881 = vmatprep.subr.mxu0 0.0
  %2882 = vmatpush2.msra.mxu0 0.0
  %2883 = vmatprep.subr.mxu0 0.0
  %2884 = vmatpush2.msra.mxu0 0.0
  %2885 = vmatprep.subr.mxu0 0.0
  %2886 = vmatpush2.msra.mxu0 0.0
  %2887 = vmatprep.subr.mxu0 0.0
  %2888 = vmatpush2.msra.mxu0 0.0
  %2889 = vmatprep.subr.mxu0 0.0
  %2890 = vmatpush2.msra.mxu0 0.0
  %2891 = vmatprep.subr.mxu0 0.0
  %2892 = vmatpush2.msra.mxu0 0.0
  %2893 = vmatprep.subr.mxu0 0.0
  %2894 = vmatpush2.msra.mxu0 0.0
  %2895 = vmatprep.subr.mxu0 0.0
  %2896 = vmatpush2.msra.mxu0 0.0
  %2897 = vmatprep.mubr.f32.mxu0 0.0
  %2898 = vmatmul.mubr.f32.gmra.mxu0 %v2822
  %v2899 = vpop.f32.mrf.mxu0
  %v2900 = vadd.f32 0.0, %v2899
  %v2901 = vpop.f32.mrf.mxu0
  %2902 = vmatprep.mubr.f32.mxu0 0.0
  %2903 = vmatmul.mubr.f32.gmra.mxu0 %v2825
  %v2904 = vpop.f32.mrf.mxu0
  %v2905 = vadd.f32 0.0, %v2904
  %v2906 = vpop.f32.mrf.mxu0
  %2907 = vmatprep.mubr.f32.mxu0 0.0
  %2908 = vmatmul.mubr.f32.gmra.mxu0 %v2828
  %v2909 = vpop.f32.mrf.mxu0
  %v2910 = vadd.f32 0.0, %v2909
  %v2911 = vpop.f32.mrf.mxu0
  %2912 = vmatprep.mubr.f32.mxu0 0.0
  %2913 = vmatmul.mubr.f32.gmra.mxu0 %v2831
  %v2914 = vpop.f32.mrf.mxu0
  %v2915 = vadd.f32 0.0, %v2914
  %v2916 = vpop.f32.mrf.mxu0
  %2917 = vdwg.mxu0
  %2922 = vrot.lane.b32.xlu0 %v2900, 64
  %v2923 = vpop.permute.xlu0 %2922
  %2924 = vrot.lane.b32.xlu0 %v2905, 64
  %v2925 = vpop.permute.xlu0 %2924
  %2926 = vrot.lane.b32.xlu0 %v2910, 64
  %v2927 = vpop.permute.xlu0 %2926
  %2928 = vrot.lane.b32.xlu0 %v2915, 64
  %v2929 = vpop.permute.xlu0 %2928
  %v2934 = vadd.f32 %v2644, %v2923
  %v2935 = vadd.f32 %v2645, %v2925
  %v2936 = vadd.f32 %v2646, %v2927
  %v2937 = vadd.f32 %v2647, %v2929
  %2942 = vrot.lane.b32.xlu0 %v2934, 64
  %v2943 = vpop.permute.xlu0 %2942
  %2944 = vrot.lane.b32.xlu0 %v2935, 64
  %v2945 = vpop.permute.xlu0 %2944
  %2946 = vrot.lane.b32.xlu0 %v2936, 64
  %v2947 = vpop.permute.xlu0 %2946
  %2948 = vrot.lane.b32.xlu0 %v2937, 64
  %v2949 = vpop.permute.xlu0 %2948
  %v2954 = vadd.f32 %v1670, %v2943
  %v2955 = vadd.f32 %v1671, %v2945
  %v2956 = vadd.f32 %v1672, %v2947
  %v2957 = vadd.f32 %v1673, %v2949
  %v2958 = vld [vmem:[%s6 + $0x4] sm:$0x1]
  %v2959 = vsel %vm38, %v2954, 0.0
  %2960 = vadd.xlane.f32.xlu0 %v2959
  %v2961 = vpop.xlane.xlu0 %2960
  %v2962 = vsel %vm38, %v2955, 0.0
  %2963 = vadd.xlane.f32.xlu0 %v2962
  %v2964 = vpop.xlane.xlu0 %2963
  %v2965 = vsel %vm38, %v2956, 0.0
  %2966 = vadd.xlane.f32.xlu0 %v2965
  %v2967 = vpop.xlane.xlu0 %2966
  %v2968 = vsel %vm38, %v2957, 0.0
  %2969 = vadd.xlane.f32.xlu0 %v2968
  %v2970 = vpop.xlane.xlu0 %2969
  %v2971 = vmul.f32 %v2961, %v1327
  %v2972 = vmul.f32 %v2964, %v1327
  %v2973 = vmul.f32 %v2967, %v1327
  %v2974 = vmul.f32 %v2970, %v1327
  %v2975 = vsub.f32 %v2954, %v2971
  %v2976 = vsub.f32 %v2955, %v2972
  %v2977 = vsub.f32 %v2956, %v2973
  %v2978 = vsub.f32 %v2957, %v2974
  %v2979 = vmul.f32 %v2975, %v2975
  %v2980 = vmul.f32 %v2976, %v2976
  %v2981 = vmul.f32 %v2977, %v2977
  %v2982 = vmul.f32 %v2978, %v2978
  %v2983 = vsel %vm38, %v2979, 0.0
  %2984 = vadd.xlane.f32.xlu0 %v2983
  %v2985 = vpop.xlane.xlu0 %2984
  %v2986 = vsel %vm38, %v2980, 0.0
  %2987 = vadd.xlane.f32.xlu0 %v2986
  %v2988 = vpop.xlane.xlu0 %2987
  %v2989 = vsel %vm38, %v2981, 0.0
  %2990 = vadd.xlane.f32.xlu0 %v2989
  %v2991 = vpop.xlane.xlu0 %2990
  %v2992 = vsel %vm38, %v2982, 0.0
  %2993 = vadd.xlane.f32.xlu0 %v2992
  %v2994 = vpop.xlane.xlu0 %2993
  %v2995 = vmul.f32 %v2985, %v1327
  %v2996 = vmul.f32 %v2988, %v1327
  %v2997 = vmul.f32 %v2991, %v1327
  %v2998 = vmul.f32 %v2994, %v1327
  %v2999 = vadd.f32 %v2995, 1e-05
  %v3000 = vadd.f32 %v2996, 1e-05
  %v3001 = vadd.f32 %v2997, 1e-05
  %v3002 = vadd.f32 %v2998, 1e-05
  %v3003 = vrsqrt.pop %v2999
  %v3004 = vrsqrt.pop %v3000
  %v3005 = vrsqrt.pop %v3001
  %v3006 = vrsqrt.pop %v3002
  %v3007 = vmul.f32 %v2975, %v3003
  %v3008 = vmul.f32 %v2976, %v3004
  %v3009 = vmul.f32 %v2977, %v3005
  %v3010 = vmul.f32 %v2978, %v3006
  %v3011 = vlaneseq
  %v3012 = vshrl.u32 %v3011, 7
  %v3013 = vsub.s32 0, %v3012
  %v3014 = vrot.slane %v2958, %v3013
  %v3015 = vmul.f32 %v3007, %v3014
  %v3016 = vmul.f32 %v3008, %v3014
  %v3017 = vmul.f32 %v3009, %v3014
  %v3018 = vmul.f32 %v3010, %v3014
  %3020 = vrot.lane.b32.xlu0 %v3014, 96
  %v3021 = vpop.permute.xlu0 %3020
  %v3023 = vadd.f32 %v3015, %v3021
  %v3024 = vadd.f32 %v3016, %v3021
  %v3025 = vadd.f32 %v3017, %v3021
  %v3026 = vadd.f32 %v3018, %v3021
  %s3027 = scalar_lea.vmem %s3, 96
  %v3028 = vld [vmem:[%s3027] sm:$0xff]
  %v3029 = vld [vmem:[%s3027 + $0x8] sm:$0xff]
  %v3030 = vld [vmem:[%s3027 + $0x10] sm:$0xff]
  %v3031 = vld [vmem:[%s3027 + $0x18] sm:$0xff]
  %v3032 = vld [vmem:[%s3027 + $0x20] sm:$0xff]
  %v3033 = vld [vmem:[%s3027 + $0x28] sm:$0xff]
  %v3034 = vld [vmem:[%s3027 + $0x30] sm:$0xff]
  %v3035 = vld [vmem:[%s3027 + $0x38] sm:$0xff]
  %v3036 = vld [vmem:[%s3027 + $0x40] sm:$0xff]
  %v3037 = vld [vmem:[%s3027 + $0x48] sm:$0xff]
  %v3038 = vld [vmem:[%s3027 + $0x50] sm:$0xff]
  %v3039 = vld [vmem:[%s3027 + $0x58] sm:$0xff]
  %v3040 = vld [vmem:[%s6 + $0x5] sm:$0x1]
  %v3041 = vlaneseq
  %v3042 = vshrl.u32 %v3041, 7
  %v3043 = vsub.s32 0, %v3042
  %v3044 = vrot.slane %v3040, %v3043
  %v3046 = vsel %vm38, %v3023, 0
  %v3049 = vsel %vm38, %v3024, 0
  %v3052 = vsel %vm38, %v3025, 0
  %v3055 = vsel %vm38, %v3026, 0
  %3057 = vmatprep.subr.mxu0 0.0
  %3058 = vmatpush1.msra.mxu0 0.0
  %3059 = vmatprep.subr.mxu0 0.0
  %3060 = vmatpush1.msra.mxu0 0.0
  %3061 = vmatprep.subr.mxu0 0.0
  %3062 = vmatpush1.msra.mxu0 0.0
  %3063 = vmatprep.subr.mxu0 0.0
  %3064 = vmatpush1.msra.mxu0 0.0
  %3065 = vmatprep.subr.mxu0 0.0
  %3066 = vmatpush1.msra.mxu0 0.0
  %3067 = vmatprep.subr.mxu0 0.0
  %3068 = vmatpush1.msra.mxu0 0.0
  %3069 = vmatprep.subr.mxu0 0.0
  %3070 = vmatpush1.msra.mxu0 0.0
  %3071 = vmatprep.subr.mxu0 0.0
  %3072 = vmatpush1.msra.mxu0 0.0
  %3073 = vmatprep.subr.mxu0 0.0
  %3074 = vmatpush1.msra.mxu0 0.0
  %3075 = vmatprep.subr.mxu0 0.0
  %3076 = vmatpush1.msra.mxu0 0.0
  %3077 = vmatprep.subr.mxu0 0.0
  %3078 = vmatpush1.msra.mxu0 0.0
  %3079 = vmatprep.subr.mxu0 0.0
  %3080 = vmatpush1.msra.mxu0 0.0
  %3081 = vmatprep.subr.mxu0 0.0
  %3082 = vmatpush1.msra.mxu0 %v3031
  %3083 = vmatprep.subr.mxu0 0.0
  %3084 = vmatpush1.msra.mxu0 %v3030
  %3085 = vmatprep.subr.mxu0 0.0
  %3086 = vmatpush1.msra.mxu0 %v3029
  %3087 = vmatprep.subr.mxu0 0.0
  %3088 = vmatpush1.msra.mxu0 %v3028
  %3089 = vmatprep.subr.mxu0 0.0
  %3090 = vmatpush2.msra.mxu0 0.0
  %3091 = vmatprep.subr.mxu0 0.0
  %3092 = vmatpush2.msra.mxu0 0.0
  %3093 = vmatprep.subr.mxu0 0.0
  %3094 = vmatpush2.msra.mxu0 0.0
  %3095 = vmatprep.subr.mxu0 0.0
  %3096 = vmatpush2.msra.mxu0 0.0
  %3097 = vmatprep.subr.mxu0 0.0
  %3098 = vmatpush2.msra.mxu0 0.0
  %3099 = vmatprep.subr.mxu0 0.0
  %3100 = vmatpush2.msra.mxu0 0.0
  %3101 = vmatprep.subr.mxu0 0.0
  %3102 = vmatpush2.msra.mxu0 0.0
  %3103 = vmatprep.subr.mxu0 0.0
  %3104 = vmatpush2.msra.mxu0 0.0
  %3105 = vmatprep.subr.mxu0 0.0
  %3106 = vmatpush2.msra.mxu0 0.0
  %3107 = vmatprep.subr.mxu0 0.0
  %3108 = vmatpush2.msra.mxu0 0.0
  %3109 = vmatprep.subr.mxu0 0.0
  %3110 = vmatpush2.msra.mxu0 0.0
  %3111 = vmatprep.subr.mxu0 0.0
  %3112 = vmatpush2.msra.mxu0 0.0
  %3113 = vmatprep.subr.mxu0 0.0
  %3114 = vmatpush2.msra.mxu0 0.0
  %3115 = vmatprep.subr.mxu0 0.0
  %3116 = vmatpush2.msra.mxu0 0.0
  %3117 = vmatprep.subr.mxu0 0.0
  %3118 = vmatpush2.msra.mxu0 0.0
  %3119 = vmatprep.subr.mxu0 0.0
  %3120 = vmatpush2.msra.mxu0 0.0
  %3121 = vmatprep.mubr.f32.mxu0 0.0
  %3122 = vmatmul.mubr.f32.gmra.mxu0 %v3046
  %v3123 = vpop.f32.mrf.mxu0
  %v3124 = vadd.f32 %v3044, %v3123
  %v3125 = vpop.f32.mrf.mxu0
  %3126 = vmatprep.mubr.f32.mxu0 0.0
  %3127 = vmatmul.mubr.f32.gmra.mxu0 %v3049
  %v3128 = vpop.f32.mrf.mxu0
  %v3129 = vadd.f32 %v3044, %v3128
  %v3130 = vpop.f32.mrf.mxu0
  %3131 = vmatprep.mubr.f32.mxu0 0.0
  %3132 = vmatmul.mubr.f32.gmra.mxu0 %v3052
  %v3133 = vpop.f32.mrf.mxu0
  %v3134 = vadd.f32 %v3044, %v3133
  %v3135 = vpop.f32.mrf.mxu0
  %3136 = vmatprep.mubr.f32.mxu0 0.0
  %3137 = vmatmul.mubr.f32.gmra.mxu0 %v3055
  %v3138 = vpop.f32.mrf.mxu0
  %v3139 = vadd.f32 %v3044, %v3138
  %v3140 = vpop.f32.mrf.mxu0
  %3141 = vdwg.mxu0
  %v3142 = vmax.f32 %v3124, 0.0
  %v3143 = vmax.f32 %v3129, 0.0
  %v3144 = vmax.f32 %v3134, 0.0
  %v3145 = vmax.f32 %v3139, 0.0
  %3147 = vrot.lane.b32.xlu0 %v3044, 64
  %v3148 = vpop.permute.xlu0 %3147
  %v3151 = vsel %vm1506, %v3142, 0
  %v3154 = vsel %vm1506, %v3143, 0
  %v3157 = vsel %vm1506, %v3144, 0
  %v3160 = vsel %vm1506, %v3145, 0
  %3162 = vmatprep.subr.mxu0 0.0
  %3163 = vmatpush1.msra.mxu0 0.0
  %3164 = vmatprep.subr.mxu0 0.0
  %3165 = vmatpush1.msra.mxu0 0.0
  %3166 = vmatprep.subr.mxu0 0.0
  %3167 = vmatpush1.msra.mxu0 0.0
  %3168 = vmatprep.subr.mxu0 0.0
  %3169 = vmatpush1.msra.mxu0 0.0
  %3170 = vmatprep.subr.mxu0 0.0
  %3171 = vmatpush1.msra.mxu0 0.0
  %3172 = vmatprep.subr.mxu0 0.0
  %3173 = vmatpush1.msra.mxu0 0.0
  %3174 = vmatprep.subr.mxu0 0.0
  %3175 = vmatpush1.msra.mxu0 0.0
  %3176 = vmatprep.subr.mxu0 0.0
  %3177 = vmatpush1.msra.mxu0 0.0
  %3178 = vmatprep.subr.mxu0 0.0
  %3179 = vmatpush1.msra.mxu0 %v3039
  %3180 = vmatprep.subr.mxu0 0.0
  %3181 = vmatpush1.msra.mxu0 %v3038
  %3182 = vmatprep.subr.mxu0 0.0
  %3183 = vmatpush1.msra.mxu0 %v3037
  %3184 = vmatprep.subr.mxu0 0.0
  %3185 = vmatpush1.msra.mxu0 %v3036
  %3186 = vmatprep.subr.mxu0 0.0
  %3187 = vmatpush1.msra.mxu0 %v3035
  %3188 = vmatprep.subr.mxu0 0.0
  %3189 = vmatpush1.msra.mxu0 %v3034
  %3190 = vmatprep.subr.mxu0 0.0
  %3191 = vmatpush1.msra.mxu0 %v3033
  %3192 = vmatprep.subr.mxu0 0.0
  %3193 = vmatpush1.msra.mxu0 %v3032
  %3194 = vmatprep.subr.mxu0 0.0
  %3195 = vmatpush2.msra.mxu0 0.0
  %3196 = vmatprep.subr.mxu0 0.0
  %3197 = vmatpush2.msra.mxu0 0.0
  %3198 = vmatprep.subr.mxu0 0.0
  %3199 = vmatpush2.msra.mxu0 0.0
  %3200 = vmatprep.subr.mxu0 0.0
  %3201 = vmatpush2.msra.mxu0 0.0
  %3202 = vmatprep.subr.mxu0 0.0
  %3203 = vmatpush2.msra.mxu0 0.0
  %3204 = vmatprep.subr.mxu0 0.0
  %3205 = vmatpush2.msra.mxu0 0.0
  %3206 = vmatprep.subr.mxu0 0.0
  %3207 = vmatpush2.msra.mxu0 0.0
  %3208 = vmatprep.subr.mxu0 0.0
  %3209 = vmatpush2.msra.mxu0 0.0
  %3210 = vmatprep.subr.mxu0 0.0
  %3211 = vmatpush2.msra.mxu0 0.0
  %3212 = vmatprep.subr.mxu0 0.0
  %3213 = vmatpush2.msra.mxu0 0.0
  %3214 = vmatprep.subr.mxu0 0.0
  %3215 = vmatpush2.msra.mxu0 0.0
  %3216 = vmatprep.subr.mxu0 0.0
  %3217 = vmatpush2.msra.mxu0 0.0
  %3218 = vmatprep.subr.mxu0 0.0
  %3219 = vmatpush2.msra.mxu0 0.0
  %3220 = vmatprep.subr.mxu0 0.0
  %3221 = vmatpush2.msra.mxu0 0.0
  %3222 = vmatprep.subr.mxu0 0.0
  %3223 = vmatpush2.msra.mxu0 0.0
  %3224 = vmatprep.subr.mxu0 0.0
  %3225 = vmatpush2.msra.mxu0 0.0
  %3226 = vmatprep.mubr.f32.mxu0 0.0
  %3227 = vmatmul.mubr.f32.gmra.mxu0 %v3151
  %v3228 = vpop.f32.mrf.mxu0
  %v3229 = vadd.f32 %v3148, %v3228
  %v3230 = vpop.f32.mrf.mxu0
  %3231 = vmatprep.mubr.f32.mxu0 0.0
  %3232 = vmatmul.mubr.f32.gmra.mxu0 %v3154
  %v3233 = vpop.f32.mrf.mxu0
  %v3234 = vadd.f32 %v3148, %v3233
  %v3235 = vpop.f32.mrf.mxu0
  %3236 = vmatprep.mubr.f32.mxu0 0.0
  %3237 = vmatmul.mubr.f32.gmra.mxu0 %v3157
  %v3238 = vpop.f32.mrf.mxu0
  %v3239 = vadd.f32 %v3148, %v3238
  %v3240 = vpop.f32.mrf.mxu0
  %3241 = vmatprep.mubr.f32.mxu0 0.0
  %3242 = vmatmul.mubr.f32.gmra.mxu0 %v3160
  %v3243 = vpop.f32.mrf.mxu0
  %v3244 = vadd.f32 %v3148, %v3243
  %v3245 = vpop.f32.mrf.mxu0
  %3246 = vdwg.mxu0
  %v3247 = vadd.f32 %v3023, %v3229
  %v3248 = vadd.f32 %v3024, %v3234
  %v3249 = vadd.f32 %v3025, %v3239
  %v3250 = vadd.f32 %v3026, %v3244
  %v3251 = vsel %vm38, %v3247, 0.0
  %3252 = vadd.xlane.f32.xlu0 %v3251
  %v3253 = vpop.xlane.xlu0 %3252
  %v3254 = vsel %vm38, %v3248, 0.0
  %3255 = vadd.xlane.f32.xlu0 %v3254
  %v3256 = vpop.xlane.xlu0 %3255
  %v3257 = vsel %vm38, %v3249, 0.0
  %3258 = vadd.xlane.f32.xlu0 %v3257
  %v3259 = vpop.xlane.xlu0 %3258
  %v3260 = vsel %vm38, %v3250, 0.0
  %3261 = vadd.xlane.f32.xlu0 %v3260
  %v3262 = vpop.xlane.xlu0 %3261
  %v3263 = vmul.f32 %v3253, %v1327
  %v3264 = vmul.f32 %v3256, %v1327
  %v3265 = vmul.f32 %v3259, %v1327
  %v3266 = vmul.f32 %v3262, %v1327
  %v3267 = vsub.f32 %v3247, %v3263
  %v3268 = vsub.f32 %v3248, %v3264
  %v3269 = vsub.f32 %v3249, %v3265
  %v3270 = vsub.f32 %v3250, %v3266
  %v3271 = vmul.f32 %v3267, %v3267
  %v3272 = vmul.f32 %v3268, %v3268
  %v3273 = vmul.f32 %v3269, %v3269
  %v3274 = vmul.f32 %v3270, %v3270
  %v3275 = vsel %vm38, %v3271, 0.0
  %3276 = vadd.xlane.f32.xlu0 %v3275
  %v3277 = vpop.xlane.xlu0 %3276
  %v3278 = vsel %vm38, %v3272, 0.0
  %3279 = vadd.xlane.f32.xlu0 %v3278
  %v3280 = vpop.xlane.xlu0 %3279
  %v3281 = vsel %vm38, %v3273, 0.0
  %3282 = vadd.xlane.f32.xlu0 %v3281
  %v3283 = vpop.xlane.xlu0 %3282
  %v3284 = vsel %vm38, %v3274, 0.0
  %3285 = vadd.xlane.f32.xlu0 %v3284
  %v3286 = vpop.xlane.xlu0 %3285
  %v3287 = vmul.f32 %v3277, %v1327
  %v3288 = vmul.f32 %v3280, %v1327
  %v3289 = vmul.f32 %v3283, %v1327
  %v3290 = vmul.f32 %v3286, %v1327
  %v3291 = vadd.f32 %v3287, 1e-05
  %v3292 = vadd.f32 %v3288, 1e-05
  %v3293 = vadd.f32 %v3289, 1e-05
  %v3294 = vadd.f32 %v3290, 1e-05
  %v3295 = vrsqrt.pop %v3291
  %v3296 = vrsqrt.pop %v3292
  %v3297 = vrsqrt.pop %v3293
  %v3298 = vrsqrt.pop %v3294
  %v3299 = vmul.f32 %v3267, %v3295
  %v3300 = vmul.f32 %v3268, %v3296
  %v3301 = vmul.f32 %v3269, %v3297
  %v3302 = vmul.f32 %v3270, %v3298
  %3303 = vrot.lane.b32.xlu0 %v3014, 64
  %v3304 = vpop.permute.xlu0 %3303
  %v3306 = vmul.f32 %v3299, %v3304
  %v3307 = vmul.f32 %v3300, %v3304
  %v3308 = vmul.f32 %v3301, %v3304
  %v3309 = vmul.f32 %v3302, %v3304
  %3310 = vrot.lane.b32.xlu0 %v3014, 32
  %v3311 = vpop.permute.xlu0 %3310
  %v3313 = vadd.f32 %v3306, %v3311
  %v3314 = vadd.f32 %v3307, %v3311
  %v3315 = vadd.f32 %v3308, %v3311
  %v3316 = vadd.f32 %v3309, %v3311
  %v3317 = vld [vmem:[%s5] sm:$0xff]
  %v3318 = vld [vmem:[%s5 + $0x8] sm:$0xff]
  %v3319 = vld [vmem:[%s5 + $0x10] sm:$0xff]
  %v3320 = vld [vmem:[%s5 + $0x18] sm:$0xff]
  %v3321 = vld [vmem:[%s4] sm:$0xff]
  %v3322 = vld [vmem:[%s4 + $0x20] sm:$0xff]
  %v3323 = vld [vmem:[%s4 + $0x40] sm:$0xff]
  %v3324 = vld [vmem:[%s4 + $0x60] sm:$0xff]
  %v3326 = vsel %vm38, %v3313, 0
  %v3329 = vsel %vm38, %v3314, 0
  %v3332 = vsel %vm38, %v3315, 0
  %v3335 = vsel %vm38, %v3316, 0
  %3337 = vmatprep.subr.mxu0 0.0
  %3338 = vmatpush1.msra.mxu0 0.0
  %3339 = vmatprep.subr.mxu0 0.0
  %3340 = vmatpush1.msra.mxu0 0.0
  %3341 = vmatprep.subr.mxu0 0.0
  %3342 = vmatpush1.msra.mxu0 0.0
  %3343 = vmatprep.subr.mxu0 0.0
  %3344 = vmatpush1.msra.mxu0 0.0
  %3345 = vmatprep.subr.mxu0 0.0
  %3346 = vmatpush1.msra.mxu0 0.0
  %3347 = vmatprep.subr.mxu0 0.0
  %3348 = vmatpush1.msra.mxu0 0.0
  %3349 = vmatprep.subr.mxu0 0.0
  %3350 = vmatpush1.msra.mxu0 0.0
  %3351 = vmatprep.subr.mxu0 0.0
  %3352 = vmatpush1.msra.mxu0 0.0
  %3353 = vmatprep.subr.mxu0 0.0
  %3354 = vmatpush1.msra.mxu0 0.0
  %3355 = vmatprep.subr.mxu0 0.0
  %3356 = vmatpush1.msra.mxu0 0.0
  %3357 = vmatprep.subr.mxu0 0.0
  %3358 = vmatpush1.msra.mxu0 0.0
  %3359 = vmatprep.subr.mxu0 0.0
  %3360 = vmatpush1.msra.mxu0 0.0
  %3361 = vmatprep.subr.mxu0 0.0
  %3362 = vmatpush1.msra.mxu0 %v3324
  %3363 = vmatprep.subr.mxu0 0.0
  %3364 = vmatpush1.msra.mxu0 %v3323
  %3365 = vmatprep.subr.mxu0 0.0
  %3366 = vmatpush1.msra.mxu0 %v3322
  %3367 = vmatprep.subr.mxu0 0.0
  %3368 = vmatpush1.msra.mxu0 %v3321
  %3369 = vmatprep.subr.mxu0 0.0
  %3370 = vmatpush2.msra.mxu0 0.0
  %3371 = vmatprep.subr.mxu0 0.0
  %3372 = vmatpush2.msra.mxu0 0.0
  %3373 = vmatprep.subr.mxu0 0.0
  %3374 = vmatpush2.msra.mxu0 0.0
  %3375 = vmatprep.subr.mxu0 0.0
  %3376 = vmatpush2.msra.mxu0 0.0
  %3377 = vmatprep.subr.mxu0 0.0
  %3378 = vmatpush2.msra.mxu0 0.0
  %3379 = vmatprep.subr.mxu0 0.0
  %3380 = vmatpush2.msra.mxu0 0.0
  %3381 = vmatprep.subr.mxu0 0.0
  %3382 = vmatpush2.msra.mxu0 0.0
  %3383 = vmatprep.subr.mxu0 0.0
  %3384 = vmatpush2.msra.mxu0 0.0
  %3385 = vmatprep.subr.mxu0 0.0
  %3386 = vmatpush2.msra.mxu0 0.0
  %3387 = vmatprep.subr.mxu0 0.0
  %3388 = vmatpush2.msra.mxu0 0.0
  %3389 = vmatprep.subr.mxu0 0.0
  %3390 = vmatpush2.msra.mxu0 0.0
  %3391 = vmatprep.subr.mxu0 0.0
  %3392 = vmatpush2.msra.mxu0 0.0
  %3393 = vmatprep.subr.mxu0 0.0
  %3394 = vmatpush2.msra.mxu0 0.0
  %3395 = vmatprep.subr.mxu0 0.0
  %3396 = vmatpush2.msra.mxu0 0.0
  %3397 = vmatprep.subr.mxu0 0.0
  %3398 = vmatpush2.msra.mxu0 0.0
  %3399 = vmatprep.subr.mxu0 0.0
  %3400 = vmatpush2.msra.mxu0 0.0
  %3401 = vmatprep.mubr.f32.mxu0 0.0
  %3402 = vmatmul.mubr.f32.gmra.mxu0 %v3326
  %v3403 = vpop.f32.mrf.mxu0
  %v3404 = vadd.f32 0.0, %v3403
  %v3405 = vpop.f32.mrf.mxu0
  %3406 = vmatprep.mubr.f32.mxu0 0.0
  %3407 = vmatmul.mubr.f32.gmra.mxu0 %v3329
  %v3408 = vpop.f32.mrf.mxu0
  %v3409 = vadd.f32 0.0, %v3408
  %v3410 = vpop.f32.mrf.mxu0
  %3411 = vmatprep.mubr.f32.mxu0 0.0
  %3412 = vmatmul.mubr.f32.gmra.mxu0 %v3332
  %v3413 = vpop.f32.mrf.mxu0
  %v3414 = vadd.f32 0.0, %v3413
  %v3415 = vpop.f32.mrf.mxu0
  %3416 = vmatprep.mubr.f32.mxu0 0.0
  %3417 = vmatmul.mubr.f32.gmra.mxu0 %v3335
  %v3418 = vpop.f32.mrf.mxu0
  %v3419 = vadd.f32 0.0, %v3418
  %v3420 = vpop.f32.mrf.mxu0
  %3421 = vdwg.mxu0
  %3426 = vrot.lane.b32.xlu0 %v3404, 96
  %v3427 = vpop.permute.xlu0 %3426
  %3428 = vrot.lane.b32.xlu0 %v3409, 96
  %v3429 = vpop.permute.xlu0 %3428
  %3430 = vrot.lane.b32.xlu0 %v3414, 96
  %v3431 = vpop.permute.xlu0 %3430
  %3432 = vrot.lane.b32.xlu0 %v3419, 96
  %v3433 = vpop.permute.xlu0 %3432
  %v3439 = vsel %vm38, %v3317, 0
  %v3442 = vsel %vm38, %v3318, 0
  %v3445 = vsel %vm38, %v3319, 0
  %v3448 = vsel %vm38, %v3320, 0
  %3450 = vmatprep.subr.mxu0 0.0
  %3451 = vmatpush1.msra.mxu0 0.0
  %3452 = vmatprep.subr.mxu0 0.0
  %3453 = vmatpush1.msra.mxu0 0.0
  %3454 = vmatprep.subr.mxu0 0.0
  %3455 = vmatpush1.msra.mxu0 0.0
  %3456 = vmatprep.subr.mxu0 0.0
  %3457 = vmatpush1.msra.mxu0 0.0
  %3458 = vmatprep.subr.mxu0 0.0
  %3459 = vmatpush1.msra.mxu0 0.0
  %3460 = vmatprep.subr.mxu0 0.0
  %3461 = vmatpush1.msra.mxu0 0.0
  %3462 = vmatprep.subr.mxu0 0.0
  %3463 = vmatpush1.msra.mxu0 0.0
  %3464 = vmatprep.subr.mxu0 0.0
  %3465 = vmatpush1.msra.mxu0 0.0
  %3466 = vmatprep.subr.mxu0 0.0
  %3467 = vmatpush1.msra.mxu0 0.0
  %3468 = vmatprep.subr.mxu0 0.0
  %3469 = vmatpush1.msra.mxu0 0.0
  %3470 = vmatprep.subr.mxu0 0.0
  %3471 = vmatpush1.msra.mxu0 0.0
  %3472 = vmatprep.subr.mxu0 0.0
  %3473 = vmatpush1.msra.mxu0 0.0
  %3474 = vmatprep.subr.mxu0 0.0
  %3475 = vmatpush1.msra.mxu0 %v3419
  %3476 = vmatprep.subr.mxu0 0.0
  %3477 = vmatpush1.msra.mxu0 %v3414
  %3478 = vmatprep.subr.mxu0 0.0
  %3479 = vmatpush1.msra.mxu0 %v3409
  %3480 = vmatprep.subr.mxu0 0.0
  %3481 = vmatpush1.msra.mxu0 %v3404
  %3482 = vmatprep.subr.mxu0 0.0
  %3483 = vmatpush2.msra.mxu0 0.0
  %3484 = vmatprep.subr.mxu0 0.0
  %3485 = vmatpush2.msra.mxu0 0.0
  %3486 = vmatprep.subr.mxu0 0.0
  %3487 = vmatpush2.msra.mxu0 0.0
  %3488 = vmatprep.subr.mxu0 0.0
  %3489 = vmatpush2.msra.mxu0 0.0
  %3490 = vmatprep.subr.mxu0 0.0
  %3491 = vmatpush2.msra.mxu0 0.0
  %3492 = vmatprep.subr.mxu0 0.0
  %3493 = vmatpush2.msra.mxu0 0.0
  %3494 = vmatprep.subr.mxu0 0.0
  %3495 = vmatpush2.msra.mxu0 0.0
  %3496 = vmatprep.subr.mxu0 0.0
  %3497 = vmatpush2.msra.mxu0 0.0
  %3498 = vmatprep.subr.mxu0 0.0
  %3499 = vmatpush2.msra.mxu0 0.0
  %3500 = vmatprep.subr.mxu0 0.0
  %3501 = vmatpush2.msra.mxu0 0.0
  %3502 = vmatprep.subr.mxu0 0.0
  %3503 = vmatpush2.msra.mxu0 0.0
  %3504 = vmatprep.subr.mxu0 0.0
  %3505 = vmatpush2.msra.mxu0 0.0
  %3506 = vmatprep.subr.mxu0 0.0
  %3507 = vmatpush2.msra.mxu0 0.0
  %3508 = vmatprep.subr.mxu0 0.0
  %3509 = vmatpush2.msra.mxu0 0.0
  %3510 = vmatprep.subr.mxu0 0.0
  %3511 = vmatpush2.msra.mxu0 0.0
  %3512 = vmatprep.subr.mxu0 0.0
  %3513 = vmatpush2.msra.mxu0 0.0
  %3514 = vmatprep.mubr.f32.mxu0 0.0
  %3515 = vmatmul.mubr.f32.gmra.mxu0 %v3439
  %v3516 = vpop.f32.mrf.mxu0
  %v3517 = vadd.f32 %v3427, %v3516
  %v3518 = vpop.f32.mrf.mxu0
  %3519 = vmatprep.mubr.f32.mxu0 0.0
  %3520 = vmatmul.mubr.f32.gmra.mxu0 %v3442
  %v3521 = vpop.f32.mrf.mxu0
  %v3522 = vadd.f32 %v3429, %v3521
  %v3523 = vpop.f32.mrf.mxu0
  %3524 = vmatprep.mubr.f32.mxu0 0.0
  %3525 = vmatmul.mubr.f32.gmra.mxu0 %v3445
  %v3526 = vpop.f32.mrf.mxu0
  %v3527 = vadd.f32 %v3431, %v3526
  %v3528 = vpop.f32.mrf.mxu0
  %3529 = vmatprep.mubr.f32.mxu0 0.0
  %3530 = vmatmul.mubr.f32.gmra.mxu0 %v3448
  %v3531 = vpop.f32.mrf.mxu0
  %v3532 = vadd.f32 %v3433, %v3531
  %v3533 = vpop.f32.mrf.mxu0
  %3534 = vdwg.mxu0
  %3535 = vrot.lane.b32.xlu0 %v3317, 96
  %v3536 = vpop.permute.xlu0 %3535
  %3537 = vrot.lane.b32.xlu0 %v3318, 96
  %v3538 = vpop.permute.xlu0 %3537
  %3539 = vrot.lane.b32.xlu0 %v3319, 96
  %v3540 = vpop.permute.xlu0 %3539
  %3541 = vrot.lane.b32.xlu0 %v3320, 96
  %v3542 = vpop.permute.xlu0 %3541
  %3543 = vrot.lane.b32.xlu0 %v3404, 64
  %v3544 = vpop.permute.xlu0 %3543
  %3545 = vrot.lane.b32.xlu0 %v3409, 64
  %v3546 = vpop.permute.xlu0 %3545
  %3547 = vrot.lane.b32.xlu0 %v3414, 64
  %v3548 = vpop.permute.xlu0 %3547
  %3549 = vrot.lane.b32.xlu0 %v3419, 64
  %v3550 = vpop.permute.xlu0 %3549
  %v3555 = vsel %vm38, %v3536, 0
  %v3557 = vsel %vm38, %v3538, 0
  %v3559 = vsel %vm38, %v3540, 0
  %v3561 = vsel %vm38, %v3542, 0
  %3563 = vmatprep.subr.mxu0 0.0
  %3564 = vmatpush1.msra.mxu0 0.0
  %3565 = vmatprep.subr.mxu0 0.0
  %3566 = vmatpush1.msra.mxu0 0.0
  %3567 = vmatprep.subr.mxu0 0.0
  %3568 = vmatpush1.msra.mxu0 0.0
  %3569 = vmatprep.subr.mxu0 0.0
  %3570 = vmatpush1.msra.mxu0 0.0
  %3571 = vmatprep.subr.mxu0 0.0
  %3572 = vmatpush1.msra.mxu0 0.0
  %3573 = vmatprep.subr.mxu0 0.0
  %3574 = vmatpush1.msra.mxu0 0.0
  %3575 = vmatprep.subr.mxu0 0.0
  %3576 = vmatpush1.msra.mxu0 0.0
  %3577 = vmatprep.subr.mxu0 0.0
  %3578 = vmatpush1.msra.mxu0 0.0
  %3579 = vmatprep.subr.mxu0 0.0
  %3580 = vmatpush1.msra.mxu0 0.0
  %3581 = vmatprep.subr.mxu0 0.0
  %3582 = vmatpush1.msra.mxu0 0.0
  %3583 = vmatprep.subr.mxu0 0.0
  %3584 = vmatpush1.msra.mxu0 0.0
  %3585 = vmatprep.subr.mxu0 0.0
  %3586 = vmatpush1.msra.mxu0 0.0
  %3587 = vmatprep.subr.mxu0 0.0
  %3588 = vmatpush1.msra.mxu0 %v3550
  %3589 = vmatprep.subr.mxu0 0.0
  %3590 = vmatpush1.msra.mxu0 %v3548
  %3591 = vmatprep.subr.mxu0 0.0
  %3592 = vmatpush1.msra.mxu0 %v3546
  %3593 = vmatprep.subr.mxu0 0.0
  %3594 = vmatpush1.msra.mxu0 %v3544
  %3595 = vmatprep.subr.mxu0 0.0
  %3596 = vmatpush2.msra.mxu0 0.0
  %3597 = vmatprep.subr.mxu0 0.0
  %3598 = vmatpush2.msra.mxu0 0.0
  %3599 = vmatprep.subr.mxu0 0.0
  %3600 = vmatpush2.msra.mxu0 0.0
  %3601 = vmatprep.subr.mxu0 0.0
  %3602 = vmatpush2.msra.mxu0 0.0
  %3603 = vmatprep.subr.mxu0 0.0
  %3604 = vmatpush2.msra.mxu0 0.0
  %3605 = vmatprep.subr.mxu0 0.0
  %3606 = vmatpush2.msra.mxu0 0.0
  %3607 = vmatprep.subr.mxu0 0.0
  %3608 = vmatpush2.msra.mxu0 0.0
  %3609 = vmatprep.subr.mxu0 0.0
  %3610 = vmatpush2.msra.mxu0 0.0
  %3611 = vmatprep.subr.mxu0 0.0
  %3612 = vmatpush2.msra.mxu0 0.0
  %3613 = vmatprep.subr.mxu0 0.0
  %3614 = vmatpush2.msra.mxu0 0.0
  %3615 = vmatprep.subr.mxu0 0.0
  %3616 = vmatpush2.msra.mxu0 0.0
  %3617 = vmatprep.subr.mxu0 0.0
  %3618 = vmatpush2.msra.mxu0 0.0
  %3619 = vmatprep.subr.mxu0 0.0
  %3620 = vmatpush2.msra.mxu0 0.0
  %3621 = vmatprep.subr.mxu0 0.0
  %3622 = vmatpush2.msra.mxu0 0.0
  %3623 = vmatprep.subr.mxu0 0.0
  %3624 = vmatpush2.msra.mxu0 0.0
  %3625 = vmatprep.subr.mxu0 0.0
  %3626 = vmatpush2.msra.mxu0 0.0
  %3627 = vmatprep.mubr.f32.mxu0 0.0
  %3628 = vmatmul.mubr.f32.gmra.mxu0 %v3555
  %v3629 = vpop.f32.mrf.mxu0
  %v3630 = vadd.f32 0.0, %v3629
  %v3631 = vpop.f32.mrf.mxu0
  %3632 = vmatprep.mubr.f32.mxu0 0.0
  %3633 = vmatmul.mubr.f32.gmra.mxu0 %v3557
  %v3634 = vpop.f32.mrf.mxu0
  %v3635 = vadd.f32 0.0, %v3634
  %v3636 = vpop.f32.mrf.mxu0
  %3637 = vmatprep.mubr.f32.mxu0 0.0
  %3638 = vmatmul.mubr.f32.gmra.mxu0 %v3559
  %v3639 = vpop.f32.mrf.mxu0
  %v3640 = vadd.f32 0.0, %v3639
  %v3641 = vpop.f32.mrf.mxu0
  %3642 = vmatprep.mubr.f32.mxu0 0.0
  %3643 = vmatmul.mubr.f32.gmra.mxu0 %v3561
  %v3644 = vpop.f32.mrf.mxu0
  %v3645 = vadd.f32 0.0, %v3644
  %v3646 = vpop.f32.mrf.mxu0
  %3647 = vdwg.mxu0
  %v3648 = vadd.f32 %v3517, %v3630
  %v3649 = vadd.f32 %v3522, %v3635
  %v3650 = vadd.f32 %v3527, %v3640
  %v3651 = vadd.f32 %v3532, %v3645
  %v3652 = vld [vmem:[%s6 + $0x6] sm:$0x1]
  %v3653 = vlaneseq
  %v3654 = vshrl.u32 %v3653, 7
  %v3655 = vsub.s32 0, %v3654
  %v3656 = vrot.slane %v3652, %v3655
  %v3657 = vadd.f32 %v3648, %v3656
  %v3658 = vadd.f32 %v3649, %v3656
  %v3659 = vadd.f32 %v3650, %v3656
  %v3660 = vadd.f32 %v3651, %v3656
  %v3661 = vmax.f32 %v3657, 0.0
  %v3662 = vmax.f32 %v3658, 0.0
  %v3663 = vmax.f32 %v3659, 0.0
  %v3664 = vmax.f32 %v3660, 0.0
  %v3665 = vld [vmem:[%s4 + $0x8] sm:$0xff]
  %v3666 = vld [vmem:[%s4 + $0x10] sm:$0xff]
  %v3667 = vld [vmem:[%s4 + $0x18] sm:$0xff]
  %v3668 = vld [vmem:[%s4 + $0x28] sm:$0xff]
  %v3669 = vld [vmem:[%s4 + $0x30] sm:$0xff]
  %v3670 = vld [vmem:[%s4 + $0x38] sm:$0xff]
  %v3671 = vld [vmem:[%s4 + $0x48] sm:$0xff]
  %v3672 = vld [vmem:[%s4 + $0x50] sm:$0xff]
  %v3673 = vld [vmem:[%s4 + $0x58] sm:$0xff]
  %v3674 = vld [vmem:[%s4 + $0x68] sm:$0xff]
  %v3675 = vld [vmem:[%s4 + $0x70] sm:$0xff]
  %v3676 = vld [vmem:[%s4 + $0x78] sm:$0xff]
  %v3678 = vsel %vm38, %v3661, 0
  %v3681 = vsel %vm38, %v3662, 0
  %v3684 = vsel %vm38, %v3663, 0
  %v3687 = vsel %vm38, %v3664, 0
  %3689 = vmatprep.subr.mxu0 0.0
  %3690 = vmatpush1.msra.mxu0 0.0
  %3691 = vmatprep.subr.mxu0 0.0
  %3692 = vmatpush1.msra.mxu0 0.0
  %3693 = vmatprep.subr.mxu0 0.0
  %3694 = vmatpush1.msra.mxu0 0.0
  %3695 = vmatprep.subr.mxu0 0.0
  %3696 = vmatpush1.msra.mxu0 0.0
  %3697 = vmatprep.subr.mxu0 0.0
  %3698 = vmatpush1.msra.mxu0 0.0
  %3699 = vmatprep.subr.mxu0 0.0
  %3700 = vmatpush1.msra.mxu0 0.0
  %3701 = vmatprep.subr.mxu0 0.0
  %3702 = vmatpush1.msra.mxu0 0.0
  %3703 = vmatprep.subr.mxu0 0.0
  %3704 = vmatpush1.msra.mxu0 0.0
  %3705 = vmatprep.subr.mxu0 0.0
  %3706 = vmatpush1.msra.mxu0 0.0
  %3707 = vmatprep.subr.mxu0 0.0
  %3708 = vmatpush1.msra.mxu0 0.0
  %3709 = vmatprep.subr.mxu0 0.0
  %3710 = vmatpush1.msra.mxu0 0.0
  %3711 = vmatprep.subr.mxu0 0.0
  %3712 = vmatpush1.msra.mxu0 0.0
  %3713 = vmatprep.subr.mxu0 %v3675
  %3714 = vmatpush1.msra.mxu0 %v3674
  %3715 = vmatprep.subr.mxu0 %v3672
  %3716 = vmatpush1.msra.mxu0 %v3671
  %3717 = vmatprep.subr.mxu0 %v3669
  %3718 = vmatpush1.msra.mxu0 %v3668
  %3719 = vmatprep.subr.mxu0 %v3666
  %3720 = vmatpush1.msra.mxu0 %v3665
  %3721 = vmatprep.subr.mxu0 0.0
  %3722 = vmatpush2.msra.mxu0 0.0
  %3723 = vmatprep.subr.mxu0 0.0
  %3724 = vmatpush2.msra.mxu0 0.0
  %3725 = vmatprep.subr.mxu0 0.0
  %3726 = vmatpush2.msra.mxu0 0.0
  %3727 = vmatprep.subr.mxu0 0.0
  %3728 = vmatpush2.msra.mxu0 0.0
  %3729 = vmatprep.subr.mxu0 0.0
  %3730 = vmatpush2.msra.mxu0 0.0
  %3731 = vmatprep.subr.mxu0 0.0
  %3732 = vmatpush2.msra.mxu0 0.0
  %3733 = vmatprep.subr.mxu0 0.0
  %3734 = vmatpush2.msra.mxu0 0.0
  %3735 = vmatprep.subr.mxu0 0.0
  %3736 = vmatpush2.msra.mxu0 0.0
  %3737 = vmatprep.subr.mxu0 0.0
  %3738 = vmatpush2.msra.mxu0 0.0
  %3739 = vmatprep.subr.mxu0 0.0
  %3740 = vmatpush2.msra.mxu0 0.0
  %3741 = vmatprep.subr.mxu0 0.0
  %3742 = vmatpush2.msra.mxu0 0.0
  %3743 = vmatprep.subr.mxu0 0.0
  %3744 = vmatpush2.msra.mxu0 0.0
  %3745 = vmatprep.subr.mxu0 0.0
  %3746 = vmatpush2.msra.mxu0 0.0
  %3747 = vmatprep.subr.mxu0 0.0
  %3748 = vmatpush2.msra.mxu0 0.0
  %3749 = vmatprep.subr.mxu0 0.0
  %3750 = vmatpush2.msra.mxu0 0.0
  %3751 = vmatprep.subr.mxu0 0.0
  %3752 = vmatpush2.msra.mxu0 0.0
  %3753 = vmatprep.mubr.f32.mxu0 0.0
  %3754 = vmatmul.mubr.f32.gmra.mxu0 %v3678
  %v3755 = vpop.f32.mrf.mxu0
  %v3756 = vadd.f32 0.0, %v3755
  %v3757 = vpop.f32.mrf.mxu0
  %v3758 = vadd.f32 0.0, %v3757
  %3759 = vmatprep.mubr.f32.mxu0 0.0
  %3760 = vmatmul.mubr.f32.gmra.mxu0 %v3681
  %v3761 = vpop.f32.mrf.mxu0
  %v3762 = vadd.f32 0.0, %v3761
  %v3763 = vpop.f32.mrf.mxu0
  %v3764 = vadd.f32 0.0, %v3763
  %3765 = vmatprep.mubr.f32.mxu0 0.0
  %3766 = vmatmul.mubr.f32.gmra.mxu0 %v3684
  %v3767 = vpop.f32.mrf.mxu0
  %v3768 = vadd.f32 0.0, %v3767
  %v3769 = vpop.f32.mrf.mxu0
  %v3770 = vadd.f32 0.0, %v3769
  %3771 = vmatprep.mubr.f32.mxu0 0.0
  %3772 = vmatmul.mubr.f32.gmra.mxu0 %v3687
  %v3773 = vpop.f32.mrf.mxu0
  %v3774 = vadd.f32 0.0, %v3773
  %v3775 = vpop.f32.mrf.mxu0
  %v3776 = vadd.f32 0.0, %v3775
  %3777 = vdwg.mxu0
  %3778 = vmatprep.subr.mxu0 0.0
  %3779 = vmatpush1.msra.mxu0 0.0
  %3780 = vmatprep.subr.mxu0 0.0
  %3781 = vmatpush1.msra.mxu0 0.0
  %3782 = vmatprep.subr.mxu0 0.0
  %3783 = vmatpush1.msra.mxu0 0.0
  %3784 = vmatprep.subr.mxu0 0.0
  %3785 = vmatpush1.msra.mxu0 0.0
  %3786 = vmatprep.subr.mxu0 0.0
  %3787 = vmatpush1.msra.mxu0 0.0
  %3788 = vmatprep.subr.mxu0 0.0
  %3789 = vmatpush1.msra.mxu0 0.0
  %3790 = vmatprep.subr.mxu0 0.0
  %3791 = vmatpush1.msra.mxu0 0.0
  %3792 = vmatprep.subr.mxu0 0.0
  %3793 = vmatpush1.msra.mxu0 0.0
  %3794 = vmatprep.subr.mxu0 0.0
  %3795 = vmatpush1.msra.mxu0 0.0
  %3796 = vmatprep.subr.mxu0 0.0
  %3797 = vmatpush1.msra.mxu0 0.0
  %3798 = vmatprep.subr.mxu0 0.0
  %3799 = vmatpush1.msra.mxu0 0.0
  %3800 = vmatprep.subr.mxu0 0.0
  %3801 = vmatpush1.msra.mxu0 0.0
  %3802 = vmatprep.subr.mxu0 0.0
  %3803 = vmatpush1.msra.mxu0 %v3676
  %3804 = vmatprep.subr.mxu0 0.0
  %3805 = vmatpush1.msra.mxu0 %v3673
  %3806 = vmatprep.subr.mxu0 0.0
  %3807 = vmatpush1.msra.mxu0 %v3670
  %3808 = vmatprep.subr.mxu0 0.0
  %3809 = vmatpush1.msra.mxu0 %v3667
  %3810 = vmatprep.subr.mxu0 0.0
  %3811 = vmatpush2.msra.mxu0 0.0
  %3812 = vmatprep.subr.mxu0 0.0
  %3813 = vmatpush2.msra.mxu0 0.0
  %3814 = vmatprep.subr.mxu0 0.0
  %3815 = vmatpush2.msra.mxu0 0.0
  %3816 = vmatprep.subr.mxu0 0.0
  %3817 = vmatpush2.msra.mxu0 0.0
  %3818 = vmatprep.subr.mxu0 0.0
  %3819 = vmatpush2.msra.mxu0 0.0
  %3820 = vmatprep.subr.mxu0 0.0
  %3821 = vmatpush2.msra.mxu0 0.0
  %3822 = vmatprep.subr.mxu0 0.0
  %3823 = vmatpush2.msra.mxu0 0.0
  %3824 = vmatprep.subr.mxu0 0.0
  %3825 = vmatpush2.msra.mxu0 0.0
  %3826 = vmatprep.subr.mxu0 0.0
  %3827 = vmatpush2.msra.mxu0 0.0
  %3828 = vmatprep.subr.mxu0 0.0
  %3829 = vmatpush2.msra.mxu0 0.0
  %3830 = vmatprep.subr.mxu0 0.0
  %3831 = vmatpush2.msra.mxu0 0.0
  %3832 = vmatprep.subr.mxu0 0.0
  %3833 = vmatpush2.msra.mxu0 0.0
  %3834 = vmatprep.subr.mxu0 0.0
  %3835 = vmatpush2.msra.mxu0 0.0
  %3836 = vmatprep.subr.mxu0 0.0
  %3837 = vmatpush2.msra.mxu0 0.0
  %3838 = vmatprep.subr.mxu0 0.0
  %3839 = vmatpush2.msra.mxu0 0.0
  %3840 = vmatprep.subr.mxu0 0.0
  %3841 = vmatpush2.msra.mxu0 0.0
  %3842 = vmatprep.mubr.f32.mxu0 0.0
  %3843 = vmatmul.mubr.f32.gmra.mxu0 %v3678
  %v3844 = vpop.f32.mrf.mxu0
  %v3845 = vadd.f32 0.0, %v3844
  %v3846 = vpop.f32.mrf.mxu0
  %3847 = vmatprep.mubr.f32.mxu0 0.0
  %3848 = vmatmul.mubr.f32.gmra.mxu0 %v3681
  %v3849 = vpop.f32.mrf.mxu0
  %v3850 = vadd.f32 0.0, %v3849
  %v3851 = vpop.f32.mrf.mxu0
  %3852 = vmatprep.mubr.f32.mxu0 0.0
  %3853 = vmatmul.mubr.f32.gmra.mxu0 %v3684
  %v3854 = vpop.f32.mrf.mxu0
  %v3855 = vadd.f32 0.0, %v3854
  %v3856 = vpop.f32.mrf.mxu0
  %3857 = vmatprep.mubr.f32.mxu0 0.0
  %3858 = vmatmul.mubr.f32.gmra.mxu0 %v3687
  %v3859 = vpop.f32.mrf.mxu0
  %v3860 = vadd.f32 0.0, %v3859
  %v3861 = vpop.f32.mrf.mxu0
  %3862 = vdwg.mxu0
  %3863 = vmatprep.subr.mxu0 0.0
  %3864 = vmatpush1.msra.mxu0 0.0
  %3865 = vmatprep.subr.mxu0 0.0
  %3866 = vmatpush1.msra.mxu0 0.0
  %3867 = vmatprep.subr.mxu0 0.0
  %3868 = vmatpush1.msra.mxu0 0.0
  %3869 = vmatprep.subr.mxu0 0.0
  %3870 = vmatpush1.msra.mxu0 0.0
  %3871 = vmatprep.subr.mxu0 0.0
  %3872 = vmatpush1.msra.mxu0 0.0
  %3873 = vmatprep.subr.mxu0 0.0
  %3874 = vmatpush1.msra.mxu0 0.0
  %3875 = vmatprep.subr.mxu0 0.0
  %3876 = vmatpush1.msra.mxu0 0.0
  %3877 = vmatprep.subr.mxu0 0.0
  %3878 = vmatpush1.msra.mxu0 0.0
  %3879 = vmatprep.subr.mxu0 0.0
  %3880 = vmatpush1.msra.mxu0 0.0
  %3881 = vmatprep.subr.mxu0 0.0
  %3882 = vmatpush1.msra.mxu0 0.0
  %3883 = vmatprep.subr.mxu0 0.0
  %3884 = vmatpush1.msra.mxu0 0.0
  %3885 = vmatprep.subr.mxu0 0.0
  %3886 = vmatpush1.msra.mxu0 0.0
  %3887 = vmatprep.subr.mxu0 0.0
  %3888 = vmatpush1.msra.mxu0 %v3774
  %3889 = vmatprep.subr.mxu0 0.0
  %3890 = vmatpush1.msra.mxu0 %v3768
  %3891 = vmatprep.subr.mxu0 0.0
  %3892 = vmatpush1.msra.mxu0 %v3762
  %3893 = vmatprep.subr.mxu0 0.0
  %3894 = vmatpush1.msra.mxu0 %v3756
  %3895 = vmatprep.subr.mxu0 0.0
  %3896 = vmatpush2.msra.mxu0 0.0
  %3897 = vmatprep.subr.mxu0 0.0
  %3898 = vmatpush2.msra.mxu0 0.0
  %3899 = vmatprep.subr.mxu0 0.0
  %3900 = vmatpush2.msra.mxu0 0.0
  %3901 = vmatprep.subr.mxu0 0.0
  %3902 = vmatpush2.msra.mxu0 0.0
  %3903 = vmatprep.subr.mxu0 0.0
  %3904 = vmatpush2.msra.mxu0 0.0
  %3905 = vmatprep.subr.mxu0 0.0
  %3906 = vmatpush2.msra.mxu0 0.0
  %3907 = vmatprep.subr.mxu0 0.0
  %3908 = vmatpush2.msra.mxu0 0.0
  %3909 = vmatprep.subr.mxu0 0.0
  %3910 = vmatpush2.msra.mxu0 0.0
  %3911 = vmatprep.subr.mxu0 0.0
  %3912 = vmatpush2.msra.mxu0 0.0
  %3913 = vmatprep.subr.mxu0 0.0
  %3914 = vmatpush2.msra.mxu0 0.0
  %3915 = vmatprep.subr.mxu0 0.0
  %3916 = vmatpush2.msra.mxu0 0.0
  %3917 = vmatprep.subr.mxu0 0.0
  %3918 = vmatpush2.msra.mxu0 0.0
  %3919 = vmatprep.subr.mxu0 0.0
  %3920 = vmatpush2.msra.mxu0 0.0
  %3921 = vmatprep.subr.mxu0 0.0
  %3922 = vmatpush2.msra.mxu0 0.0
  %3923 = vmatprep.subr.mxu0 0.0
  %3924 = vmatpush2.msra.mxu0 0.0
  %3925 = vmatprep.subr.mxu0 0.0
  %3926 = vmatpush2.msra.mxu0 0.0
  %3927 = vmatprep.mubr.f32.mxu0 0.0
  %3928 = vmatmul.mubr.f32.gmra.mxu0 %v3439
  %v3929 = vpop.f32.mrf.mxu0
  %v3930 = vadd.f32 %v3758, %v3929
  %v3931 = vpop.f32.mrf.mxu0
  %3932 = vmatprep.mubr.f32.mxu0 0.0
  %3933 = vmatmul.mubr.f32.gmra.mxu0 %v3442
  %v3934 = vpop.f32.mrf.mxu0
  %v3935 = vadd.f32 %v3764, %v3934
  %v3936 = vpop.f32.mrf.mxu0
  %3937 = vmatprep.mubr.f32.mxu0 0.0
  %3938 = vmatmul.mubr.f32.gmra.mxu0 %v3445
  %v3939 = vpop.f32.mrf.mxu0
  %v3940 = vadd.f32 %v3770, %v3939
  %v3941 = vpop.f32.mrf.mxu0
  %3942 = vmatprep.mubr.f32.mxu0 0.0
  %3943 = vmatmul.mubr.f32.gmra.mxu0 %v3448
  %v3944 = vpop.f32.mrf.mxu0
  %v3945 = vadd.f32 %v3776, %v3944
  %v3946 = vpop.f32.mrf.mxu0
  %3947 = vdwg.mxu0
  %3948 = vmatprep.subr.mxu0 0.0
  %3949 = vmatpush1.msra.mxu0 0.0
  %3950 = vmatprep.subr.mxu0 0.0
  %3951 = vmatpush1.msra.mxu0 0.0
  %3952 = vmatprep.subr.mxu0 0.0
  %3953 = vmatpush1.msra.mxu0 0.0
  %3954 = vmatprep.subr.mxu0 0.0
  %3955 = vmatpush1.msra.mxu0 0.0
  %3956 = vmatprep.subr.mxu0 0.0
  %3957 = vmatpush1.msra.mxu0 0.0
  %3958 = vmatprep.subr.mxu0 0.0
  %3959 = vmatpush1.msra.mxu0 0.0
  %3960 = vmatprep.subr.mxu0 0.0
  %3961 = vmatpush1.msra.mxu0 0.0
  %3962 = vmatprep.subr.mxu0 0.0
  %3963 = vmatpush1.msra.mxu0 0.0
  %3964 = vmatprep.subr.mxu0 0.0
  %3965 = vmatpush1.msra.mxu0 0.0
  %3966 = vmatprep.subr.mxu0 0.0
  %3967 = vmatpush1.msra.mxu0 0.0
  %3968 = vmatprep.subr.mxu0 0.0
  %3969 = vmatpush1.msra.mxu0 0.0
  %3970 = vmatprep.subr.mxu0 0.0
  %3971 = vmatpush1.msra.mxu0 0.0
  %3972 = vmatprep.subr.mxu0 0.0
  %3973 = vmatpush1.msra.mxu0 %v3860
  %3974 = vmatprep.subr.mxu0 0.0
  %3975 = vmatpush1.msra.mxu0 %v3855
  %3976 = vmatprep.subr.mxu0 0.0
  %3977 = vmatpush1.msra.mxu0 %v3850
  %3978 = vmatprep.subr.mxu0 0.0
  %3979 = vmatpush1.msra.mxu0 %v3845
  %3980 = vmatprep.subr.mxu0 0.0
  %3981 = vmatpush2.msra.mxu0 0.0
  %3982 = vmatprep.subr.mxu0 0.0
  %3983 = vmatpush2.msra.mxu0 0.0
  %3984 = vmatprep.subr.mxu0 0.0
  %3985 = vmatpush2.msra.mxu0 0.0
  %3986 = vmatprep.subr.mxu0 0.0
  %3987 = vmatpush2.msra.mxu0 0.0
  %3988 = vmatprep.subr.mxu0 0.0
  %3989 = vmatpush2.msra.mxu0 0.0
  %3990 = vmatprep.subr.mxu0 0.0
  %3991 = vmatpush2.msra.mxu0 0.0
  %3992 = vmatprep.subr.mxu0 0.0
  %3993 = vmatpush2.msra.mxu0 0.0
  %3994 = vmatprep.subr.mxu0 0.0
  %3995 = vmatpush2.msra.mxu0 0.0
  %3996 = vmatprep.subr.mxu0 0.0
  %3997 = vmatpush2.msra.mxu0 0.0
  %3998 = vmatprep.subr.mxu0 0.0
  %3999 = vmatpush2.msra.mxu0 0.0
  %4000 = vmatprep.subr.mxu0 0.0
  %4001 = vmatpush2.msra.mxu0 0.0
  %4002 = vmatprep.subr.mxu0 0.0
  %4003 = vmatpush2.msra.mxu0 0.0
  %4004 = vmatprep.subr.mxu0 0.0
  %4005 = vmatpush2.msra.mxu0 0.0
  %4006 = vmatprep.subr.mxu0 0.0
  %4007 = vmatpush2.msra.mxu0 0.0
  %4008 = vmatprep.subr.mxu0 0.0
  %4009 = vmatpush2.msra.mxu0 0.0
  %4010 = vmatprep.subr.mxu0 0.0
  %4011 = vmatpush2.msra.mxu0 0.0
  %4012 = vmatprep.mubr.f32.mxu0 0.0
  %4013 = vmatmul.mubr.f32.gmra.mxu0 %v3555
  %v4014 = vpop.f32.mrf.mxu0
  %v4015 = vadd.f32 0.0, %v4014
  %v4016 = vpop.f32.mrf.mxu0
  %4017 = vmatprep.mubr.f32.mxu0 0.0
  %4018 = vmatmul.mubr.f32.gmra.mxu0 %v3557
  %v4019 = vpop.f32.mrf.mxu0
  %v4020 = vadd.f32 0.0, %v4019
  %v4021 = vpop.f32.mrf.mxu0
  %4022 = vmatprep.mubr.f32.mxu0 0.0
  %4023 = vmatmul.mubr.f32.gmra.mxu0 %v3559
  %v4024 = vpop.f32.mrf.mxu0
  %v4025 = vadd.f32 0.0, %v4024
  %v4026 = vpop.f32.mrf.mxu0
  %4027 = vmatprep.mubr.f32.mxu0 0.0
  %4028 = vmatmul.mubr.f32.gmra.mxu0 %v3561
  %v4029 = vpop.f32.mrf.mxu0
  %v4030 = vadd.f32 0.0, %v4029
  %v4031 = vpop.f32.mrf.mxu0
  %4032 = vdwg.mxu0
  %v4033 = vadd.f32 %v3930, %v4015
  %v4034 = vadd.f32 %v3935, %v4020
  %v4035 = vadd.f32 %v3940, %v4025
  %v4036 = vadd.f32 %v3945, %v4030
  %v4037 = vld [vmem:[%s6 + $0x7] sm:$0x1]
  %v4038 = vlaneseq
  %v4039 = vshrl.u32 %v4038, 7
  %v4040 = vsub.s32 0, %v4039
  %v4041 = vrot.slane %v4037, %v4040
  %v4042 = vadd.f32 %v4033, %v4041
  %v4043 = vadd.f32 %v4034, %v4041
  %v4044 = vadd.f32 %v4035, %v4041
  %v4045 = vadd.f32 %v4036, %v4041
  %4046 = vst [vmem:[%s7] sm:$0xff] %v4042
  %4047 = vst [vmem:[%s7 + $0x8] sm:$0xff] %v4043
  %4048 = vst [vmem:[%s7 + $0x10] sm:$0xff] %v4044
  %4049 = vst [vmem:[%s7 + $0x18] sm:$0xff] %v4045
  // Predicated region
  $region30: #{tr_egnn_forward.1} parent=0 // pred_check
    _
  $region31: #{tr_egnn_forward.1} parent=0 // pred_check_branch
    %4051 = sbr.rel (0) target = $region33
  $region32: #{tr_egnn_forward.1} parent=0 // pred_region
    _
  $region33: #{tr_egnn_forward.1} parent=0 // pred_fallthru
    _
  // Predicated region
  $region34: #{tr_egnn_forward.1} parent=0 // pred_check
    _
  $region35: #{tr_egnn_forward.1} parent=0 // pred_check_branch
    %4053 = sbr.rel (0) target = $region37
  $region36: #{tr_egnn_forward.1} parent=0 // pred_region
    _
  $region37: #{tr_egnn_forward.1} parent=0 // pred_fallthru
    _

</llo_original>
